<compile_context>
chip_gen: v7x
topology: tpu7x:2x2x1
jax: 0.10.0
libtpu: 0.0.40
codegen_flags: <defaults>
</compile_context>

<pallas_src>
import math
from functools import partial

import jax
import jax.numpy as jnp
from jax.experimental import pallas as pl
from jax.experimental.pallas import tpu as pltpu


# ----------------------- fused DecoderBlock kernel --------------------------

def _decoder_block_kernel(x_ref, enc_ref, wqkv_ref, wo_ref, bo_ref,
                          lng_ref, lnb_ref, w1_ref, b1_ref, w2_ref, b2_ref,
                          o_ref, *, head_num, eps):
    x = x_ref[0]            # (S, D)  decoder-side activations for this batch
    enc = enc_ref[0]        # (Se, D) encoder result for this batch
    D = x.shape[-1]
    dk = D // head_num
    scale = 1.0 / math.sqrt(dk)

    gamma = lng_ref[...]    # (1, D)
    beta = lnb_ref[...]     # (1, D)
    wqkv = wqkv_ref[...]    # (D, 3D) = [Wq | Wk | Wv]
    wo = wo_ref[...]        # (D, D)
    bo = bo_ref[...]        # (1, D)

    def add_ln(residual, sub):
        # LayerNorm(dropout(sub) + residual), dropout == identity (p = 0)
        y = sub + residual
        mean = jnp.mean(y, axis=-1, keepdims=True)
        c = y - mean
        var = jnp.mean(c * c, axis=-1, keepdims=True)
        return c * jax.lax.rsqrt(var + eps) * gamma + beta

    def attention(Q, K, V):
        # Per-head scaled-dot-product attention; heads are static lane slices,
        # so no head-split transposes are ever materialized.  Pre-scale Q once
        # (S*D mults) instead of scaling every H*S*S score.
        Qs = Q * scale
        outs = []
        for h in range(head_num):
            sl = slice(h * dk, (h + 1) * dk)
            qh, kh, vh = Qs[:, sl], K[:, sl], V[:, sl]
            s = jax.lax.dot_general(                     # Q @ K^T, no explicit .T
                qh, kh, (((1,), (1,)), ((), ())),
                preferred_element_type=jnp.float32)
            m = jnp.max(s, axis=-1, keepdims=True)
            p = jnp.exp(s - m)
            denom = jnp.sum(p, axis=-1, keepdims=True)
            attn = p * pl.reciprocal(denom, approx=True)  # divide on the EUP slot
            outs.append(jnp.dot(attn, vh, preferred_element_type=jnp.float32))
        return jnp.concatenate(outs, axis=-1)             # (Sq, D)

    def mha_out(ctx, relu_out):
        out = jnp.dot(ctx, wo, preferred_element_type=jnp.float32) + bo
        return jnp.maximum(out, 0.0) if relu_out else out

    # ---- self attention (mask=None path) ----
    # TODO(synk): masked decoder self-attention (mask != None) not implemented.
    qkv = jnp.dot(x, wqkv, preferred_element_type=jnp.float32)       # (S, 3D)
    ctx = attention(qkv[:, :D], qkv[:, D:2 * D], qkv[:, 2 * D:])
    x1 = add_ln(x, mha_out(ctx, relu_out=False))

    # ---- cross attention (same MHA weights; F.relu on its output) ----
    q = jnp.dot(x1, wqkv[:, :D], preferred_element_type=jnp.float32)     # (S, D)
    kv = jnp.dot(enc, wqkv[:, D:], preferred_element_type=jnp.float32)   # (Se, 2D)
    ctx = attention(q, kv[:, :D], kv[:, D:])
    x2 = add_ln(x1, mha_out(ctx, relu_out=True))

    # ---- position-wise feed-forward ----
    h = jnp.maximum(
        jnp.dot(x2, w1_ref[...], preferred_element_type=jnp.float32) + b1_ref[...],
        0.0)
    ff = jnp.dot(h, w2_ref[...], preferred_element_type=jnp.float32) + b2_ref[...]

    o_ref[0] = add_ln(x2, ff).astype(o_ref.dtype)


def decoder_block(p, x, enc, head_num, eps=1e-5):
    """One fused pallas_call for a whole DecoderBlock.  x:(B,S,D) enc:(B,Se,D)."""
    B, S, D = x.shape
    Se = enc.shape[1]
    d_ff = p["W1"].shape[1]
    dk = D // head_num

    flops = B * (
        2 * S * D * 3 * D                       # fused QKV projection (self)
        + head_num * 4 * S * S * dk             # self-attention scores + output
        + 2 * S * D * D                         # Wo (self)
        + 2 * S * D * D                         # Q projection (cross)
        + 2 * Se * D * 2 * D                    # K/V projection (cross)
        + head_num * 4 * S * Se * dk            # cross-attention scores + output
        + 2 * S * D * D                         # Wo (cross)
        + 2 * S * D * d_ff + 2 * S * d_ff * D)  # feed-forward
    transcendentals = B * (head_num * S * (S + Se) + 8 * S)
    bytes_accessed = 4 * (B * S * D * 2 + B * Se * D
                          + D * 3 * D + D * D + 4 * D + D * d_ff + d_ff + d_ff * D)

    return pl.pallas_call(
        partial(_decoder_block_kernel, head_num=head_num, eps=eps),
        grid=(B,),
        in_specs=[
            pl.BlockSpec((1, S, D), lambda b: (b, 0, 0)),     # x (per batch)
            pl.BlockSpec((1, Se, D), lambda b: (b, 0, 0)),    # encoder_res
            pl.BlockSpec((D, 3 * D), lambda b: (0, 0)),       # Wqkv
            pl.BlockSpec((D, D), lambda b: (0, 0)),           # Wo
            pl.BlockSpec((1, D), lambda b: (0, 0)),           # bo
            pl.BlockSpec((1, D), lambda b: (0, 0)),           # ln gamma
            pl.BlockSpec((1, D), lambda b: (0, 0)),           # ln beta
            pl.BlockSpec((D, d_ff), lambda b: (0, 0)),        # W1
            pl.BlockSpec((1, d_ff), lambda b: (0, 0)),        # b1
            pl.BlockSpec((d_ff, D), lambda b: (0, 0)),        # W2
            pl.BlockSpec((1, D), lambda b: (0, 0)),           # b2
        ],
        out_specs=pl.BlockSpec((1, S, D), lambda b: (b, 0, 0)),
        out_shape=jax.ShapeDtypeStruct((B, S, D), jnp.float32),
        compiler_params=pltpu.CompilerParams(
            dimension_semantics=("parallel",)),               # shard batch over TCs
        cost_estimate=pl.CostEstimate(flops=flops,
                                      transcendentals=transcendentals,
                                      bytes_accessed=bytes_accessed),
    )(x, enc, p["Wqkv"], p["Wo"], p["bo"], p["ln_g"], p["ln_b"],
      p["W1"], p["b1"], p["W2"], p["b2"])


# ------------------------------ model glue ----------------------------------

def position_encoding(max_len, d_model):
    pos = jnp.arange(max_len, dtype=jnp.float32)[:, None]
    _2i = jnp.arange(0, d_model, 2, dtype=jnp.float32)
    angle = pos / jnp.power(10000.0, _2i / d_model)
    pe = jnp.zeros((max_len, d_model), jnp.float32)
    pe = pe.at[:, 0::2].set(jnp.sin(angle))
    pe = pe.at[:, 1::2].set(jnp.cos(angle))
    return pe


def decoder_forward(params, X, encoder_res, head_num):
    """Decoder.forward(X, encoder_res, mask=None).  X:(B,S) int32."""
    B, S = X.shape
    d_model = params["embed"].shape[1]
    # Token-embedding gather + positional add kept as one tiny XLA op
    # (a per-token gather has no rectangular BlockSpec equivalent at this size).
    y = params["embed"][X] * math.sqrt(d_model) + params["pos"][:S, :][None, :, :]
    for bp in params["blocks"]:
        y = decoder_block(bp, y, encoder_res, head_num)
    return y


# --------------------------- parameter init ---------------------------------

def init_params(seed, vocab, d_model, max_len, block_nums, d_ff):
    key = jax.random.PRNGKey(seed)

    def nxt():
        nonlocal key
        key, sub = jax.random.split(key)
        return sub

    def dense(shape, scale=0.05):
        return (scale * jax.random.normal(nxt(), shape)).astype(jnp.float32)

    def block_params():
        return {
            "Wqkv": dense((d_model, 3 * d_model)),      # [Wq | Wk | Wv], bias=False
            "Wo": dense((d_model, d_model)),
            "bo": dense((1, d_model)),
            "ln_g": jnp.ones((1, d_model), jnp.float32),
            "ln_b": jnp.zeros((1, d_model), jnp.float32),
            "W1": dense((d_model, d_ff)),
            "b1": dense((1, d_ff)),
            "W2": dense((d_ff, d_model)),
            "b2": dense((1, d_model)),
        }

    return {
        "embed": dense((vocab, d_model), scale=1.0),
        "pos": position_encoding(max_len, d_model),
        "blocks": [block_params() for _ in range(block_nums)],
    }


# --------------------------------- main --------------------------------------

if __name__ == "__main__":
    vocab_size, d_model, max_len = 32, 32, 16
    drop_prob = 0.0            # dropout == identity (exact match of that path)
    block_nums, head_nums, d_ff, pad_idx = 2, 4, 64, 0
    B, S_tgt, S_enc = 2, 8, 8

    params = init_params(0, vocab_size, d_model, max_len, block_nums, d_ff)

    key = jax.random.PRNGKey(0)
    k1, k2 = jax.random.split(key)
    X = jax.random.randint(k1, (B, S_tgt), 0, vocab_size, dtype=jnp.int32)
    encoder_res = 0.1 * jax.random.normal(k2, (B, S_enc, d_model), dtype=jnp.float32)

    fwd = jax.jit(partial(decoder_forward, head_num=head_nums))
    out = fwd(params, X, encoder_res)
    jax.block_until_ready(out)
    assert out.shape == (B, S_tgt, d_model)
    assert bool(jnp.all(jnp.isfinite(out)))
    print("KERNEL_OK")
</pallas_src>

<mosaic_0001>
module attributes {stable_mosaic.version = 11 : i64} {
  func.func @_decoder_block_kernel(%arg0: i32, %arg1: memref<1x8x32xf32, #tpu.memory_space<vmem>>, %arg2: memref<1x8x32xf32, #tpu.memory_space<vmem>>, %arg3: memref<32x96xf32, #tpu.memory_space<vmem>>, %arg4: memref<32x32xf32, #tpu.memory_space<vmem>>, %arg5: memref<1x32xf32, #tpu.memory_space<vmem>>, %arg6: memref<1x32xf32, #tpu.memory_space<vmem>>, %arg7: memref<1x32xf32, #tpu.memory_space<vmem>>, %arg8: memref<32x64xf32, #tpu.memory_space<vmem>>, %arg9: memref<1x64xf32, #tpu.memory_space<vmem>>, %arg10: memref<64x32xf32, #tpu.memory_space<vmem>>, %arg11: memref<1x32xf32, #tpu.memory_space<vmem>>, %arg12: memref<1x8x32xf32, #tpu.memory_space<vmem>>) attributes {dimension_semantics = [#tpu.dimension_semantics<parallel>], iteration_bounds = array<i64: 2>, scalar_prefetch = 0 : i64, scratch_operands = 0 : i64, tpu.core_type = #tpu.core_type<tc>, window_params = [{transform_indices = @transform_0, window_bounds = array<i64: 1, 8, 32>}, {transform_indices = @transform_1, window_bounds = array<i64: 1, 8, 32>}, {pipeline_mode = #tpu.pipeline_mode<synchronous>, transform_indices = @transform_2, window_bounds = array<i64: 32, 96>}, {pipeline_mode = #tpu.pipeline_mode<synchronous>, transform_indices = @transform_3, window_bounds = array<i64: 32, 32>}, {pipeline_mode = #tpu.pipeline_mode<synchronous>, transform_indices = @transform_4, window_bounds = array<i64: 1, 32>}, {pipeline_mode = #tpu.pipeline_mode<synchronous>, transform_indices = @transform_5, window_bounds = array<i64: 1, 32>}, {pipeline_mode = #tpu.pipeline_mode<synchronous>, transform_indices = @transform_6, window_bounds = array<i64: 1, 32>}, {pipeline_mode = #tpu.pipeline_mode<synchronous>, transform_indices = @transform_7, window_bounds = array<i64: 32, 64>}, {pipeline_mode = #tpu.pipeline_mode<synchronous>, transform_indices = @transform_8, window_bounds = array<i64: 1, 64>}, {pipeline_mode = #tpu.pipeline_mode<synchronous>, transform_indices = @transform_9, window_bounds = array<i64: 64, 32>}, {pipeline_mode = #tpu.pipeline_mode<synchronous>, transform_indices = @transform_10, window_bounds = array<i64: 1, 32>}, {transform_indices = @transform_11, window_bounds = array<i64: 1, 8, 32>}]} {
    %c0 = arith.constant 0 : index
    %c0_0 = arith.constant 0 : index
    %c0_1 = arith.constant 0 : index
    %0 = vector.load %arg1[%c0, %c0_0, %c0_1] : memref<1x8x32xf32, #tpu.memory_space<vmem>>, vector<1x8x32xf32>
    %1 = vector.shape_cast %0 : vector<1x8x32xf32> to vector<8x32xf32>
    %c0_2 = arith.constant 0 : index
    %c0_3 = arith.constant 0 : index
    %c0_4 = arith.constant 0 : index
    %2 = vector.load %arg2[%c0_2, %c0_3, %c0_4] : memref<1x8x32xf32, #tpu.memory_space<vmem>>, vector<1x8x32xf32>
    %3 = vector.shape_cast %2 : vector<1x8x32xf32> to vector<8x32xf32>
    %c0_5 = arith.constant 0 : index
    %c0_6 = arith.constant 0 : index
    %4 = vector.load %arg6[%c0_5, %c0_6] : memref<1x32xf32, #tpu.memory_space<vmem>>, vector<1x32xf32>
    %c0_7 = arith.constant 0 : index
    %c0_8 = arith.constant 0 : index
    %5 = vector.load %arg7[%c0_7, %c0_8] : memref<1x32xf32, #tpu.memory_space<vmem>>, vector<1x32xf32>
    %c0_9 = arith.constant 0 : index
    %c0_10 = arith.constant 0 : index
    %6 = vector.load %arg3[%c0_9, %c0_10] : memref<32x96xf32, #tpu.memory_space<vmem>>, vector<32x96xf32>
    %c0_11 = arith.constant 0 : index
    %c0_12 = arith.constant 0 : index
    %7 = vector.load %arg4[%c0_11, %c0_12] : memref<32x32xf32, #tpu.memory_space<vmem>>, vector<32x32xf32>
    %c0_13 = arith.constant 0 : index
    %c0_14 = arith.constant 0 : index
    %8 = vector.load %arg5[%c0_13, %c0_14] : memref<1x32xf32, #tpu.memory_space<vmem>>, vector<1x32xf32>
    %cst = arith.constant dense<0.000000e+00> : vector<8x96xf32>
    %9 = tpu.matmul %1, %6, %cst {dimension_numbers = #tpu.dot_dimension_numbers<[1], [0], [0], [1], [0, 0, 1, 1], [], []>} : vector<8x32xf32>, vector<32x96xf32>, vector<8x96xf32> -> vector<8x96xf32>
    %10 = vector.extract_strided_slice %9 {offsets = [0, 0], sizes = [8, 32], strides = [1, 1]} : vector<8x96xf32> to vector<8x32xf32>
    %11 = vector.extract_strided_slice %9 {offsets = [0, 32], sizes = [8, 32], strides = [1, 1]} : vector<8x96xf32> to vector<8x32xf32>
    %12 = vector.extract_strided_slice %9 {offsets = [0, 64], sizes = [8, 32], strides = [1, 1]} : vector<8x96xf32> to vector<8x32xf32>
    %cst_15 = arith.constant 0.353553385 : f32
    %13 = vector.broadcast %cst_15 : f32 to vector<8x32xf32>
    %14 = arith.mulf %10, %13 : vector<8x32xf32>
    %15 = vector.extract_strided_slice %14 {offsets = [0, 0], sizes = [8, 8], strides = [1, 1]} : vector<8x32xf32> to vector<8x8xf32>
    %16 = vector.extract_strided_slice %11 {offsets = [0, 0], sizes = [8, 8], strides = [1, 1]} : vector<8x32xf32> to vector<8x8xf32>
    %17 = vector.extract_strided_slice %12 {offsets = [0, 0], sizes = [8, 8], strides = [1, 1]} : vector<8x32xf32> to vector<8x8xf32>
    %cst_16 = arith.constant dense<0.000000e+00> : vector<8x8xf32>
    %18 = tpu.matmul %15, %16, %cst_16 {dimension_numbers = #tpu.dot_dimension_numbers<[1], [1], [0], [0], [0, 0, 1, 0], [], []>} : vector<8x8xf32>, vector<8x8xf32>, vector<8x8xf32> -> vector<8x8xf32>
    %cst_17 = arith.constant dense<0xFF800000> : vector<8xf32>
    %19 = vector.multi_reduction <maximumf>, %18, %cst_17 [1] : vector<8x8xf32> to vector<8xf32>
    %20 = vector.shape_cast %19 : vector<8xf32> to vector<8x1xf32>
    %21 = vector.broadcast %20 : vector<8x1xf32> to vector<8x8xf32>
    %22 = arith.subf %18, %21 : vector<8x8xf32>
    %23 = math.exp %22 : vector<8x8xf32>
    %cst_18 = arith.constant dense<0.000000e+00> : vector<8xf32>
    %24 = vector.multi_reduction <add>, %23, %cst_18 [1] : vector<8x8xf32> to vector<8xf32>
    %25 = vector.shape_cast %24 : vector<8xf32> to vector<8x1xf32>
    %26 = tpu.reciprocal %25 {approx = true} : vector<8x1xf32> -> vector<8x1xf32>
    %27 = vector.broadcast %26 : vector<8x1xf32> to vector<8x8xf32>
    %28 = arith.mulf %23, %27 : vector<8x8xf32>
    %cst_19 = arith.constant dense<0.000000e+00> : vector<8x8xf32>
    %29 = tpu.matmul %28, %17, %cst_19 {dimension_numbers = #tpu.dot_dimension_numbers<[1], [0], [0], [1], [0, 0, 1, 1], [], []>} : vector<8x8xf32>, vector<8x8xf32>, vector<8x8xf32> -> vector<8x8xf32>
    %30 = vector.extract_strided_slice %14 {offsets = [0, 8], sizes = [8, 8], strides = [1, 1]} : vector<8x32xf32> to vector<8x8xf32>
    %31 = vector.extract_strided_slice %11 {offsets = [0, 8], sizes = [8, 8], strides = [1, 1]} : vector<8x32xf32> to vector<8x8xf32>
    %32 = vector.extract_strided_slice %12 {offsets = [0, 8], sizes = [8, 8], strides = [1, 1]} : vector<8x32xf32> to vector<8x8xf32>
    %cst_20 = arith.constant dense<0.000000e+00> : vector<8x8xf32>
    %33 = tpu.matmul %30, %31, %cst_20 {dimension_numbers = #tpu.dot_dimension_numbers<[1], [1], [0], [0], [0, 0, 1, 0], [], []>} : vector<8x8xf32>, vector<8x8xf32>, vector<8x8xf32> -> vector<8x8xf32>
    %cst_21 = arith.constant dense<0xFF800000> : vector<8xf32>
    %34 = vector.multi_reduction <maximumf>, %33, %cst_21 [1] : vector<8x8xf32> to vector<8xf32>
    %35 = vector.shape_cast %34 : vector<8xf32> to vector<8x1xf32>
    %36 = vector.broadcast %35 : vector<8x1xf32> to vector<8x8xf32>
    %37 = arith.subf %33, %36 : vector<8x8xf32>
    %38 = math.exp %37 : vector<8x8xf32>
    %cst_22 = arith.constant dense<0.000000e+00> : vector<8xf32>
    %39 = vector.multi_reduction <add>, %38, %cst_22 [1] : vector<8x8xf32> to vector<8xf32>
    %40 = vector.shape_cast %39 : vector<8xf32> to vector<8x1xf32>
    %41 = tpu.reciprocal %40 {approx = true} : vector<8x1xf32> -> vector<8x1xf32>
    %42 = vector.broadcast %41 : vector<8x1xf32> to vector<8x8xf32>
    %43 = arith.mulf %38, %42 : vector<8x8xf32>
    %cst_23 = arith.constant dense<0.000000e+00> : vector<8x8xf32>
    %44 = tpu.matmul %43, %32, %cst_23 {dimension_numbers = #tpu.dot_dimension_numbers<[1], [0], [0], [1], [0, 0, 1, 1], [], []>} : vector<8x8xf32>, vector<8x8xf32>, vector<8x8xf32> -> vector<8x8xf32>
    %45 = vector.extract_strided_slice %14 {offsets = [0, 16], sizes = [8, 8], strides = [1, 1]} : vector<8x32xf32> to vector<8x8xf32>
    %46 = vector.extract_strided_slice %11 {offsets = [0, 16], sizes = [8, 8], strides = [1, 1]} : vector<8x32xf32> to vector<8x8xf32>
    %47 = vector.extract_strided_slice %12 {offsets = [0, 16], sizes = [8, 8], strides = [1, 1]} : vector<8x32xf32> to vector<8x8xf32>
    %cst_24 = arith.constant dense<0.000000e+00> : vector<8x8xf32>
    %48 = tpu.matmul %45, %46, %cst_24 {dimension_numbers = #tpu.dot_dimension_numbers<[1], [1], [0], [0], [0, 0, 1, 0], [], []>} : vector<8x8xf32>, vector<8x8xf32>, vector<8x8xf32> -> vector<8x8xf32>
    %cst_25 = arith.constant dense<0xFF800000> : vector<8xf32>
    %49 = vector.multi_reduction <maximumf>, %48, %cst_25 [1] : vector<8x8xf32> to vector<8xf32>
    %50 = vector.shape_cast %49 : vector<8xf32> to vector<8x1xf32>
    %51 = vector.broadcast %50 : vector<8x1xf32> to vector<8x8xf32>
    %52 = arith.subf %48, %51 : vector<8x8xf32>
    %53 = math.exp %52 : vector<8x8xf32>
    %cst_26 = arith.constant dense<0.000000e+00> : vector<8xf32>
    %54 = vector.multi_reduction <add>, %53, %cst_26 [1] : vector<8x8xf32> to vector<8xf32>
    %55 = vector.shape_cast %54 : vector<8xf32> to vector<8x1xf32>
    %56 = tpu.reciprocal %55 {approx = true} : vector<8x1xf32> -> vector<8x1xf32>
    %57 = vector.broadcast %56 : vector<8x1xf32> to vector<8x8xf32>
    %58 = arith.mulf %53, %57 : vector<8x8xf32>
    %cst_27 = arith.constant dense<0.000000e+00> : vector<8x8xf32>
    %59 = tpu.matmul %58, %47, %cst_27 {dimension_numbers = #tpu.dot_dimension_numbers<[1], [0], [0], [1], [0, 0, 1, 1], [], []>} : vector<8x8xf32>, vector<8x8xf32>, vector<8x8xf32> -> vector<8x8xf32>
    %60 = vector.extract_strided_slice %14 {offsets = [0, 24], sizes = [8, 8], strides = [1, 1]} : vector<8x32xf32> to vector<8x8xf32>
    %61 = vector.extract_strided_slice %11 {offsets = [0, 24], sizes = [8, 8], strides = [1, 1]} : vector<8x32xf32> to vector<8x8xf32>
    %62 = vector.extract_strided_slice %12 {offsets = [0, 24], sizes = [8, 8], strides = [1, 1]} : vector<8x32xf32> to vector<8x8xf32>
    %cst_28 = arith.constant dense<0.000000e+00> : vector<8x8xf32>
    %63 = tpu.matmul %60, %61, %cst_28 {dimension_numbers = #tpu.dot_dimension_numbers<[1], [1], [0], [0], [0, 0, 1, 0], [], []>} : vector<8x8xf32>, vector<8x8xf32>, vector<8x8xf32> -> vector<8x8xf32>
    %cst_29 = arith.constant dense<0xFF800000> : vector<8xf32>
    %64 = vector.multi_reduction <maximumf>, %63, %cst_29 [1] : vector<8x8xf32> to vector<8xf32>
    %65 = vector.shape_cast %64 : vector<8xf32> to vector<8x1xf32>
    %66 = vector.broadcast %65 : vector<8x1xf32> to vector<8x8xf32>
    %67 = arith.subf %63, %66 : vector<8x8xf32>
    %68 = math.exp %67 : vector<8x8xf32>
    %cst_30 = arith.constant dense<0.000000e+00> : vector<8xf32>
    %69 = vector.multi_reduction <add>, %68, %cst_30 [1] : vector<8x8xf32> to vector<8xf32>
    %70 = vector.shape_cast %69 : vector<8xf32> to vector<8x1xf32>
    %71 = tpu.reciprocal %70 {approx = true} : vector<8x1xf32> -> vector<8x1xf32>
    %72 = vector.broadcast %71 : vector<8x1xf32> to vector<8x8xf32>
    %73 = arith.mulf %68, %72 : vector<8x8xf32>
    %cst_31 = arith.constant dense<0.000000e+00> : vector<8x8xf32>
    %74 = tpu.matmul %73, %62, %cst_31 {dimension_numbers = #tpu.dot_dimension_numbers<[1], [0], [0], [1], [0, 0, 1, 1], [], []>} : vector<8x8xf32>, vector<8x8xf32>, vector<8x8xf32> -> vector<8x8xf32>
    %75 = tpu.concatenate %29, %44, %59, %74 in 1 : vector<8x8xf32>, vector<8x8xf32>, vector<8x8xf32>, vector<8x8xf32> -> vector<8x32xf32>
    %cst_32 = arith.constant dense<0.000000e+00> : vector<8x32xf32>
    %76 = tpu.matmul %75, %7, %cst_32 {dimension_numbers = #tpu.dot_dimension_numbers<[1], [0], [0], [1], [0, 0, 1, 1], [], []>} : vector<8x32xf32>, vector<32x32xf32>, vector<8x32xf32> -> vector<8x32xf32>
    %77 = vector.broadcast %8 : vector<1x32xf32> to vector<8x32xf32>
    %78 = arith.addf %76, %77 : vector<8x32xf32>
    %79 = arith.addf %78, %1 : vector<8x32xf32>
    %cst_33 = arith.constant dense<0.000000e+00> : vector<8xf32>
    %80 = vector.multi_reduction <add>, %79, %cst_33 [1] : vector<8x32xf32> to vector<8xf32>
    %81 = vector.shape_cast %80 : vector<8xf32> to vector<8x1xf32>
    %cst_34 = arith.constant 3.200000e+01 : f32
    %82 = vector.broadcast %cst_34 : f32 to vector<8x1xf32>
    %83 = arith.divf %81, %82 : vector<8x1xf32>
    %84 = vector.broadcast %83 : vector<8x1xf32> to vector<8x32xf32>
    %85 = arith.subf %79, %84 : vector<8x32xf32>
    %86 = arith.mulf %85, %85 : vector<8x32xf32>
    %cst_35 = arith.constant dense<0.000000e+00> : vector<8xf32>
    %87 = vector.multi_reduction <add>, %86, %cst_35 [1] : vector<8x32xf32> to vector<8xf32>
    %88 = vector.shape_cast %87 : vector<8xf32> to vector<8x1xf32>
    %cst_36 = arith.constant 3.200000e+01 : f32
    %89 = vector.broadcast %cst_36 : f32 to vector<8x1xf32>
    %90 = arith.divf %88, %89 : vector<8x1xf32>
    %cst_37 = arith.constant 9.99999974E-6 : f32
    %91 = vector.broadcast %cst_37 : f32 to vector<8x1xf32>
    %92 = arith.addf %90, %91 : vector<8x1xf32>
    %93 = math.rsqrt %92 : vector<8x1xf32>
    %94 = vector.broadcast %93 : vector<8x1xf32> to vector<8x32xf32>
    %95 = arith.mulf %85, %94 : vector<8x32xf32>
    %96 = vector.broadcast %4 : vector<1x32xf32> to vector<8x32xf32>
    %97 = arith.mulf %95, %96 : vector<8x32xf32>
    %98 = vector.broadcast %5 : vector<1x32xf32> to vector<8x32xf32>
    %99 = arith.addf %97, %98 : vector<8x32xf32>
    %100 = vector.extract_strided_slice %6 {offsets = [0, 0], sizes = [32, 32], strides = [1, 1]} : vector<32x96xf32> to vector<32x32xf32>
    %cst_38 = arith.constant dense<0.000000e+00> : vector<8x32xf32>
    %101 = tpu.matmul %99, %100, %cst_38 {dimension_numbers = #tpu.dot_dimension_numbers<[1], [0], [0], [1], [0, 0, 1, 1], [], []>} : vector<8x32xf32>, vector<32x32xf32>, vector<8x32xf32> -> vector<8x32xf32>
    %102 = vector.extract_strided_slice %6 {offsets = [0, 32], sizes = [32, 64], strides = [1, 1]} : vector<32x96xf32> to vector<32x64xf32>
    %cst_39 = arith.constant dense<0.000000e+00> : vector<8x64xf32>
    %103 = tpu.matmul %3, %102, %cst_39 {dimension_numbers = #tpu.dot_dimension_numbers<[1], [0], [0], [1], [0, 0, 1, 1], [], []>} : vector<8x32xf32>, vector<32x64xf32>, vector<8x64xf32> -> vector<8x64xf32>
    %104 = vector.extract_strided_slice %103 {offsets = [0, 0], sizes = [8, 32], strides = [1, 1]} : vector<8x64xf32> to vector<8x32xf32>
    %105 = vector.extract_strided_slice %103 {offsets = [0, 32], sizes = [8, 32], strides = [1, 1]} : vector<8x64xf32> to vector<8x32xf32>
    %cst_40 = arith.constant 0.353553385 : f32
    %106 = vector.broadcast %cst_40 : f32 to vector<8x32xf32>
    %107 = arith.mulf %101, %106 : vector<8x32xf32>
    %108 = vector.extract_strided_slice %107 {offsets = [0, 0], sizes = [8, 8], strides = [1, 1]} : vector<8x32xf32> to vector<8x8xf32>
    %109 = vector.extract_strided_slice %104 {offsets = [0, 0], sizes = [8, 8], strides = [1, 1]} : vector<8x32xf32> to vector<8x8xf32>
    %110 = vector.extract_strided_slice %105 {offsets = [0, 0], sizes = [8, 8], strides = [1, 1]} : vector<8x32xf32> to vector<8x8xf32>
    %cst_41 = arith.constant dense<0.000000e+00> : vector<8x8xf32>
    %111 = tpu.matmul %108, %109, %cst_41 {dimension_numbers = #tpu.dot_dimension_numbers<[1], [1], [0], [0], [0, 0, 1, 0], [], []>} : vector<8x8xf32>, vector<8x8xf32>, vector<8x8xf32> -> vector<8x8xf32>
    %cst_42 = arith.constant dense<0xFF800000> : vector<8xf32>
    %112 = vector.multi_reduction <maximumf>, %111, %cst_42 [1] : vector<8x8xf32> to vector<8xf32>
    %113 = vector.shape_cast %112 : vector<8xf32> to vector<8x1xf32>
    %114 = vector.broadcast %113 : vector<8x1xf32> to vector<8x8xf32>
    %115 = arith.subf %111, %114 : vector<8x8xf32>
    %116 = math.exp %115 : vector<8x8xf32>
    %cst_43 = arith.constant dense<0.000000e+00> : vector<8xf32>
    %117 = vector.multi_reduction <add>, %116, %cst_43 [1] : vector<8x8xf32> to vector<8xf32>
    %118 = vector.shape_cast %117 : vector<8xf32> to vector<8x1xf32>
    %119 = tpu.reciprocal %118 {approx = true} : vector<8x1xf32> -> vector<8x1xf32>
    %120 = vector.broadcast %119 : vector<8x1xf32> to vector<8x8xf32>
    %121 = arith.mulf %116, %120 : vector<8x8xf32>
    %cst_44 = arith.constant dense<0.000000e+00> : vector<8x8xf32>
    %122 = tpu.matmul %121, %110, %cst_44 {dimension_numbers = #tpu.dot_dimension_numbers<[1], [0], [0], [1], [0, 0, 1, 1], [], []>} : vector<8x8xf32>, vector<8x8xf32>, vector<8x8xf32> -> vector<8x8xf32>
    %123 = vector.extract_strided_slice %107 {offsets = [0, 8], sizes = [8, 8], strides = [1, 1]} : vector<8x32xf32> to vector<8x8xf32>
    %124 = vector.extract_strided_slice %104 {offsets = [0, 8], sizes = [8, 8], strides = [1, 1]} : vector<8x32xf32> to vector<8x8xf32>
    %125 = vector.extract_strided_slice %105 {offsets = [0, 8], sizes = [8, 8], strides = [1, 1]} : vector<8x32xf32> to vector<8x8xf32>
    %cst_45 = arith.constant dense<0.000000e+00> : vector<8x8xf32>
    %126 = tpu.matmul %123, %124, %cst_45 {dimension_numbers = #tpu.dot_dimension_numbers<[1], [1], [0], [0], [0, 0, 1, 0], [], []>} : vector<8x8xf32>, vector<8x8xf32>, vector<8x8xf32> -> vector<8x8xf32>
    %cst_46 = arith.constant dense<0xFF800000> : vector<8xf32>
    %127 = vector.multi_reduction <maximumf>, %126, %cst_46 [1] : vector<8x8xf32> to vector<8xf32>
    %128 = vector.shape_cast %127 : vector<8xf32> to vector<8x1xf32>
    %129 = vector.broadcast %128 : vector<8x1xf32> to vector<8x8xf32>
    %130 = arith.subf %126, %129 : vector<8x8xf32>
    %131 = math.exp %130 : vector<8x8xf32>
    %cst_47 = arith.constant dense<0.000000e+00> : vector<8xf32>
    %132 = vector.multi_reduction <add>, %131, %cst_47 [1] : vector<8x8xf32> to vector<8xf32>
    %133 = vector.shape_cast %132 : vector<8xf32> to vector<8x1xf32>
    %134 = tpu.reciprocal %133 {approx = true} : vector<8x1xf32> -> vector<8x1xf32>
    %135 = vector.broadcast %134 : vector<8x1xf32> to vector<8x8xf32>
    %136 = arith.mulf %131, %135 : vector<8x8xf32>
    %cst_48 = arith.constant dense<0.000000e+00> : vector<8x8xf32>
    %137 = tpu.matmul %136, %125, %cst_48 {dimension_numbers = #tpu.dot_dimension_numbers<[1], [0], [0], [1], [0, 0, 1, 1], [], []>} : vector<8x8xf32>, vector<8x8xf32>, vector<8x8xf32> -> vector<8x8xf32>
    %138 = vector.extract_strided_slice %107 {offsets = [0, 16], sizes = [8, 8], strides = [1, 1]} : vector<8x32xf32> to vector<8x8xf32>
    %139 = vector.extract_strided_slice %104 {offsets = [0, 16], sizes = [8, 8], strides = [1, 1]} : vector<8x32xf32> to vector<8x8xf32>
    %140 = vector.extract_strided_slice %105 {offsets = [0, 16], sizes = [8, 8], strides = [1, 1]} : vector<8x32xf32> to vector<8x8xf32>
    %cst_49 = arith.constant dense<0.000000e+00> : vector<8x8xf32>
    %141 = tpu.matmul %138, %139, %cst_49 {dimension_numbers = #tpu.dot_dimension_numbers<[1], [1], [0], [0], [0, 0, 1, 0], [], []>} : vector<8x8xf32>, vector<8x8xf32>, vector<8x8xf32> -> vector<8x8xf32>
    %cst_50 = arith.constant dense<0xFF800000> : vector<8xf32>
    %142 = vector.multi_reduction <maximumf>, %141, %cst_50 [1] : vector<8x8xf32> to vector<8xf32>
    %143 = vector.shape_cast %142 : vector<8xf32> to vector<8x1xf32>
    %144 = vector.broadcast %143 : vector<8x1xf32> to vector<8x8xf32>
    %145 = arith.subf %141, %144 : vector<8x8xf32>
    %146 = math.exp %145 : vector<8x8xf32>
    %cst_51 = arith.constant dense<0.000000e+00> : vector<8xf32>
    %147 = vector.multi_reduction <add>, %146, %cst_51 [1] : vector<8x8xf32> to vector<8xf32>
    %148 = vector.shape_cast %147 : vector<8xf32> to vector<8x1xf32>
    %149 = tpu.reciprocal %148 {approx = true} : vector<8x1xf32> -> vector<8x1xf32>
    %150 = vector.broadcast %149 : vector<8x1xf32> to vector<8x8xf32>
    %151 = arith.mulf %146, %150 : vector<8x8xf32>
    %cst_52 = arith.constant dense<0.000000e+00> : vector<8x8xf32>
    %152 = tpu.matmul %151, %140, %cst_52 {dimension_numbers = #tpu.dot_dimension_numbers<[1], [0], [0], [1], [0, 0, 1, 1], [], []>} : vector<8x8xf32>, vector<8x8xf32>, vector<8x8xf32> -> vector<8x8xf32>
    %153 = vector.extract_strided_slice %107 {offsets = [0, 24], sizes = [8, 8], strides = [1, 1]} : vector<8x32xf32> to vector<8x8xf32>
    %154 = vector.extract_strided_slice %104 {offsets = [0, 24], sizes = [8, 8], strides = [1, 1]} : vector<8x32xf32> to vector<8x8xf32>
    %155 = vector.extract_strided_slice %105 {offsets = [0, 24], sizes = [8, 8], strides = [1, 1]} : vector<8x32xf32> to vector<8x8xf32>
    %cst_53 = arith.constant dense<0.000000e+00> : vector<8x8xf32>
    %156 = tpu.matmul %153, %154, %cst_53 {dimension_numbers = #tpu.dot_dimension_numbers<[1], [1], [0], [0], [0, 0, 1, 0], [], []>} : vector<8x8xf32>, vector<8x8xf32>, vector<8x8xf32> -> vector<8x8xf32>
    %cst_54 = arith.constant dense<0xFF800000> : vector<8xf32>
    %157 = vector.multi_reduction <maximumf>, %156, %cst_54 [1] : vector<8x8xf32> to vector<8xf32>
    %158 = vector.shape_cast %157 : vector<8xf32> to vector<8x1xf32>
    %159 = vector.broadcast %158 : vector<8x1xf32> to vector<8x8xf32>
    %160 = arith.subf %156, %159 : vector<8x8xf32>
    %161 = math.exp %160 : vector<8x8xf32>
    %cst_55 = arith.constant dense<0.000000e+00> : vector<8xf32>
    %162 = vector.multi_reduction <add>, %161, %cst_55 [1] : vector<8x8xf32> to vector<8xf32>
    %163 = vector.shape_cast %162 : vector<8xf32> to vector<8x1xf32>
    %164 = tpu.reciprocal %163 {approx = true} : vector<8x1xf32> -> vector<8x1xf32>
    %165 = vector.broadcast %164 : vector<8x1xf32> to vector<8x8xf32>
    %166 = arith.mulf %161, %165 : vector<8x8xf32>
    %cst_56 = arith.constant dense<0.000000e+00> : vector<8x8xf32>
    %167 = tpu.matmul %166, %155, %cst_56 {dimension_numbers = #tpu.dot_dimension_numbers<[1], [0], [0], [1], [0, 0, 1, 1], [], []>} : vector<8x8xf32>, vector<8x8xf32>, vector<8x8xf32> -> vector<8x8xf32>
    %168 = tpu.concatenate %122, %137, %152, %167 in 1 : vector<8x8xf32>, vector<8x8xf32>, vector<8x8xf32>, vector<8x8xf32> -> vector<8x32xf32>
    %cst_57 = arith.constant dense<0.000000e+00> : vector<8x32xf32>
    %169 = tpu.matmul %168, %7, %cst_57 {dimension_numbers = #tpu.dot_dimension_numbers<[1], [0], [0], [1], [0, 0, 1, 1], [], []>} : vector<8x32xf32>, vector<32x32xf32>, vector<8x32xf32> -> vector<8x32xf32>
    %170 = vector.broadcast %8 : vector<1x32xf32> to vector<8x32xf32>
    %171 = arith.addf %169, %170 : vector<8x32xf32>
    %cst_58 = arith.constant 0.000000e+00 : f32
    %172 = vector.broadcast %cst_58 : f32 to vector<8x32xf32>
    %173 = arith.maximumf %171, %172 : vector<8x32xf32>
    %174 = arith.addf %173, %99 : vector<8x32xf32>
    %cst_59 = arith.constant dense<0.000000e+00> : vector<8xf32>
    %175 = vector.multi_reduction <add>, %174, %cst_59 [1] : vector<8x32xf32> to vector<8xf32>
    %176 = vector.shape_cast %175 : vector<8xf32> to vector<8x1xf32>
    %cst_60 = arith.constant 3.200000e+01 : f32
    %177 = vector.broadcast %cst_60 : f32 to vector<8x1xf32>
    %178 = arith.divf %176, %177 : vector<8x1xf32>
    %179 = vector.broadcast %178 : vector<8x1xf32> to vector<8x32xf32>
    %180 = arith.subf %174, %179 : vector<8x32xf32>
    %181 = arith.mulf %180, %180 : vector<8x32xf32>
    %cst_61 = arith.constant dense<0.000000e+00> : vector<8xf32>
    %182 = vector.multi_reduction <add>, %181, %cst_61 [1] : vector<8x32xf32> to vector<8xf32>
    %183 = vector.shape_cast %182 : vector<8xf32> to vector<8x1xf32>
    %cst_62 = arith.constant 3.200000e+01 : f32
    %184 = vector.broadcast %cst_62 : f32 to vector<8x1xf32>
    %185 = arith.divf %183, %184 : vector<8x1xf32>
    %cst_63 = arith.constant 9.99999974E-6 : f32
    %186 = vector.broadcast %cst_63 : f32 to vector<8x1xf32>
    %187 = arith.addf %185, %186 : vector<8x1xf32>
    %188 = math.rsqrt %187 : vector<8x1xf32>
    %189 = vector.broadcast %188 : vector<8x1xf32> to vector<8x32xf32>
    %190 = arith.mulf %180, %189 : vector<8x32xf32>
    %191 = vector.broadcast %4 : vector<1x32xf32> to vector<8x32xf32>
    %192 = arith.mulf %190, %191 : vector<8x32xf32>
    %193 = vector.broadcast %5 : vector<1x32xf32> to vector<8x32xf32>
    %194 = arith.addf %192, %193 : vector<8x32xf32>
    %c0_64 = arith.constant 0 : index
    %c0_65 = arith.constant 0 : index
    %195 = vector.load %arg8[%c0_64, %c0_65] : memref<32x64xf32, #tpu.memory_space<vmem>>, vector<32x64xf32>
    %cst_66 = arith.constant dense<0.000000e+00> : vector<8x64xf32>
    %196 = tpu.matmul %194, %195, %cst_66 {dimension_numbers = #tpu.dot_dimension_numbers<[1], [0], [0], [1], [0, 0, 1, 1], [], []>} : vector<8x32xf32>, vector<32x64xf32>, vector<8x64xf32> -> vector<8x64xf32>
    %c0_67 = arith.constant 0 : index
    %c0_68 = arith.constant 0 : index
    %197 = vector.load %arg9[%c0_67, %c0_68] : memref<1x64xf32, #tpu.memory_space<vmem>>, vector<1x64xf32>
    %198 = vector.broadcast %197 : vector<1x64xf32> to vector<8x64xf32>
    %199 = arith.addf %196, %198 : vector<8x64xf32>
    %cst_69 = arith.constant 0.000000e+00 : f32
    %200 = vector.broadcast %cst_69 : f32 to vector<8x64xf32>
    %201 = arith.maximumf %199, %200 : vector<8x64xf32>
    %c0_70 = arith.constant 0 : index
    %c0_71 = arith.constant 0 : index
    %202 = vector.load %arg10[%c0_70, %c0_71] : memref<64x32xf32, #tpu.memory_space<vmem>>, vector<64x32xf32>
    %cst_72 = arith.constant dense<0.000000e+00> : vector<8x32xf32>
    %203 = tpu.matmul %201, %202, %cst_72 {dimension_numbers = #tpu.dot_dimension_numbers<[1], [0], [0], [1], [0, 0, 1, 1], [], []>} : vector<8x64xf32>, vector<64x32xf32>, vector<8x32xf32> -> vector<8x32xf32>
    %c0_73 = arith.constant 0 : index
    %c0_74 = arith.constant 0 : index
    %204 = vector.load %arg11[%c0_73, %c0_74] : memref<1x32xf32, #tpu.memory_space<vmem>>, vector<1x32xf32>
    %205 = vector.broadcast %204 : vector<1x32xf32> to vector<8x32xf32>
    %206 = arith.addf %203, %205 : vector<8x32xf32>
    %207 = arith.addf %206, %194 : vector<8x32xf32>
    %cst_75 = arith.constant dense<0.000000e+00> : vector<8xf32>
    %208 = vector.multi_reduction <add>, %207, %cst_75 [1] : vector<8x32xf32> to vector<8xf32>
    %209 = vector.shape_cast %208 : vector<8xf32> to vector<8x1xf32>
    %cst_76 = arith.constant 3.200000e+01 : f32
    %210 = vector.broadcast %cst_76 : f32 to vector<8x1xf32>
    %211 = arith.divf %209, %210 : vector<8x1xf32>
    %212 = vector.broadcast %211 : vector<8x1xf32> to vector<8x32xf32>
    %213 = arith.subf %207, %212 : vector<8x32xf32>
    %214 = arith.mulf %213, %213 : vector<8x32xf32>
    %cst_77 = arith.constant dense<0.000000e+00> : vector<8xf32>
    %215 = vector.multi_reduction <add>, %214, %cst_77 [1] : vector<8x32xf32> to vector<8xf32>
    %216 = vector.shape_cast %215 : vector<8xf32> to vector<8x1xf32>
    %cst_78 = arith.constant 3.200000e+01 : f32
    %217 = vector.broadcast %cst_78 : f32 to vector<8x1xf32>
    %218 = arith.divf %216, %217 : vector<8x1xf32>
    %cst_79 = arith.constant 9.99999974E-6 : f32
    %219 = vector.broadcast %cst_79 : f32 to vector<8x1xf32>
    %220 = arith.addf %218, %219 : vector<8x1xf32>
    %221 = math.rsqrt %220 : vector<8x1xf32>
    %222 = vector.broadcast %221 : vector<8x1xf32> to vector<8x32xf32>
    %223 = arith.mulf %213, %222 : vector<8x32xf32>
    %224 = vector.broadcast %4 : vector<1x32xf32> to vector<8x32xf32>
    %225 = arith.mulf %223, %224 : vector<8x32xf32>
    %226 = vector.broadcast %5 : vector<1x32xf32> to vector<8x32xf32>
    %227 = arith.addf %225, %226 : vector<8x32xf32>
    %c0_80 = arith.constant 0 : index
    %c0_81 = arith.constant 0 : index
    %c0_82 = arith.constant 0 : index
    %228 = vector.load %arg12[%c0_80, %c0_81, %c0_82] : memref<1x8x32xf32, #tpu.memory_space<vmem>>, vector<1x8x32xf32>
    %229 = vector.shape_cast %228 : vector<1x8x32xf32> to vector<8x32xf32>
    %230 = vector.shape_cast %227 : vector<8x32xf32> to vector<1x8x32xf32>
    tpu.vector_store %arg12[%c0_80, %c0_81, %c0_82], %230 {strides = array<i32>} : memref<1x8x32xf32, #tpu.memory_space<vmem>>, vector<1x8x32xf32>,
    return
  }
  func.func @transform_0(%arg0: i32) -> (i32, i32, i32) {
    %c0_i32 = arith.constant 0 : i32
    %c0_i32_0 = arith.constant 0 : i32
    %c0_i32_1 = arith.constant 0 : i32
    return %arg0, %c0_i32, %c0_i32_0 : i32, i32, i32
  }
  func.func @transform_1(%arg0: i32) -> (i32, i32, i32) {
    %c0_i32 = arith.constant 0 : i32
    %c0_i32_0 = arith.constant 0 : i32
    %c0_i32_1 = arith.constant 0 : i32
    return %arg0, %c0_i32, %c0_i32_0 : i32, i32, i32
  }
  func.func @transform_2(%arg0: i32) -> (i32, i32) {
    %c0_i32 = arith.constant 0 : i32
    %c0_i32_0 = arith.constant 0 : i32
    %c0_i32_1 = arith.constant 0 : i32
    return %c0_i32, %c0_i32_0 : i32, i32
  }
  func.func @transform_3(%arg0: i32) -> (i32, i32) {
    %c0_i32 = arith.constant 0 : i32
    %c0_i32_0 = arith.constant 0 : i32
    %c0_i32_1 = arith.constant 0 : i32
    return %c0_i32, %c0_i32_0 : i32, i32
  }
  func.func @transform_4(%arg0: i32) -> (i32, i32) {
    %c0_i32 = arith.constant 0 : i32
    %c0_i32_0 = arith.constant 0 : i32
    %c0_i32_1 = arith.constant 0 : i32
    return %c0_i32, %c0_i32_0 : i32, i32
  }
  func.func @transform_5(%arg0: i32) -> (i32, i32) {
    %c0_i32 = arith.constant 0 : i32
    %c0_i32_0 = arith.constant 0 : i32
    %c0_i32_1 = arith.constant 0 : i32
    return %c0_i32, %c0_i32_0 : i32, i32
  }
  func.func @transform_6(%arg0: i32) -> (i32, i32) {
    %c0_i32 = arith.constant 0 : i32
    %c0_i32_0 = arith.constant 0 : i32
    %c0_i32_1 = arith.constant 0 : i32
    return %c0_i32, %c0_i32_0 : i32, i32
  }
  func.func @transform_7(%arg0: i32) -> (i32, i32) {
    %c0_i32 = arith.constant 0 : i32
    %c0_i32_0 = arith.constant 0 : i32
    %c0_i32_1 = arith.constant 0 : i32
    return %c0_i32, %c0_i32_0 : i32, i32
  }
  func.func @transform_8(%arg0: i32) -> (i32, i32) {
    %c0_i32 = arith.constant 0 : i32
    %c0_i32_0 = arith.constant 0 : i32
    %c0_i32_1 = arith.constant 0 : i32
    return %c0_i32, %c0_i32_0 : i32, i32
  }
  func.func @transform_9(%arg0: i32) -> (i32, i32) {
    %c0_i32 = arith.constant 0 : i32
    %c0_i32_0 = arith.constant 0 : i32
    %c0_i32_1 = arith.constant 0 : i32
    return %c0_i32, %c0_i32_0 : i32, i32
  }
  func.func @transform_10(%arg0: i32) -> (i32, i32) {
    %c0_i32 = arith.constant 0 : i32
    %c0_i32_0 = arith.constant 0 : i32
    %c0_i32_1 = arith.constant 0 : i32
    return %c0_i32, %c0_i32_0 : i32, i32
  }
  func.func @transform_11(%arg0: i32) -> (i32, i32, i32) {
    %c0_i32 = arith.constant 0 : i32
    %c0_i32_0 = arith.constant 0 : i32
    %c0_i32_1 = arith.constant 0 : i32
    return %arg0, %c0_i32, %c0_i32_0 : i32, i32, i32
  }
}

module attributes {stable_mosaic.version = 11 : i64} {
  func.func @_decoder_block_kernel(%arg0: i32, %arg1: memref<1x8x32xf32, #tpu.memory_space<vmem>>, %arg2: memref<1x8x32xf32, #tpu.memory_space<vmem>>, %arg3: memref<32x96xf32, #tpu.memory_space<vmem>>, %arg4: memref<32x32xf32, #tpu.memory_space<vmem>>, %arg5: memref<1x32xf32, #tpu.memory_space<vmem>>, %arg6: memref<1x32xf32, #tpu.memory_space<vmem>>, %arg7: memref<1x32xf32, #tpu.memory_space<vmem>>, %arg8: memref<32x64xf32, #tpu.memory_space<vmem>>, %arg9: memref<1x64xf32, #tpu.memory_space<vmem>>, %arg10: memref<64x32xf32, #tpu.memory_space<vmem>>, %arg11: memref<1x32xf32, #tpu.memory_space<vmem>>, %arg12: memref<1x8x32xf32, #tpu.memory_space<vmem>>) attributes {dimension_semantics = [#tpu.dimension_semantics<parallel>], iteration_bounds = array<i64: 2>, scalar_prefetch = 0 : i64, scratch_operands = 0 : i64, tpu.core_type = #tpu.core_type<tc>, window_params = [{transform_indices = @transform_0, window_bounds = array<i64: 1, 8, 32>}, {transform_indices = @transform_1, window_bounds = array<i64: 1, 8, 32>}, {pipeline_mode = #tpu.pipeline_mode<synchronous>, transform_indices = @transform_2, window_bounds = array<i64: 32, 96>}, {pipeline_mode = #tpu.pipeline_mode<synchronous>, transform_indices = @transform_3, window_bounds = array<i64: 32, 32>}, {pipeline_mode = #tpu.pipeline_mode<synchronous>, transform_indices = @transform_4, window_bounds = array<i64: 1, 32>}, {pipeline_mode = #tpu.pipeline_mode<synchronous>, transform_indices = @transform_5, window_bounds = array<i64: 1, 32>}, {pipeline_mode = #tpu.pipeline_mode<synchronous>, transform_indices = @transform_6, window_bounds = array<i64: 1, 32>}, {pipeline_mode = #tpu.pipeline_mode<synchronous>, transform_indices = @transform_7, window_bounds = array<i64: 32, 64>}, {pipeline_mode = #tpu.pipeline_mode<synchronous>, transform_indices = @transform_8, window_bounds = array<i64: 1, 64>}, {pipeline_mode = #tpu.pipeline_mode<synchronous>, transform_indices = @transform_9, window_bounds = array<i64: 64, 32>}, {pipeline_mode = #tpu.pipeline_mode<synchronous>, transform_indices = @transform_10, window_bounds = array<i64: 1, 32>}, {transform_indices = @transform_11, window_bounds = array<i64: 1, 8, 32>}]} {
    %c0 = arith.constant 0 : index
    %c0_0 = arith.constant 0 : index
    %c0_1 = arith.constant 0 : index
    %0 = vector.load %arg1[%c0, %c0_0, %c0_1] : memref<1x8x32xf32, #tpu.memory_space<vmem>>, vector<1x8x32xf32>
    %1 = vector.shape_cast %0 : vector<1x8x32xf32> to vector<8x32xf32>
    %c0_2 = arith.constant 0 : index
    %c0_3 = arith.constant 0 : index
    %c0_4 = arith.constant 0 : index
    %2 = vector.load %arg2[%c0_2, %c0_3, %c0_4] : memref<1x8x32xf32, #tpu.memory_space<vmem>>, vector<1x8x32xf32>
    %3 = vector.shape_cast %2 : vector<1x8x32xf32> to vector<8x32xf32>
    %c0_5 = arith.constant 0 : index
    %c0_6 = arith.constant 0 : index
    %4 = vector.load %arg6[%c0_5, %c0_6] : memref<1x32xf32, #tpu.memory_space<vmem>>, vector<1x32xf32>
    %c0_7 = arith.constant 0 : index
    %c0_8 = arith.constant 0 : index
    %5 = vector.load %arg7[%c0_7, %c0_8] : memref<1x32xf32, #tpu.memory_space<vmem>>, vector<1x32xf32>
    %c0_9 = arith.constant 0 : index
    %c0_10 = arith.constant 0 : index
    %6 = vector.load %arg3[%c0_9, %c0_10] : memref<32x96xf32, #tpu.memory_space<vmem>>, vector<32x96xf32>
    %c0_11 = arith.constant 0 : index
    %c0_12 = arith.constant 0 : index
    %7 = vector.load %arg4[%c0_11, %c0_12] : memref<32x32xf32, #tpu.memory_space<vmem>>, vector<32x32xf32>
    %c0_13 = arith.constant 0 : index
    %c0_14 = arith.constant 0 : index
    %8 = vector.load %arg5[%c0_13, %c0_14] : memref<1x32xf32, #tpu.memory_space<vmem>>, vector<1x32xf32>
    %cst = arith.constant dense<0.000000e+00> : vector<8x96xf32>
    %9 = tpu.matmul %1, %6, %cst {dimension_numbers = #tpu.dot_dimension_numbers<[1], [0], [0], [1], [0, 0, 1, 1], [], []>} : vector<8x32xf32>, vector<32x96xf32>, vector<8x96xf32> -> vector<8x96xf32>
    %10 = vector.extract_strided_slice %9 {offsets = [0, 0], sizes = [8, 32], strides = [1, 1]} : vector<8x96xf32> to vector<8x32xf32>
    %11 = vector.extract_strided_slice %9 {offsets = [0, 32], sizes = [8, 32], strides = [1, 1]} : vector<8x96xf32> to vector<8x32xf32>
    %12 = vector.extract_strided_slice %9 {offsets = [0, 64], sizes = [8, 32], strides = [1, 1]} : vector<8x96xf32> to vector<8x32xf32>
    %cst_15 = arith.constant 0.353553385 : f32
    %13 = vector.broadcast %cst_15 : f32 to vector<8x32xf32>
    %14 = arith.mulf %10, %13 : vector<8x32xf32>
    %15 = vector.extract_strided_slice %14 {offsets = [0, 0], sizes = [8, 8], strides = [1, 1]} : vector<8x32xf32> to vector<8x8xf32>
    %16 = vector.extract_strided_slice %11 {offsets = [0, 0], sizes = [8, 8], strides = [1, 1]} : vector<8x32xf32> to vector<8x8xf32>
    %17 = vector.extract_strided_slice %12 {offsets = [0, 0], sizes = [8, 8], strides = [1, 1]} : vector<8x32xf32> to vector<8x8xf32>
    %cst_16 = arith.constant dense<0.000000e+00> : vector<8x8xf32>
    %18 = tpu.matmul %15, %16, %cst_16 {dimension_numbers = #tpu.dot_dimension_numbers<[1], [1], [0], [0], [0, 0, 1, 0], [], []>} : vector<8x8xf32>, vector<8x8xf32>, vector<8x8xf32> -> vector<8x8xf32>
    %cst_17 = arith.constant dense<0xFF800000> : vector<8xf32>
    %19 = vector.multi_reduction <maximumf>, %18, %cst_17 [1] : vector<8x8xf32> to vector<8xf32>
    %20 = vector.shape_cast %19 : vector<8xf32> to vector<8x1xf32>
    %21 = vector.broadcast %20 : vector<8x1xf32> to vector<8x8xf32>
    %22 = arith.subf %18, %21 : vector<8x8xf32>
    %23 = math.exp %22 : vector<8x8xf32>
    %cst_18 = arith.constant dense<0.000000e+00> : vector<8xf32>
    %24 = vector.multi_reduction <add>, %23, %cst_18 [1] : vector<8x8xf32> to vector<8xf32>
    %25 = vector.shape_cast %24 : vector<8xf32> to vector<8x1xf32>
    %26 = tpu.reciprocal %25 {approx = true} : vector<8x1xf32> -> vector<8x1xf32>
    %27 = vector.broadcast %26 : vector<8x1xf32> to vector<8x8xf32>
    %28 = arith.mulf %23, %27 : vector<8x8xf32>
    %cst_19 = arith.constant dense<0.000000e+00> : vector<8x8xf32>
    %29 = tpu.matmul %28, %17, %cst_19 {dimension_numbers = #tpu.dot_dimension_numbers<[1], [0], [0], [1], [0, 0, 1, 1], [], []>} : vector<8x8xf32>, vector<8x8xf32>, vector<8x8xf32> -> vector<8x8xf32>
    %30 = vector.extract_strided_slice %14 {offsets = [0, 8], sizes = [8, 8], strides = [1, 1]} : vector<8x32xf32> to vector<8x8xf32>
    %31 = vector.extract_strided_slice %11 {offsets = [0, 8], sizes = [8, 8], strides = [1, 1]} : vector<8x32xf32> to vector<8x8xf32>
    %32 = vector.extract_strided_slice %12 {offsets = [0, 8], sizes = [8, 8], strides = [1, 1]} : vector<8x32xf32> to vector<8x8xf32>
    %cst_20 = arith.constant dense<0.000000e+00> : vector<8x8xf32>
    %33 = tpu.matmul %30, %31, %cst_20 {dimension_numbers = #tpu.dot_dimension_numbers<[1], [1], [0], [0], [0, 0, 1, 0], [], []>} : vector<8x8xf32>, vector<8x8xf32>, vector<8x8xf32> -> vector<8x8xf32>
    %cst_21 = arith.constant dense<0xFF800000> : vector<8xf32>
    %34 = vector.multi_reduction <maximumf>, %33, %cst_21 [1] : vector<8x8xf32> to vector<8xf32>
    %35 = vector.shape_cast %34 : vector<8xf32> to vector<8x1xf32>
    %36 = vector.broadcast %35 : vector<8x1xf32> to vector<8x8xf32>
    %37 = arith.subf %33, %36 : vector<8x8xf32>
    %38 = math.exp %37 : vector<8x8xf32>
    %cst_22 = arith.constant dense<0.000000e+00> : vector<8xf32>
    %39 = vector.multi_reduction <add>, %38, %cst_22 [1] : vector<8x8xf32> to vector<8xf32>
    %40 = vector.shape_cast %39 : vector<8xf32> to vector<8x1xf32>
    %41 = tpu.reciprocal %40 {approx = true} : vector<8x1xf32> -> vector<8x1xf32>
    %42 = vector.broadcast %41 : vector<8x1xf32> to vector<8x8xf32>
    %43 = arith.mulf %38, %42 : vector<8x8xf32>
    %cst_23 = arith.constant dense<0.000000e+00> : vector<8x8xf32>
    %44 = tpu.matmul %43, %32, %cst_23 {dimension_numbers = #tpu.dot_dimension_numbers<[1], [0], [0], [1], [0, 0, 1, 1], [], []>} : vector<8x8xf32>, vector<8x8xf32>, vector<8x8xf32> -> vector<8x8xf32>
    %45 = vector.extract_strided_slice %14 {offsets = [0, 16], sizes = [8, 8], strides = [1, 1]} : vector<8x32xf32> to vector<8x8xf32>
    %46 = vector.extract_strided_slice %11 {offsets = [0, 16], sizes = [8, 8], strides = [1, 1]} : vector<8x32xf32> to vector<8x8xf32>
    %47 = vector.extract_strided_slice %12 {offsets = [0, 16], sizes = [8, 8], strides = [1, 1]} : vector<8x32xf32> to vector<8x8xf32>
    %cst_24 = arith.constant dense<0.000000e+00> : vector<8x8xf32>
    %48 = tpu.matmul %45, %46, %cst_24 {dimension_numbers = #tpu.dot_dimension_numbers<[1], [1], [0], [0], [0, 0, 1, 0], [], []>} : vector<8x8xf32>, vector<8x8xf32>, vector<8x8xf32> -> vector<8x8xf32>
    %cst_25 = arith.constant dense<0xFF800000> : vector<8xf32>
    %49 = vector.multi_reduction <maximumf>, %48, %cst_25 [1] : vector<8x8xf32> to vector<8xf32>
    %50 = vector.shape_cast %49 : vector<8xf32> to vector<8x1xf32>
    %51 = vector.broadcast %50 : vector<8x1xf32> to vector<8x8xf32>
    %52 = arith.subf %48, %51 : vector<8x8xf32>
    %53 = math.exp %52 : vector<8x8xf32>
    %cst_26 = arith.constant dense<0.000000e+00> : vector<8xf32>
    %54 = vector.multi_reduction <add>, %53, %cst_26 [1] : vector<8x8xf32> to vector<8xf32>
    %55 = vector.shape_cast %54 : vector<8xf32> to vector<8x1xf32>
    %56 = tpu.reciprocal %55 {approx = true} : vector<8x1xf32> -> vector<8x1xf32>
    %57 = vector.broadcast %56 : vector<8x1xf32> to vector<8x8xf32>
    %58 = arith.mulf %53, %57 : vector<8x8xf32>
    %cst_27 = arith.constant dense<0.000000e+00> : vector<8x8xf32>
    %59 = tpu.matmul %58, %47, %cst_27 {dimension_numbers = #tpu.dot_dimension_numbers<[1], [0], [0], [1], [0, 0, 1, 1], [], []>} : vector<8x8xf32>, vector<8x8xf32>, vector<8x8xf32> -> vector<8x8xf32>
    %60 = vector.extract_strided_slice %14 {offsets = [0, 24], sizes = [8, 8], strides = [1, 1]} : vector<8x32xf32> to vector<8x8xf32>
    %61 = vector.extract_strided_slice %11 {offsets = [0, 24], sizes = [8, 8], strides = [1, 1]} : vector<8x32xf32> to vector<8x8xf32>
    %62 = vector.extract_strided_slice %12 {offsets = [0, 24], sizes = [8, 8], strides = [1, 1]} : vector<8x32xf32> to vector<8x8xf32>
    %cst_28 = arith.constant dense<0.000000e+00> : vector<8x8xf32>
    %63 = tpu.matmul %60, %61, %cst_28 {dimension_numbers = #tpu.dot_dimension_numbers<[1], [1], [0], [0], [0, 0, 1, 0], [], []>} : vector<8x8xf32>, vector<8x8xf32>, vector<8x8xf32> -> vector<8x8xf32>
    %cst_29 = arith.constant dense<0xFF800000> : vector<8xf32>
    %64 = vector.multi_reduction <maximumf>, %63, %cst_29 [1] : vector<8x8xf32> to vector<8xf32>
    %65 = vector.shape_cast %64 : vector<8xf32> to vector<8x1xf32>
    %66 = vector.broadcast %65 : vector<8x1xf32> to vector<8x8xf32>
    %67 = arith.subf %63, %66 : vector<8x8xf32>
    %68 = math.exp %67 : vector<8x8xf32>
    %cst_30 = arith.constant dense<0.000000e+00> : vector<8xf32>
    %69 = vector.multi_reduction <add>, %68, %cst_30 [1] : vector<8x8xf32> to vector<8xf32>
    %70 = vector.shape_cast %69 : vector<8xf32> to vector<8x1xf32>
    %71 = tpu.reciprocal %70 {approx = true} : vector<8x1xf32> -> vector<8x1xf32>
    %72 = vector.broadcast %71 : vector<8x1xf32> to vector<8x8xf32>
    %73 = arith.mulf %68, %72 : vector<8x8xf32>
    %cst_31 = arith.constant dense<0.000000e+00> : vector<8x8xf32>
    %74 = tpu.matmul %73, %62, %cst_31 {dimension_numbers = #tpu.dot_dimension_numbers<[1], [0], [0], [1], [0, 0, 1, 1], [], []>} : vector<8x8xf32>, vector<8x8xf32>, vector<8x8xf32> -> vector<8x8xf32>
    %75 = tpu.concatenate %29, %44, %59, %74 in 1 : vector<8x8xf32>, vector<8x8xf32>, vector<8x8xf32>, vector<8x8xf32> -> vector<8x32xf32>
    %cst_32 = arith.constant dense<0.000000e+00> : vector<8x32xf32>
    %76 = tpu.matmul %75, %7, %cst_32 {dimension_numbers = #tpu.dot_dimension_numbers<[1], [0], [0], [1], [0, 0, 1, 1], [], []>} : vector<8x32xf32>, vector<32x32xf32>, vector<8x32xf32> -> vector<8x32xf32>
    %77 = vector.broadcast %8 : vector<1x32xf32> to vector<8x32xf32>
    %78 = arith.addf %76, %77 : vector<8x32xf32>
    %79 = arith.addf %78, %1 : vector<8x32xf32>
    %cst_33 = arith.constant dense<0.000000e+00> : vector<8xf32>
    %80 = vector.multi_reduction <add>, %79, %cst_33 [1] : vector<8x32xf32> to vector<8xf32>
    %81 = vector.shape_cast %80 : vector<8xf32> to vector<8x1xf32>
    %cst_34 = arith.constant 3.200000e+01 : f32
    %82 = vector.broadcast %cst_34 : f32 to vector<8x1xf32>
    %83 = arith.divf %81, %82 : vector<8x1xf32>
    %84 = vector.broadcast %83 : vector<8x1xf32> to vector<8x32xf32>
    %85 = arith.subf %79, %84 : vector<8x32xf32>
    %86 = arith.mulf %85, %85 : vector<8x32xf32>
    %cst_35 = arith.constant dense<0.000000e+00> : vector<8xf32>
    %87 = vector.multi_reduction <add>, %86, %cst_35 [1] : vector<8x32xf32> to vector<8xf32>
    %88 = vector.shape_cast %87 : vector<8xf32> to vector<8x1xf32>
    %cst_36 = arith.constant 3.200000e+01 : f32
    %89 = vector.broadcast %cst_36 : f32 to vector<8x1xf32>
    %90 = arith.divf %88, %89 : vector<8x1xf32>
    %cst_37 = arith.constant 9.99999974E-6 : f32
    %91 = vector.broadcast %cst_37 : f32 to vector<8x1xf32>
    %92 = arith.addf %90, %91 : vector<8x1xf32>
    %93 = math.rsqrt %92 : vector<8x1xf32>
    %94 = vector.broadcast %93 : vector<8x1xf32> to vector<8x32xf32>
    %95 = arith.mulf %85, %94 : vector<8x32xf32>
    %96 = vector.broadcast %4 : vector<1x32xf32> to vector<8x32xf32>
    %97 = arith.mulf %95, %96 : vector<8x32xf32>
    %98 = vector.broadcast %5 : vector<1x32xf32> to vector<8x32xf32>
    %99 = arith.addf %97, %98 : vector<8x32xf32>
    %100 = vector.extract_strided_slice %6 {offsets = [0, 0], sizes = [32, 32], strides = [1, 1]} : vector<32x96xf32> to vector<32x32xf32>
    %cst_38 = arith.constant dense<0.000000e+00> : vector<8x32xf32>
    %101 = tpu.matmul %99, %100, %cst_38 {dimension_numbers = #tpu.dot_dimension_numbers<[1], [0], [0], [1], [0, 0, 1, 1], [], []>} : vector<8x32xf32>, vector<32x32xf32>, vector<8x32xf32> -> vector<8x32xf32>
    %102 = vector.extract_strided_slice %6 {offsets = [0, 32], sizes = [32, 64], strides = [1, 1]} : vector<32x96xf32> to vector<32x64xf32>
    %cst_39 = arith.constant dense<0.000000e+00> : vector<8x64xf32>
    %103 = tpu.matmul %3, %102, %cst_39 {dimension_numbers = #tpu.dot_dimension_numbers<[1], [0], [0], [1], [0, 0, 1, 1], [], []>} : vector<8x32xf32>, vector<32x64xf32>, vector<8x64xf32> -> vector<8x64xf32>
    %104 = vector.extract_strided_slice %103 {offsets = [0, 0], sizes = [8, 32], strides = [1, 1]} : vector<8x64xf32> to vector<8x32xf32>
    %105 = vector.extract_strided_slice %103 {offsets = [0, 32], sizes = [8, 32], strides = [1, 1]} : vector<8x64xf32> to vector<8x32xf32>
    %cst_40 = arith.constant 0.353553385 : f32
    %106 = vector.broadcast %cst_40 : f32 to vector<8x32xf32>
    %107 = arith.mulf %101, %106 : vector<8x32xf32>
    %108 = vector.extract_strided_slice %107 {offsets = [0, 0], sizes = [8, 8], strides = [1, 1]} : vector<8x32xf32> to vector<8x8xf32>
    %109 = vector.extract_strided_slice %104 {offsets = [0, 0], sizes = [8, 8], strides = [1, 1]} : vector<8x32xf32> to vector<8x8xf32>
    %110 = vector.extract_strided_slice %105 {offsets = [0, 0], sizes = [8, 8], strides = [1, 1]} : vector<8x32xf32> to vector<8x8xf32>
    %cst_41 = arith.constant dense<0.000000e+00> : vector<8x8xf32>
    %111 = tpu.matmul %108, %109, %cst_41 {dimension_numbers = #tpu.dot_dimension_numbers<[1], [1], [0], [0], [0, 0, 1, 0], [], []>} : vector<8x8xf32>, vector<8x8xf32>, vector<8x8xf32> -> vector<8x8xf32>
    %cst_42 = arith.constant dense<0xFF800000> : vector<8xf32>
    %112 = vector.multi_reduction <maximumf>, %111, %cst_42 [1] : vector<8x8xf32> to vector<8xf32>
    %113 = vector.shape_cast %112 : vector<8xf32> to vector<8x1xf32>
    %114 = vector.broadcast %113 : vector<8x1xf32> to vector<8x8xf32>
    %115 = arith.subf %111, %114 : vector<8x8xf32>
    %116 = math.exp %115 : vector<8x8xf32>
    %cst_43 = arith.constant dense<0.000000e+00> : vector<8xf32>
    %117 = vector.multi_reduction <add>, %116, %cst_43 [1] : vector<8x8xf32> to vector<8xf32>
    %118 = vector.shape_cast %117 : vector<8xf32> to vector<8x1xf32>
    %119 = tpu.reciprocal %118 {approx = true} : vector<8x1xf32> -> vector<8x1xf32>
    %120 = vector.broadcast %119 : vector<8x1xf32> to vector<8x8xf32>
    %121 = arith.mulf %116, %120 : vector<8x8xf32>
    %cst_44 = arith.constant dense<0.000000e+00> : vector<8x8xf32>
    %122 = tpu.matmul %121, %110, %cst_44 {dimension_numbers = #tpu.dot_dimension_numbers<[1], [0], [0], [1], [0, 0, 1, 1], [], []>} : vector<8x8xf32>, vector<8x8xf32>, vector<8x8xf32> -> vector<8x8xf32>
    %123 = vector.extract_strided_slice %107 {offsets = [0, 8], sizes = [8, 8], strides = [1, 1]} : vector<8x32xf32> to vector<8x8xf32>
    %124 = vector.extract_strided_slice %104 {offsets = [0, 8], sizes = [8, 8], strides = [1, 1]} : vector<8x32xf32> to vector<8x8xf32>
    %125 = vector.extract_strided_slice %105 {offsets = [0, 8], sizes = [8, 8], strides = [1, 1]} : vector<8x32xf32> to vector<8x8xf32>
    %cst_45 = arith.constant dense<0.000000e+00> : vector<8x8xf32>
    %126 = tpu.matmul %123, %124, %cst_45 {dimension_numbers = #tpu.dot_dimension_numbers<[1], [1], [0], [0], [0, 0, 1, 0], [], []>} : vector<8x8xf32>, vector<8x8xf32>, vector<8x8xf32> -> vector<8x8xf32>
    %cst_46 = arith.constant dense<0xFF800000> : vector<8xf32>
    %127 = vector.multi_reduction <maximumf>, %126, %cst_46 [1] : vector<8x8xf32> to vector<8xf32>
    %128 = vector.shape_cast %127 : vector<8xf32> to vector<8x1xf32>
    %129 = vector.broadcast %128 : vector<8x1xf32> to vector<8x8xf32>
    %130 = arith.subf %126, %129 : vector<8x8xf32>
    %131 = math.exp %130 : vector<8x8xf32>
    %cst_47 = arith.constant dense<0.000000e+00> : vector<8xf32>
    %132 = vector.multi_reduction <add>, %131, %cst_47 [1] : vector<8x8xf32> to vector<8xf32>
    %133 = vector.shape_cast %132 : vector<8xf32> to vector<8x1xf32>
    %134 = tpu.reciprocal %133 {approx = true} : vector<8x1xf32> -> vector<8x1xf32>
    %135 = vector.broadcast %134 : vector<8x1xf32> to vector<8x8xf32>
    %136 = arith.mulf %131, %135 : vector<8x8xf32>
    %cst_48 = arith.constant dense<0.000000e+00> : vector<8x8xf32>
    %137 = tpu.matmul %136, %125, %cst_48 {dimension_numbers = #tpu.dot_dimension_numbers<[1], [0], [0], [1], [0, 0, 1, 1], [], []>} : vector<8x8xf32>, vector<8x8xf32>, vector<8x8xf32> -> vector<8x8xf32>
    %138 = vector.extract_strided_slice %107 {offsets = [0, 16], sizes = [8, 8], strides = [1, 1]} : vector<8x32xf32> to vector<8x8xf32>
    %139 = vector.extract_strided_slice %104 {offsets = [0, 16], sizes = [8, 8], strides = [1, 1]} : vector<8x32xf32> to vector<8x8xf32>
    %140 = vector.extract_strided_slice %105 {offsets = [0, 16], sizes = [8, 8], strides = [1, 1]} : vector<8x32xf32> to vector<8x8xf32>
    %cst_49 = arith.constant dense<0.000000e+00> : vector<8x8xf32>
    %141 = tpu.matmul %138, %139, %cst_49 {dimension_numbers = #tpu.dot_dimension_numbers<[1], [1], [0], [0], [0, 0, 1, 0], [], []>} : vector<8x8xf32>, vector<8x8xf32>, vector<8x8xf32> -> vector<8x8xf32>
    %cst_50 = arith.constant dense<0xFF800000> : vector<8xf32>
    %142 = vector.multi_reduction <maximumf>, %141, %cst_50 [1] : vector<8x8xf32> to vector<8xf32>
    %143 = vector.shape_cast %142 : vector<8xf32> to vector<8x1xf32>
    %144 = vector.broadcast %143 : vector<8x1xf32> to vector<8x8xf32>
    %145 = arith.subf %141, %144 : vector<8x8xf32>
    %146 = math.exp %145 : vector<8x8xf32>
    %cst_51 = arith.constant dense<0.000000e+00> : vector<8xf32>
    %147 = vector.multi_reduction <add>, %146, %cst_51 [1] : vector<8x8xf32> to vector<8xf32>
    %148 = vector.shape_cast %147 : vector<8xf32> to vector<8x1xf32>
    %149 = tpu.reciprocal %148 {approx = true} : vector<8x1xf32> -> vector<8x1xf32>
    %150 = vector.broadcast %149 : vector<8x1xf32> to vector<8x8xf32>
    %151 = arith.mulf %146, %150 : vector<8x8xf32>
    %cst_52 = arith.constant dense<0.000000e+00> : vector<8x8xf32>
    %152 = tpu.matmul %151, %140, %cst_52 {dimension_numbers = #tpu.dot_dimension_numbers<[1], [0], [0], [1], [0, 0, 1, 1], [], []>} : vector<8x8xf32>, vector<8x8xf32>, vector<8x8xf32> -> vector<8x8xf32>
    %153 = vector.extract_strided_slice %107 {offsets = [0, 24], sizes = [8, 8], strides = [1, 1]} : vector<8x32xf32> to vector<8x8xf32>
    %154 = vector.extract_strided_slice %104 {offsets = [0, 24], sizes = [8, 8], strides = [1, 1]} : vector<8x32xf32> to vector<8x8xf32>
    %155 = vector.extract_strided_slice %105 {offsets = [0, 24], sizes = [8, 8], strides = [1, 1]} : vector<8x32xf32> to vector<8x8xf32>
    %cst_53 = arith.constant dense<0.000000e+00> : vector<8x8xf32>
    %156 = tpu.matmul %153, %154, %cst_53 {dimension_numbers = #tpu.dot_dimension_numbers<[1], [1], [0], [0], [0, 0, 1, 0], [], []>} : vector<8x8xf32>, vector<8x8xf32>, vector<8x8xf32> -> vector<8x8xf32>
    %cst_54 = arith.constant dense<0xFF800000> : vector<8xf32>
    %157 = vector.multi_reduction <maximumf>, %156, %cst_54 [1] : vector<8x8xf32> to vector<8xf32>
    %158 = vector.shape_cast %157 : vector<8xf32> to vector<8x1xf32>
    %159 = vector.broadcast %158 : vector<8x1xf32> to vector<8x8xf32>
    %160 = arith.subf %156, %159 : vector<8x8xf32>
    %161 = math.exp %160 : vector<8x8xf32>
    %cst_55 = arith.constant dense<0.000000e+00> : vector<8xf32>
    %162 = vector.multi_reduction <add>, %161, %cst_55 [1] : vector<8x8xf32> to vector<8xf32>
    %163 = vector.shape_cast %162 : vector<8xf32> to vector<8x1xf32>
    %164 = tpu.reciprocal %163 {approx = true} : vector<8x1xf32> -> vector<8x1xf32>
    %165 = vector.broadcast %164 : vector<8x1xf32> to vector<8x8xf32>
    %166 = arith.mulf %161, %165 : vector<8x8xf32>
    %cst_56 = arith.constant dense<0.000000e+00> : vector<8x8xf32>
    %167 = tpu.matmul %166, %155, %cst_56 {dimension_numbers = #tpu.dot_dimension_numbers<[1], [0], [0], [1], [0, 0, 1, 1], [], []>} : vector<8x8xf32>, vector<8x8xf32>, vector<8x8xf32> -> vector<8x8xf32>
    %168 = tpu.concatenate %122, %137, %152, %167 in 1 : vector<8x8xf32>, vector<8x8xf32>, vector<8x8xf32>, vector<8x8xf32> -> vector<8x32xf32>
    %cst_57 = arith.constant dense<0.000000e+00> : vector<8x32xf32>
    %169 = tpu.matmul %168, %7, %cst_57 {dimension_numbers = #tpu.dot_dimension_numbers<[1], [0], [0], [1], [0, 0, 1, 1], [], []>} : vector<8x32xf32>, vector<32x32xf32>, vector<8x32xf32> -> vector<8x32xf32>
    %170 = vector.broadcast %8 : vector<1x32xf32> to vector<8x32xf32>
    %171 = arith.addf %169, %170 : vector<8x32xf32>
    %cst_58 = arith.constant 0.000000e+00 : f32
    %172 = vector.broadcast %cst_58 : f32 to vector<8x32xf32>
    %173 = arith.maximumf %171, %172 : vector<8x32xf32>
    %174 = arith.addf %173, %99 : vector<8x32xf32>
    %cst_59 = arith.constant dense<0.000000e+00> : vector<8xf32>
    %175 = vector.multi_reduction <add>, %174, %cst_59 [1] : vector<8x32xf32> to vector<8xf32>
    %176 = vector.shape_cast %175 : vector<8xf32> to vector<8x1xf32>
    %cst_60 = arith.constant 3.200000e+01 : f32
    %177 = vector.broadcast %cst_60 : f32 to vector<8x1xf32>
    %178 = arith.divf %176, %177 : vector<8x1xf32>
    %179 = vector.broadcast %178 : vector<8x1xf32> to vector<8x32xf32>
    %180 = arith.subf %174, %179 : vector<8x32xf32>
    %181 = arith.mulf %180, %180 : vector<8x32xf32>
    %cst_61 = arith.constant dense<0.000000e+00> : vector<8xf32>
    %182 = vector.multi_reduction <add>, %181, %cst_61 [1] : vector<8x32xf32> to vector<8xf32>
    %183 = vector.shape_cast %182 : vector<8xf32> to vector<8x1xf32>
    %cst_62 = arith.constant 3.200000e+01 : f32
    %184 = vector.broadcast %cst_62 : f32 to vector<8x1xf32>
    %185 = arith.divf %183, %184 : vector<8x1xf32>
    %cst_63 = arith.constant 9.99999974E-6 : f32
    %186 = vector.broadcast %cst_63 : f32 to vector<8x1xf32>
    %187 = arith.addf %185, %186 : vector<8x1xf32>
    %188 = math.rsqrt %187 : vector<8x1xf32>
    %189 = vector.broadcast %188 : vector<8x1xf32> to vector<8x32xf32>
    %190 = arith.mulf %180, %189 : vector<8x32xf32>
    %191 = vector.broadcast %4 : vector<1x32xf32> to vector<8x32xf32>
    %192 = arith.mulf %190, %191 : vector<8x32xf32>
    %193 = vector.broadcast %5 : vector<1x32xf32> to vector<8x32xf32>
    %194 = arith.addf %192, %193 : vector<8x32xf32>
    %c0_64 = arith.constant 0 : index
    %c0_65 = arith.constant 0 : index
    %195 = vector.load %arg8[%c0_64, %c0_65] : memref<32x64xf32, #tpu.memory_space<vmem>>, vector<32x64xf32>
    %cst_66 = arith.constant dense<0.000000e+00> : vector<8x64xf32>
    %196 = tpu.matmul %194, %195, %cst_66 {dimension_numbers = #tpu.dot_dimension_numbers<[1], [0], [0], [1], [0, 0, 1, 1], [], []>} : vector<8x32xf32>, vector<32x64xf32>, vector<8x64xf32> -> vector<8x64xf32>
    %c0_67 = arith.constant 0 : index
    %c0_68 = arith.constant 0 : index
    %197 = vector.load %arg9[%c0_67, %c0_68] : memref<1x64xf32, #tpu.memory_space<vmem>>, vector<1x64xf32>
    %198 = vector.broadcast %197 : vector<1x64xf32> to vector<8x64xf32>
    %199 = arith.addf %196, %198 : vector<8x64xf32>
    %cst_69 = arith.constant 0.000000e+00 : f32
    %200 = vector.broadcast %cst_69 : f32 to vector<8x64xf32>
    %201 = arith.maximumf %199, %200 : vector<8x64xf32>
    %c0_70 = arith.constant 0 : index
    %c0_71 = arith.constant 0 : index
    %202 = vector.load %arg10[%c0_70, %c0_71] : memref<64x32xf32, #tpu.memory_space<vmem>>, vector<64x32xf32>
    %cst_72 = arith.constant dense<0.000000e+00> : vector<8x32xf32>
    %203 = tpu.matmul %201, %202, %cst_72 {dimension_numbers = #tpu.dot_dimension_numbers<[1], [0], [0], [1], [0, 0, 1, 1], [], []>} : vector<8x64xf32>, vector<64x32xf32>, vector<8x32xf32> -> vector<8x32xf32>
    %c0_73 = arith.constant 0 : index
    %c0_74 = arith.constant 0 : index
    %204 = vector.load %arg11[%c0_73, %c0_74] : memref<1x32xf32, #tpu.memory_space<vmem>>, vector<1x32xf32>
    %205 = vector.broadcast %204 : vector<1x32xf32> to vector<8x32xf32>
    %206 = arith.addf %203, %205 : vector<8x32xf32>
    %207 = arith.addf %206, %194 : vector<8x32xf32>
    %cst_75 = arith.constant dense<0.000000e+00> : vector<8xf32>
    %208 = vector.multi_reduction <add>, %207, %cst_75 [1] : vector<8x32xf32> to vector<8xf32>
    %209 = vector.shape_cast %208 : vector<8xf32> to vector<8x1xf32>
    %cst_76 = arith.constant 3.200000e+01 : f32
    %210 = vector.broadcast %cst_76 : f32 to vector<8x1xf32>
    %211 = arith.divf %209, %210 : vector<8x1xf32>
    %212 = vector.broadcast %211 : vector<8x1xf32> to vector<8x32xf32>
    %213 = arith.subf %207, %212 : vector<8x32xf32>
    %214 = arith.mulf %213, %213 : vector<8x32xf32>
    %cst_77 = arith.constant dense<0.000000e+00> : vector<8xf32>
    %215 = vector.multi_reduction <add>, %214, %cst_77 [1] : vector<8x32xf32> to vector<8xf32>
    %216 = vector.shape_cast %215 : vector<8xf32> to vector<8x1xf32>
    %cst_78 = arith.constant 3.200000e+01 : f32
    %217 = vector.broadcast %cst_78 : f32 to vector<8x1xf32>
    %218 = arith.divf %216, %217 : vector<8x1xf32>
    %cst_79 = arith.constant 9.99999974E-6 : f32
    %219 = vector.broadcast %cst_79 : f32 to vector<8x1xf32>
    %220 = arith.addf %218, %219 : vector<8x1xf32>
    %221 = math.rsqrt %220 : vector<8x1xf32>
    %222 = vector.broadcast %221 : vector<8x1xf32> to vector<8x32xf32>
    %223 = arith.mulf %213, %222 : vector<8x32xf32>
    %224 = vector.broadcast %4 : vector<1x32xf32> to vector<8x32xf32>
    %225 = arith.mulf %223, %224 : vector<8x32xf32>
    %226 = vector.broadcast %5 : vector<1x32xf32> to vector<8x32xf32>
    %227 = arith.addf %225, %226 : vector<8x32xf32>
    %c0_80 = arith.constant 0 : index
    %c0_81 = arith.constant 0 : index
    %c0_82 = arith.constant 0 : index
    %228 = vector.load %arg12[%c0_80, %c0_81, %c0_82] : memref<1x8x32xf32, #tpu.memory_space<vmem>>, vector<1x8x32xf32>
    %229 = vector.shape_cast %228 : vector<1x8x32xf32> to vector<8x32xf32>
    %230 = vector.shape_cast %227 : vector<8x32xf32> to vector<1x8x32xf32>
    tpu.vector_store %arg12[%c0_80, %c0_81, %c0_82], %230 {strides = array<i32>} : memref<1x8x32xf32, #tpu.memory_space<vmem>>, vector<1x8x32xf32>,
    return
  }
  func.func @transform_0(%arg0: i32) -> (i32, i32, i32) {
    %c0_i32 = arith.constant 0 : i32
    %c0_i32_0 = arith.constant 0 : i32
    %c0_i32_1 = arith.constant 0 : i32
    return %arg0, %c0_i32, %c0_i32_0 : i32, i32, i32
  }
  func.func @transform_1(%arg0: i32) -> (i32, i32, i32) {
    %c0_i32 = arith.constant 0 : i32
    %c0_i32_0 = arith.constant 0 : i32
    %c0_i32_1 = arith.constant 0 : i32
    return %arg0, %c0_i32, %c0_i32_0 : i32, i32, i32
  }
  func.func @transform_2(%arg0: i32) -> (i32, i32) {
    %c0_i32 = arith.constant 0 : i32
    %c0_i32_0 = arith.constant 0 : i32
    %c0_i32_1 = arith.constant 0 : i32
    return %c0_i32, %c0_i32_0 : i32, i32
  }
  func.func @transform_3(%arg0: i32) -> (i32, i32) {
    %c0_i32 = arith.constant 0 : i32
    %c0_i32_0 = arith.constant 0 : i32
    %c0_i32_1 = arith.constant 0 : i32
    return %c0_i32, %c0_i32_0 : i32, i32
  }
  func.func @transform_4(%arg0: i32) -> (i32, i32) {
    %c0_i32 = arith.constant 0 : i32
    %c0_i32_0 = arith.constant 0 : i32
    %c0_i32_1 = arith.constant 0 : i32
    return %c0_i32, %c0_i32_0 : i32, i32
  }
  func.func @transform_5(%arg0: i32) -> (i32, i32) {
    %c0_i32 = arith.constant 0 : i32
    %c0_i32_0 = arith.constant 0 : i32
    %c0_i32_1 = arith.constant 0 : i32
    return %c0_i32, %c0_i32_0 : i32, i32
  }
  func.func @transform_6(%arg0: i32) -> (i32, i32) {
    %c0_i32 = arith.constant 0 : i32
    %c0_i32_0 = arith.constant 0 : i32
    %c0_i32_1 = arith.constant 0 : i32
    return %c0_i32, %c0_i32_0 : i32, i32
  }
  func.func @transform_7(%arg0: i32) -> (i32, i32) {
    %c0_i32 = arith.constant 0 : i32
    %c0_i32_0 = arith.constant 0 : i32
    %c0_i32_1 = arith.constant 0 : i32
    return %c0_i32, %c0_i32_0 : i32, i32
  }
  func.func @transform_8(%arg0: i32) -> (i32, i32) {
    %c0_i32 = arith.constant 0 : i32
    %c0_i32_0 = arith.constant 0 : i32
    %c0_i32_1 = arith.constant 0 : i32
    return %c0_i32, %c0_i32_0 : i32, i32
  }
  func.func @transform_9(%arg0: i32) -> (i32, i32) {
    %c0_i32 = arith.constant 0 : i32
    %c0_i32_0 = arith.constant 0 : i32
    %c0_i32_1 = arith.constant 0 : i32
    return %c0_i32, %c0_i32_0 : i32, i32
  }
  func.func @transform_10(%arg0: i32) -> (i32, i32) {
    %c0_i32 = arith.constant 0 : i32
    %c0_i32_0 = arith.constant 0 : i32
    %c0_i32_1 = arith.constant 0 : i32
    return %c0_i32, %c0_i32_0 : i32, i32
  }
  func.func @transform_11(%arg0: i32) -> (i32, i32, i32) {
    %c0_i32 = arith.constant 0 : i32
    %c0_i32_0 = arith.constant 0 : i32
    %c0_i32_1 = arith.constant 0 : i32
    return %arg0, %c0_i32, %c0_i32_0 : i32, i32, i32
  }
}

</mosaic_0001>

<llo_original>
// kernel: decoder_forward.3
$region0: #{decoder_forward.3}
  #allocation0 [shape = 'u32[]', space=smem, size = 0x4, offset = 0x4, fixed_abs, tag = 'smem constant byte address 0x4 - core index']
  #allocation1 [shape = 'u32[144,128]{1,0:T(1,128)}', space=vmem, size = 0x12000, scoped, tag = 'internal scratch']
  %s0 = inlined_call_operand.vmem [shape: f32[2,8,32], index: 0, kind: input, shape index: {}]
  %s1 = inlined_call_operand.vmem [shape: f32[2,8,32], index: 1, kind: input, shape index: {}]
  %s2 = inlined_call_operand.vmem [shape: f32[32,96], index: 2, kind: input, shape index: {}]
  %s3 = inlined_call_operand.vmem [shape: f32[32,32], index: 3, kind: input, shape index: {}]
  %s4 = inlined_call_operand.vmem [shape: f32[1,32], index: 4, kind: input, shape index: {}]
  %s5 = inlined_call_operand.vmem [shape: f32[1,32], index: 5, kind: input, shape index: {}]
  %s6 = inlined_call_operand.vmem [shape: f32[1,32], index: 6, kind: input, shape index: {}]
  %s7 = inlined_call_operand.vmem [shape: f32[32,64], index: 7, kind: input, shape index: {}]
  %s8 = inlined_call_operand.vmem [shape: f32[1,64], index: 8, kind: input, shape index: {}]
  %s9 = inlined_call_operand.vmem [shape: f32[64,32], index: 9, kind: input, shape index: {}]
  %s10 = inlined_call_operand.vmem [shape: f32[1,32], index: 10, kind: input, shape index: {}]
  %s11 = inlined_call_operand.hbm [shape: f32[2,8,32], index: 11, kind: output, shape index: {}]
  %s12 = sld [smem:[#allocation0]]
  $region77: #{decoder_forward.3} parent=0
    _
  %s14 = ssub.s32 1, %s12
  %s15 = scalar_select 0, %s14, %s12
  $region1: #{decoder_forward.3} parent=0
    #allocation2 [shape = 'u8[8192]{0}', space=vmem, size = 0x2000, scoped, tag = 'output window, operand 0']
    #allocation3 [shape = 's32[2]{0}', space=sflag, size = 0x8, scoped, tag = 'scoped memory for decoder_forward.3']
    %16 = vsyncpa [#allocation3], 0
    %s17 = scalar_lea.sflag [#allocation3], 1
    %18 = vsyncpa %s17, 0
    loop: start=0, step=1, limit=4
    $region2: #{decoder_forward.3} parent=1 // loop_pre_header
      _
    $region3: #{decoder_forward.3} parent=1 // loop_header
      %s20 = sphi 0, %s24
      %p21 = scmp.ge.s32.totalorder %s20, 4
      %s30 = sphi 0, %s32
      %s33 = sphi 0, %s30
      %s34 = sphi 0, %s33
      %s50 = sphi 0, %s34
      %s56 = sphi 0, %s58
      %s59 = sphi 0, %s56
      %s60 = sphi 0, %s59
      %s76 = sphi 0, %s60
      %s80 = sphi 0, %s80
      %s82 = sphi 0, %s80
      %s83 = sphi 0, %s82
      %s97 = sphi 0, %s83
      %s101 = sphi 0, %s101
      %s103 = sphi 0, %s101
      %s104 = sphi 0, %s103
      %s118 = sphi 0, %s104
      %s122 = sphi 0, %s122
      %s124 = sphi 0, %s122
      %s125 = sphi 0, %s124
      %s139 = sphi 0, %s125
      %s143 = sphi 0, %s143
      %s145 = sphi 0, %s143
      %s146 = sphi 0, %s145
      %s160 = sphi 0, %s146
      %s164 = sphi 0, %s164
      %s166 = sphi 0, %s164
      %s167 = sphi 0, %s166
      %s181 = sphi 0, %s167
      %s185 = sphi 0, %s185
      %s187 = sphi 0, %s185
      %s188 = sphi 0, %s187
      %s202 = sphi 0, %s188
      %s206 = sphi 0, %s206
      %s208 = sphi 0, %s206
      %s209 = sphi 0, %s208
      %s223 = sphi 0, %s209
      %s227 = sphi 0, %s227
      %s229 = sphi 0, %s227
      %s230 = sphi 0, %s229
      %s244 = sphi 0, %s230
      %s248 = sphi 0, %s248
      %s250 = sphi 0, %s248
      %s251 = sphi 0, %s250
      %s265 = sphi 0, %s251
      %s271 = sphi 0, %s273
      %s274 = sphi 0, %s271
      %s275 = sphi 0, %s274
      %s291 = sphi 0, %s275
    $region4: #{decoder_forward.3} parent=1 // loop_header_branch
      %23 = sbr.rel (%p21) target = $region8
    $region5: #{decoder_forward.3} parent=1 // loop_body
      %s25 = ssub.s32 %s20, 1
      %s26 = ssub.s32 %s20, 2
      %s27 = sadd.s32 %s20, 1
      %s28 = ssub.s32 %s20, %s27
      %p29 = scmp.eq.s32.totalorder %s28, 0
      %s31 = sadd.s32 %s30, 1
      %s32 = scalar_select %p29, %s30, %s31
      %p35 = pneg %p29
      %p36 = scmp.eq.s32.totalorder %s20, 1
      %p37 = por %p35, %p36
      %p38 = scmp.ne.s32.totalorder %s30, %s33
      %p39 = scmp.eq.s32.totalorder %s20, 0
      %p40 = por %p38, %p39
      %p41 = scmp.ne.s32.totalorder %s30, %s33
      %p42 = scmp.eq.s32.totalorder %s25, 1
      %p43 = por %p41, %p42
      %p44 = scmp.ne.s32.totalorder %s33, %s34
      %p45 = scmp.eq.s32.totalorder %s25, 0
      %p46 = por %p44, %p45
      %p47 = scmp.ne.s32.totalorder %s33, %s34
      %p48 = scmp.eq.s32.totalorder %s26, 1
      %p49 = por %p47, %p48
      %p51 = scmp.ne.s32.totalorder %s34, %s50
      %p52 = scmp.eq.s32.totalorder %s26, 0
      %p53 = por %p51, %p52
      %s54 = ssub.s32 %s20, %s27
      %p55 = scmp.eq.s32.totalorder %s54, 0
      %s57 = sadd.s32 %s56, 1
      %s58 = scalar_select %p55, %s56, %s57
      %p61 = pneg %p55
      %p62 = scmp.eq.s32.totalorder %s20, 1
      %p63 = por %p61, %p62
      %p64 = scmp.ne.s32.totalorder %s56, %s59
      %p65 = scmp.eq.s32.totalorder %s20, 0
      %p66 = por %p64, %p65
      %p67 = scmp.ne.s32.totalorder %s56, %s59
      %p68 = scmp.eq.s32.totalorder %s25, 1
      %p69 = por %p67, %p68
      %p70 = scmp.ne.s32.totalorder %s59, %s60
      %p71 = scmp.eq.s32.totalorder %s25, 0
      %p72 = por %p70, %p71
      %p73 = scmp.ne.s32.totalorder %s59, %s60
      %p74 = scmp.eq.s32.totalorder %s26, 1
      %p75 = por %p73, %p74
      %p77 = scmp.ne.s32.totalorder %s60, %s76
      %p78 = scmp.eq.s32.totalorder %s26, 0
      %p79 = por %p77, %p78
      %s81 = sadd.s32 %s80, 1
      %p84 = scmp.eq.s32.totalorder %s20, 1
      %p85 = scmp.ne.s32.totalorder %s80, %s82
      %p86 = scmp.eq.s32.totalorder %s20, 0
      %p87 = por %p85, %p86
      %p88 = scmp.ne.s32.totalorder %s80, %s82
      %p89 = scmp.eq.s32.totalorder %s25, 1
      %p90 = por %p88, %p89
      %p91 = scmp.ne.s32.totalorder %s82, %s83
      %p92 = scmp.eq.s32.totalorder %s25, 0
      %p93 = por %p91, %p92
      %p94 = scmp.ne.s32.totalorder %s82, %s83
      %p95 = scmp.eq.s32.totalorder %s26, 1
      %p96 = por %p94, %p95
      %p98 = scmp.ne.s32.totalorder %s83, %s97
      %p99 = scmp.eq.s32.totalorder %s26, 0
      %p100 = por %p98, %p99
      %s102 = sadd.s32 %s101, 1
      %p105 = scmp.eq.s32.totalorder %s20, 1
      %p106 = scmp.ne.s32.totalorder %s101, %s103
      %p107 = scmp.eq.s32.totalorder %s20, 0
      %p108 = por %p106, %p107
      %p109 = scmp.ne.s32.totalorder %s101, %s103
      %p110 = scmp.eq.s32.totalorder %s25, 1
      %p111 = por %p109, %p110
      %p112 = scmp.ne.s32.totalorder %s103, %s104
      %p113 = scmp.eq.s32.totalorder %s25, 0
      %p114 = por %p112, %p113
      %p115 = scmp.ne.s32.totalorder %s103, %s104
      %p116 = scmp.eq.s32.totalorder %s26, 1
      %p117 = por %p115, %p116
      %p119 = scmp.ne.s32.totalorder %s104, %s118
      %p120 = scmp.eq.s32.totalorder %s26, 0
      %p121 = por %p119, %p120
      %s123 = sadd.s32 %s122, 1
      %p126 = scmp.eq.s32.totalorder %s20, 1
      %p127 = scmp.ne.s32.totalorder %s122, %s124
      %p128 = scmp.eq.s32.totalorder %s20, 0
      %p129 = por %p127, %p128
      %p130 = scmp.ne.s32.totalorder %s122, %s124
      %p131 = scmp.eq.s32.totalorder %s25, 1
      %p132 = por %p130, %p131
      %p133 = scmp.ne.s32.totalorder %s124, %s125
      %p134 = scmp.eq.s32.totalorder %s25, 0
      %p135 = por %p133, %p134
      %p136 = scmp.ne.s32.totalorder %s124, %s125
      %p137 = scmp.eq.s32.totalorder %s26, 1
      %p138 = por %p136, %p137
      %p140 = scmp.ne.s32.totalorder %s125, %s139
      %p141 = scmp.eq.s32.totalorder %s26, 0
      %p142 = por %p140, %p141
      %s144 = sadd.s32 %s143, 1
      %p147 = scmp.eq.s32.totalorder %s20, 1
      %p148 = scmp.ne.s32.totalorder %s143, %s145
      %p149 = scmp.eq.s32.totalorder %s20, 0
      %p150 = por %p148, %p149
      %p151 = scmp.ne.s32.totalorder %s143, %s145
      %p152 = scmp.eq.s32.totalorder %s25, 1
      %p153 = por %p151, %p152
      %p154 = scmp.ne.s32.totalorder %s145, %s146
      %p155 = scmp.eq.s32.totalorder %s25, 0
      %p156 = por %p154, %p155
      %p157 = scmp.ne.s32.totalorder %s145, %s146
      %p158 = scmp.eq.s32.totalorder %s26, 1
      %p159 = por %p157, %p158
      %p161 = scmp.ne.s32.totalorder %s146, %s160
      %p162 = scmp.eq.s32.totalorder %s26, 0
      %p163 = por %p161, %p162
      %s165 = sadd.s32 %s164, 1
      %p168 = scmp.eq.s32.totalorder %s20, 1
      %p169 = scmp.ne.s32.totalorder %s164, %s166
      %p170 = scmp.eq.s32.totalorder %s20, 0
      %p171 = por %p169, %p170
      %p172 = scmp.ne.s32.totalorder %s164, %s166
      %p173 = scmp.eq.s32.totalorder %s25, 1
      %p174 = por %p172, %p173
      %p175 = scmp.ne.s32.totalorder %s166, %s167
      %p176 = scmp.eq.s32.totalorder %s25, 0
      %p177 = por %p175, %p176
      %p178 = scmp.ne.s32.totalorder %s166, %s167
      %p179 = scmp.eq.s32.totalorder %s26, 1
      %p180 = por %p178, %p179
      %p182 = scmp.ne.s32.totalorder %s167, %s181
      %p183 = scmp.eq.s32.totalorder %s26, 0
      %p184 = por %p182, %p183
      %s186 = sadd.s32 %s185, 1
      %p189 = scmp.eq.s32.totalorder %s20, 1
      %p190 = scmp.ne.s32.totalorder %s185, %s187
      %p191 = scmp.eq.s32.totalorder %s20, 0
      %p192 = por %p190, %p191
      %p193 = scmp.ne.s32.totalorder %s185, %s187
      %p194 = scmp.eq.s32.totalorder %s25, 1
      %p195 = por %p193, %p194
      %p196 = scmp.ne.s32.totalorder %s187, %s188
      %p197 = scmp.eq.s32.totalorder %s25, 0
      %p198 = por %p196, %p197
      %p199 = scmp.ne.s32.totalorder %s187, %s188
      %p200 = scmp.eq.s32.totalorder %s26, 1
      %p201 = por %p199, %p200
      %p203 = scmp.ne.s32.totalorder %s188, %s202
      %p204 = scmp.eq.s32.totalorder %s26, 0
      %p205 = por %p203, %p204
      %s207 = sadd.s32 %s206, 1
      %p210 = scmp.eq.s32.totalorder %s20, 1
      %p211 = scmp.ne.s32.totalorder %s206, %s208
      %p212 = scmp.eq.s32.totalorder %s20, 0
      %p213 = por %p211, %p212
      %p214 = scmp.ne.s32.totalorder %s206, %s208
      %p215 = scmp.eq.s32.totalorder %s25, 1
      %p216 = por %p214, %p215
      %p217 = scmp.ne.s32.totalorder %s208, %s209
      %p218 = scmp.eq.s32.totalorder %s25, 0
      %p219 = por %p217, %p218
      %p220 = scmp.ne.s32.totalorder %s208, %s209
      %p221 = scmp.eq.s32.totalorder %s26, 1
      %p222 = por %p220, %p221
      %p224 = scmp.ne.s32.totalorder %s209, %s223
      %p225 = scmp.eq.s32.totalorder %s26, 0
      %p226 = por %p224, %p225
      %s228 = sadd.s32 %s227, 1
      %p231 = scmp.eq.s32.totalorder %s20, 1
      %p232 = scmp.ne.s32.totalorder %s227, %s229
      %p233 = scmp.eq.s32.totalorder %s20, 0
      %p234 = por %p232, %p233
      %p235 = scmp.ne.s32.totalorder %s227, %s229
      %p236 = scmp.eq.s32.totalorder %s25, 1
      %p237 = por %p235, %p236
      %p238 = scmp.ne.s32.totalorder %s229, %s230
      %p239 = scmp.eq.s32.totalorder %s25, 0
      %p240 = por %p238, %p239
      %p241 = scmp.ne.s32.totalorder %s229, %s230
      %p242 = scmp.eq.s32.totalorder %s26, 1
      %p243 = por %p241, %p242
      %p245 = scmp.ne.s32.totalorder %s230, %s244
      %p246 = scmp.eq.s32.totalorder %s26, 0
      %p247 = por %p245, %p246
      %s249 = sadd.s32 %s248, 1
      %p252 = scmp.eq.s32.totalorder %s20, 1
      %p253 = scmp.ne.s32.totalorder %s248, %s250
      %p254 = scmp.eq.s32.totalorder %s20, 0
      %p255 = por %p253, %p254
      %p256 = scmp.ne.s32.totalorder %s248, %s250
      %p257 = scmp.eq.s32.totalorder %s25, 1
      %p258 = por %p256, %p257
      %p259 = scmp.ne.s32.totalorder %s250, %s251
      %p260 = scmp.eq.s32.totalorder %s25, 0
      %p261 = por %p259, %p260
      %p262 = scmp.ne.s32.totalorder %s250, %s251
      %p263 = scmp.eq.s32.totalorder %s26, 1
      %p264 = por %p262, %p263
      %p266 = scmp.ne.s32.totalorder %s251, %s265
      %p267 = scmp.eq.s32.totalorder %s26, 0
      %p268 = por %p266, %p267
      %s269 = ssub.s32 %s20, %s27
      %p270 = scmp.eq.s32.totalorder %s269, 0
      %s272 = sadd.s32 %s271, 1
      %s273 = scalar_select %p270, %s271, %s272
      %p276 = pneg %p270
      %p277 = scmp.eq.s32.totalorder %s20, 1
      %p278 = por %p276, %p277
      %p279 = scmp.ne.s32.totalorder %s271, %s274
      %p280 = scmp.eq.s32.totalorder %s20, 0
      %p281 = por %p279, %p280
      %p282 = scmp.ne.s32.totalorder %s271, %s274
      %p283 = scmp.eq.s32.totalorder %s25, 1
      %p284 = por %p282, %p283
      %p285 = scmp.ne.s32.totalorder %s274, %s275
      %p286 = scmp.eq.s32.totalorder %s25, 0
      %p287 = por %p285, %p286
      %p288 = scmp.ne.s32.totalorder %s274, %s275
      %p289 = scmp.eq.s32.totalorder %s26, 1
      %p290 = por %p288, %p289
      %p292 = scmp.ne.s32.totalorder %s275, %s291
      %p293 = scmp.eq.s32.totalorder %s26, 0
      %p294 = por %p292, %p293
      %p295 = scmp.le.s32.totalorder 1, %s20
      %p296 = scmp.lt.s32.totalorder %s20, 3
      %p297 = pnand %p295, %p296
      %p298 = pneg %p297
      // Predicated region
      $region9: #{decoder_forward.3} parent=5 // pred_check
        _
      $region10: #{decoder_forward.3} parent=5 // pred_check_branch
        %300 = sbr.rel (%p297) target = $region12
      $region11: #{decoder_forward.3} parent=5 // pred_region
        %s301 = ssub.s32 %s20, 1
        // Predicated region
        $region13: #{decoder_forward.3} parent=11 // pred_check
          %p302 = pneg %p93
        $region14: #{decoder_forward.3} parent=11 // pred_check_branch
          %304 = sbr.rel (%p302) target = $region16
        $region15: #{decoder_forward.3} parent=11 // pred_region
          _
        $region16: #{decoder_forward.3} parent=11 // pred_fallthru
          _
        // Predicated region
        $region17: #{decoder_forward.3} parent=11 // pred_check
          %p305 = pneg %p114
        $region18: #{decoder_forward.3} parent=11 // pred_check_branch
          %307 = sbr.rel (%p305) target = $region20
        $region19: #{decoder_forward.3} parent=11 // pred_region
          _
        $region20: #{decoder_forward.3} parent=11 // pred_fallthru
          _
        // Predicated region
        $region21: #{decoder_forward.3} parent=11 // pred_check
          %p308 = pneg %p135
        $region22: #{decoder_forward.3} parent=11 // pred_check_branch
          %310 = sbr.rel (%p308) target = $region24
        $region23: #{decoder_forward.3} parent=11 // pred_region
          _
        $region24: #{decoder_forward.3} parent=11 // pred_fallthru
          _
        // Predicated region
        $region25: #{decoder_forward.3} parent=11 // pred_check
          %p311 = pneg %p156
        $region26: #{decoder_forward.3} parent=11 // pred_check_branch
          %313 = sbr.rel (%p311) target = $region28
        $region27: #{decoder_forward.3} parent=11 // pred_region
          _
        $region28: #{decoder_forward.3} parent=11 // pred_fallthru
          _
        // Predicated region
        $region29: #{decoder_forward.3} parent=11 // pred_check
          %p314 = pneg %p177
        $region30: #{decoder_forward.3} parent=11 // pred_check_branch
          %316 = sbr.rel (%p314) target = $region32
        $region31: #{decoder_forward.3} parent=11 // pred_region
          _
        $region32: #{decoder_forward.3} parent=11 // pred_fallthru
          _
        // Predicated region
        $region33: #{decoder_forward.3} parent=11 // pred_check
          %p317 = pneg %p198
        $region34: #{decoder_forward.3} parent=11 // pred_check_branch
          %319 = sbr.rel (%p317) target = $region36
        $region35: #{decoder_forward.3} parent=11 // pred_region
          _
        $region36: #{decoder_forward.3} parent=11 // pred_fallthru
          _
        // Predicated region
        $region37: #{decoder_forward.3} parent=11 // pred_check
          %p320 = pneg %p219
        $region38: #{decoder_forward.3} parent=11 // pred_check_branch
          %322 = sbr.rel (%p320) target = $region40
        $region39: #{decoder_forward.3} parent=11 // pred_region
          _
        $region40: #{decoder_forward.3} parent=11 // pred_fallthru
          _
        // Predicated region
        $region41: #{decoder_forward.3} parent=11 // pred_check
          %p323 = pneg %p240
        $region42: #{decoder_forward.3} parent=11 // pred_check_branch
          %325 = sbr.rel (%p323) target = $region44
        $region43: #{decoder_forward.3} parent=11 // pred_region
          _
        $region44: #{decoder_forward.3} parent=11 // pred_fallthru
          _
        // Predicated region
        $region45: #{decoder_forward.3} parent=11 // pred_check
          %p326 = pneg %p261
        $region46: #{decoder_forward.3} parent=11 // pred_check_branch
          %328 = sbr.rel (%p326) target = $region48
        $region47: #{decoder_forward.3} parent=11 // pred_region
          _
        $region48: #{decoder_forward.3} parent=11 // pred_fallthru
          _
      $region12: #{decoder_forward.3} parent=5 // pred_fallthru
        _
      %p329 = scmp.lt.s32.totalorder %s20, 2
      // Predicated region
      $region49: #{decoder_forward.3} parent=5 // pred_check
        %p330 = pneg %p329
      $region50: #{decoder_forward.3} parent=5 // pred_check_branch
        %332 = sbr.rel (%p330) target = $region52
      $region51: #{decoder_forward.3} parent=5 // pred_region
        // Predicated region
        $region53: #{decoder_forward.3} parent=51 // pred_check
          %p333 = pneg %p40
        $region54: #{decoder_forward.3} parent=51 // pred_check_branch
          %335 = sbr.rel (%p333) target = $region56
        $region55: #{decoder_forward.3} parent=51 // pred_region
          %p336 = scmp.lt.s32.totalorder %s20, 1
          %s337 = scalar_select %p336, %s20, 1
          %s338 = smul.addr %s337, 8
          %s339 = scalar_lea.vmem %s0, %s338
        $region56: #{decoder_forward.3} parent=51 // pred_fallthru
          _
        // Predicated region
        $region57: #{decoder_forward.3} parent=51 // pred_check
          %p340 = pneg %p66
        $region58: #{decoder_forward.3} parent=51 // pred_check_branch
          %342 = sbr.rel (%p340) target = $region60
        $region59: #{decoder_forward.3} parent=51 // pred_region
          %p343 = scmp.lt.s32.totalorder %s20, 1
          %s344 = scalar_select %p343, %s20, 1
          %s345 = smul.addr %s344, 8
          %s346 = scalar_lea.vmem %s1, %s345
        $region60: #{decoder_forward.3} parent=51 // pred_fallthru
          _
      $region52: #{decoder_forward.3} parent=5 // pred_fallthru
        _
      %p347 = scmp.le.s32.totalorder 1, %s20
      %p348 = scmp.lt.s32.totalorder %s20, 3
      %p349 = pnand %p347, %p348
      %p350 = pneg %p349
      // Predicated region
      $region61: #{decoder_forward.3} parent=5 // pred_check
        _
      $region62: #{decoder_forward.3} parent=5 // pred_check_branch
        %352 = sbr.rel (%p349) target = $region64
      $region63: #{decoder_forward.3} parent=5 // pred_region
        %s353 = ssub.s32 %s20, 1
        %p354 = scmp.lt.s32.totalorder %s25, 1
        %s355 = scalar_select %p354, %s25, 1
        %s356 = smul.addr %s355, 8
        %s357 = scalar_lea.vmem %s0, %s356
        %p358 = pneg %p46
        %p359 = pneg %p43
        %p360 = scmp.lt.s32.totalorder %s25, 1
        %s361 = scalar_select %p360, %s25, 1
        %s362 = smul.addr %s361, 8
        %s363 = scalar_lea.vmem %s1, %s362
        %p364 = pneg %p72
        %p365 = pneg %p69
        %p366 = pneg %p93
        %p367 = pneg %p90
        %p368 = pneg %p114
        %p369 = pneg %p111
        %p370 = pneg %p135
        %p371 = pneg %p132
        %p372 = pneg %p156
        %p373 = pneg %p153
        %p374 = pneg %p177
        %p375 = pneg %p174
        %p376 = pneg %p198
        %p377 = pneg %p195
        %p378 = pneg %p219
        %p379 = pneg %p216
        %p380 = pneg %p240
        %p381 = pneg %p237
        %p382 = pneg %p261
        %p383 = pneg %p258
        %p384 = pneg %p287
        %p385 = pneg %p284
        %s386 = sand.u32 %s274, 1
        %s387 = scalar_lea.sflag [#allocation3], %s386
        %s388 = sand.u32 %s274, 1
        %s389 = smul.addr %s388, 8
        %s390 = scalar_lea.vmem [#allocation2], %s389
        %p391 = scmp.lt.s32.totalorder %s25, 1
        %s392 = scalar_select %p391, %s25, 1
        %s393 = smul.addr %s392, 8
        %s394 = scalar_lea.vmem %s0, %s393
        %p395 = scmp.lt.s32.totalorder %s25, 1
        %s396 = scalar_select %p395, %s25, 1
        %s397 = smul.addr %s396, 8
        %s398 = scalar_lea.vmem %s1, %s397
        %v399 = vld [vmem:[%s394] sm:$0xff]
        %v400 = vld [vmem:[%s398] sm:$0xff]
        %v401 = vld [vmem:[%s5] sm:$0x1]
        %v402 = vld [vmem:[%s6] sm:$0x1]
        %v403 = vld [vmem:[%s2] sm:$0xff]
        %v404 = vld [vmem:[%s2 + $0x8] sm:$0xff]
        %v405 = vld [vmem:[%s2 + $0x10] sm:$0xff]
        %v406 = vld [vmem:[%s2 + $0x18] sm:$0xff]
        %v407 = vld [vmem:[%s3] sm:$0xff]
        %v408 = vld [vmem:[%s3 + $0x8] sm:$0xff]
        %v409 = vld [vmem:[%s3 + $0x10] sm:$0xff]
        %v410 = vld [vmem:[%s3 + $0x18] sm:$0xff]
        %v411 = vld [vmem:[%s4] sm:$0x1]
        %vm412 = vcmask 261120
        %v414 = vsel %vm412, %v399, 0
        %416 = vmatprep.subr.mxu0 0.0
        %417 = vmatpush1.msra.mxu0 %v403
        %418 = vmatprep.subr.mxu0 0.0
        %419 = vmatpush1.msra.mxu0 %v404
        %420 = vmatprep.subr.mxu0 0.0
        %421 = vmatpush1.msra.mxu0 %v405
        %422 = vmatprep.subr.mxu0 0.0
        %423 = vmatpush1.msra.mxu0 %v406
        %424 = vmatprep.subr.mxu0 0.0
        %425 = vmatpush1.msra.mxu0 0.0
        %426 = vmatprep.subr.mxu0 0.0
        %427 = vmatpush1.msra.mxu0 0.0
        %428 = vmatprep.subr.mxu0 0.0
        %429 = vmatpush1.msra.mxu0 0.0
        %430 = vmatprep.subr.mxu0 0.0
        %431 = vmatpush1.msra.mxu0 0.0
        %432 = vmatprep.subr.mxu0 0.0
        %433 = vmatpush1.msra.mxu0 0.0
        %434 = vmatprep.subr.mxu0 0.0
        %435 = vmatpush1.msra.mxu0 0.0
        %436 = vmatprep.subr.mxu0 0.0
        %437 = vmatpush1.msra.mxu0 0.0
        %438 = vmatprep.subr.mxu0 0.0
        %439 = vmatpush1.msra.mxu0 0.0
        %440 = vmatprep.subr.mxu0 0.0
        %441 = vmatpush1.msra.mxu0 0.0
        %442 = vmatprep.subr.mxu0 0.0
        %443 = vmatpush1.msra.mxu0 0.0
        %444 = vmatprep.subr.mxu0 0.0
        %445 = vmatpush1.msra.mxu0 0.0
        %446 = vmatprep.subr.mxu0 0.0
        %447 = vmatpush1.msra.mxu0 0.0
        %448 = vmatprep.subr.mxu0 0.0
        %449 = vmatpush1.msra.mxu0 0.0
        %450 = vmatprep.subr.mxu0 0.0
        %451 = vmatpush1.msra.mxu0 0.0
        %452 = vmatprep.subr.mxu0 0.0
        %453 = vmatpush1.msra.mxu0 0.0
        %454 = vmatprep.subr.mxu0 0.0
        %455 = vmatpush1.msra.mxu0 0.0
        %456 = vmatprep.subr.mxu0 0.0
        %457 = vmatpush1.msra.mxu0 0.0
        %458 = vmatprep.subr.mxu0 0.0
        %459 = vmatpush1.msra.mxu0 0.0
        %460 = vmatprep.subr.mxu0 0.0
        %461 = vmatpush1.msra.mxu0 0.0
        %462 = vmatprep.subr.mxu0 0.0
        %463 = vmatpush1.msra.mxu0 0.0
        %464 = vmatprep.subr.mxu0 0.0
        %465 = vmatpush1.msra.mxu0 0.0
        %466 = vmatprep.subr.mxu0 0.0
        %467 = vmatpush1.msra.mxu0 0.0
        %468 = vmatprep.subr.mxu0 0.0
        %469 = vmatpush1.msra.mxu0 0.0
        %470 = vmatprep.subr.mxu0 0.0
        %471 = vmatpush1.msra.mxu0 0.0
        %472 = vmatprep.subr.mxu0 0.0
        %473 = vmatpush1.msra.mxu0 0.0
        %474 = vmatprep.subr.mxu0 0.0
        %475 = vmatpush1.msra.mxu0 0.0
        %476 = vmatprep.subr.mxu0 0.0
        %477 = vmatpush1.msra.mxu0 0.0
        %478 = vmatprep.subr.mxu0 0.0
        %479 = vmatpush1.msra.mxu0 0.0
        %480 = vmatprep.mubr.f32.mxu0 0.0
        %481 = vmatmul.mubr.f32.gmra.mrb[0].mxu0 %v414
        %v482 = vpop.f32.mrb[0].mxu0
        %v483 = vadd.f32 0.0, %v482
        %v484 = vpop.f32.mrb[0].mxu0
        %485 = vdwg.mxu0
        %v486 = vmul.f32 %v483, 0.35355338
        %488 = vrot.lane.b32.xlu0 %v483, 96
        %v489 = vpop.permute.xlu0 %488
        %vm490 = vcmask 64512
        %v492 = vsel %vm490, %v486, 0
        %v494 = vsel %vm490, %v489, 0
        %496 = vmatprep.subr.mxu0 0.0
        %497 = vmatpush1.xpose.msra.mxu0 %v494
        %498 = vmatprep.subr.mxu0 0.0
        %499 = vmatpush1.xpose.msra.mxu0 0.0
        %500 = vmatprep.subr.mxu0 0.0
        %501 = vmatpush1.xpose.msra.mxu0 0.0
        %502 = vmatprep.subr.mxu0 0.0
        %503 = vmatpush1.xpose.msra.mxu0 0.0
        %504 = vmatprep.subr.mxu0 0.0
        %505 = vmatpush1.xpose.msra.mxu0 0.0
        %506 = vmatprep.subr.mxu0 0.0
        %507 = vmatpush1.xpose.msra.mxu0 0.0
        %508 = vmatprep.subr.mxu0 0.0
        %509 = vmatpush1.xpose.msra.mxu0 0.0
        %510 = vmatprep.subr.mxu0 0.0
        %511 = vmatpush1.xpose.msra.mxu0 0.0
        %512 = vmatprep.subr.mxu0 0.0
        %513 = vmatpush1.xpose.msra.mxu0 0.0
        %514 = vmatprep.subr.mxu0 0.0
        %515 = vmatpush1.xpose.msra.mxu0 0.0
        %516 = vmatprep.subr.mxu0 0.0
        %517 = vmatpush1.xpose.msra.mxu0 0.0
        %518 = vmatprep.subr.mxu0 0.0
        %519 = vmatpush1.xpose.msra.mxu0 0.0
        %520 = vmatprep.subr.mxu0 0.0
        %521 = vmatpush1.xpose.msra.mxu0 0.0
        %522 = vmatprep.subr.mxu0 0.0
        %523 = vmatpush1.xpose.msra.mxu0 0.0
        %524 = vmatprep.subr.mxu0 0.0
        %525 = vmatpush1.xpose.msra.mxu0 0.0
        %526 = vmatprep.subr.mxu0 0.0
        %527 = vmatpush1.xpose.msra.mxu0 0.0
        %528 = vmatprep.subr.mxu0 0.0
        %529 = vmatpush1.xpose.msra.mxu0 0.0
        %530 = vmatprep.subr.mxu0 0.0
        %531 = vmatpush1.xpose.msra.mxu0 0.0
        %532 = vmatprep.subr.mxu0 0.0
        %533 = vmatpush1.xpose.msra.mxu0 0.0
        %534 = vmatprep.subr.mxu0 0.0
        %535 = vmatpush1.xpose.msra.mxu0 0.0
        %536 = vmatprep.subr.mxu0 0.0
        %537 = vmatpush1.xpose.msra.mxu0 0.0
        %538 = vmatprep.subr.mxu0 0.0
        %539 = vmatpush1.xpose.msra.mxu0 0.0
        %540 = vmatprep.subr.mxu0 0.0
        %541 = vmatpush1.xpose.msra.mxu0 0.0
        %542 = vmatprep.subr.mxu0 0.0
        %543 = vmatpush1.xpose.msra.mxu0 0.0
        %544 = vmatprep.subr.mxu0 0.0
        %545 = vmatpush1.xpose.msra.mxu0 0.0
        %546 = vmatprep.subr.mxu0 0.0
        %547 = vmatpush1.xpose.msra.mxu0 0.0
        %548 = vmatprep.subr.mxu0 0.0
        %549 = vmatpush1.xpose.msra.mxu0 0.0
        %550 = vmatprep.subr.mxu0 0.0
        %551 = vmatpush1.xpose.msra.mxu0 0.0
        %552 = vmatprep.subr.mxu0 0.0
        %553 = vmatpush1.xpose.msra.mxu0 0.0
        %554 = vmatprep.subr.mxu0 0.0
        %555 = vmatpush1.xpose.msra.mxu0 0.0
        %556 = vmatprep.subr.mxu0 0.0
        %557 = vmatpush1.xpose.msra.mxu0 0.0
        %558 = vmatprep.subr.mxu0 0.0
        %559 = vmatpush1.xpose.msra.mxu0 0.0
        %560 = vmatprep.mubr.f32.mxu0 0.0
        %561 = vmatmul.mubr.f32.gmra.mrb[0].mxu0 %v492
        %v562 = vpop.f32.mrb[0].mxu0
        %v563 = vadd.f32 0.0, %v562
        %v564 = vpop.f32.mrb[0].mxu0
        %565 = vdwg.mxu0
        %v566 = vsel %vm490, %v563, -inf
        %567 = vmax.xlane.f32.xlu0 %v566
        %v568 = vpop.xlane.xlu0 %567
        %v569 = vsub.f32 %v563, %v568
        %v570 = vmul.f32 %v569, 1.442695
        %v571 = vpow.pop %v570
        %v572 = vsel %vm490, %v571, 0.0
        %573 = vadd.xlane.f32.xlu0 %v572
        %v574 = vpop.xlane.xlu0 %573
        %v575 = vrcp.pop %v574
        %v576 = vmul.f32 %v571, %v575
        %577 = vrot.lane.b32.xlu0 %v483, 64
        %v578 = vpop.permute.xlu0 %577
        %v581 = vsel %vm490, %v576, 0
        %583 = vmatprep.subr.mxu0 0.0
        %584 = vmatpush1.msra.mxu0 %v578
        %585 = vmatprep.subr.mxu0 0.0
        %586 = vmatpush1.msra.mxu0 0.0
        %587 = vmatprep.subr.mxu0 0.0
        %588 = vmatpush1.msra.mxu0 0.0
        %589 = vmatprep.subr.mxu0 0.0
        %590 = vmatpush1.msra.mxu0 0.0
        %591 = vmatprep.subr.mxu0 0.0
        %592 = vmatpush1.msra.mxu0 0.0
        %593 = vmatprep.subr.mxu0 0.0
        %594 = vmatpush1.msra.mxu0 0.0
        %595 = vmatprep.subr.mxu0 0.0
        %596 = vmatpush1.msra.mxu0 0.0
        %597 = vmatprep.subr.mxu0 0.0
        %598 = vmatpush1.msra.mxu0 0.0
        %599 = vmatprep.subr.mxu0 0.0
        %600 = vmatpush1.msra.mxu0 0.0
        %601 = vmatprep.subr.mxu0 0.0
        %602 = vmatpush1.msra.mxu0 0.0
        %603 = vmatprep.subr.mxu0 0.0
        %604 = vmatpush1.msra.mxu0 0.0
        %605 = vmatprep.subr.mxu0 0.0
        %606 = vmatpush1.msra.mxu0 0.0
        %607 = vmatprep.subr.mxu0 0.0
        %608 = vmatpush1.msra.mxu0 0.0
        %609 = vmatprep.subr.mxu0 0.0
        %610 = vmatpush1.msra.mxu0 0.0
        %611 = vmatprep.subr.mxu0 0.0
        %612 = vmatpush1.msra.mxu0 0.0
        %613 = vmatprep.subr.mxu0 0.0
        %614 = vmatpush1.msra.mxu0 0.0
        %615 = vmatprep.subr.mxu0 0.0
        %616 = vmatpush1.msra.mxu0 0.0
        %617 = vmatprep.subr.mxu0 0.0
        %618 = vmatpush1.msra.mxu0 0.0
        %619 = vmatprep.subr.mxu0 0.0
        %620 = vmatpush1.msra.mxu0 0.0
        %621 = vmatprep.subr.mxu0 0.0
        %622 = vmatpush1.msra.mxu0 0.0
        %623 = vmatprep.subr.mxu0 0.0
        %624 = vmatpush1.msra.mxu0 0.0
        %625 = vmatprep.subr.mxu0 0.0
        %626 = vmatpush1.msra.mxu0 0.0
        %627 = vmatprep.subr.mxu0 0.0
        %628 = vmatpush1.msra.mxu0 0.0
        %629 = vmatprep.subr.mxu0 0.0
        %630 = vmatpush1.msra.mxu0 0.0
        %631 = vmatprep.subr.mxu0 0.0
        %632 = vmatpush1.msra.mxu0 0.0
        %633 = vmatprep.subr.mxu0 0.0
        %634 = vmatpush1.msra.mxu0 0.0
        %635 = vmatprep.subr.mxu0 0.0
        %636 = vmatpush1.msra.mxu0 0.0
        %637 = vmatprep.subr.mxu0 0.0
        %638 = vmatpush1.msra.mxu0 0.0
        %639 = vmatprep.subr.mxu0 0.0
        %640 = vmatpush1.msra.mxu0 0.0
        %641 = vmatprep.subr.mxu0 0.0
        %642 = vmatpush1.msra.mxu0 0.0
        %643 = vmatprep.subr.mxu0 0.0
        %644 = vmatpush1.msra.mxu0 0.0
        %645 = vmatprep.subr.mxu0 0.0
        %646 = vmatpush1.msra.mxu0 0.0
        %647 = vmatprep.mubr.f32.mxu0 0.0
        %648 = vmatmul.mubr.f32.gmra.mrb[0].mxu0 %v581
        %v649 = vpop.f32.mrb[0].mxu0
        %v650 = vadd.f32 0.0, %v649
        %v651 = vpop.f32.mrb[0].mxu0
        %652 = vdwg.mxu0
        %653 = vrot.lane.b32.xlu0 %v486, 120
        %v654 = vpop.permute.xlu0 %653
        %655 = vrot.lane.b32.xlu0 %v483, 88
        %v656 = vpop.permute.xlu0 %655
        %v657 = vsel %vm490, %v654, 0
        %v659 = vsel %vm490, %v656, 0
        %661 = vmatprep.subr.mxu0 0.0
        %662 = vmatpush1.xpose.msra.mxu0 %v659
        %663 = vmatprep.subr.mxu0 0.0
        %664 = vmatpush1.xpose.msra.mxu0 0.0
        %665 = vmatprep.subr.mxu0 0.0
        %666 = vmatpush1.xpose.msra.mxu0 0.0
        %667 = vmatprep.subr.mxu0 0.0
        %668 = vmatpush1.xpose.msra.mxu0 0.0
        %669 = vmatprep.subr.mxu0 0.0
        %670 = vmatpush1.xpose.msra.mxu0 0.0
        %671 = vmatprep.subr.mxu0 0.0
        %672 = vmatpush1.xpose.msra.mxu0 0.0
        %673 = vmatprep.subr.mxu0 0.0
        %674 = vmatpush1.xpose.msra.mxu0 0.0
        %675 = vmatprep.subr.mxu0 0.0
        %676 = vmatpush1.xpose.msra.mxu0 0.0
        %677 = vmatprep.subr.mxu0 0.0
        %678 = vmatpush1.xpose.msra.mxu0 0.0
        %679 = vmatprep.subr.mxu0 0.0
        %680 = vmatpush1.xpose.msra.mxu0 0.0
        %681 = vmatprep.subr.mxu0 0.0
        %682 = vmatpush1.xpose.msra.mxu0 0.0
        %683 = vmatprep.subr.mxu0 0.0
        %684 = vmatpush1.xpose.msra.mxu0 0.0
        %685 = vmatprep.subr.mxu0 0.0
        %686 = vmatpush1.xpose.msra.mxu0 0.0
        %687 = vmatprep.subr.mxu0 0.0
        %688 = vmatpush1.xpose.msra.mxu0 0.0
        %689 = vmatprep.subr.mxu0 0.0
        %690 = vmatpush1.xpose.msra.mxu0 0.0
        %691 = vmatprep.subr.mxu0 0.0
        %692 = vmatpush1.xpose.msra.mxu0 0.0
        %693 = vmatprep.subr.mxu0 0.0
        %694 = vmatpush1.xpose.msra.mxu0 0.0
        %695 = vmatprep.subr.mxu0 0.0
        %696 = vmatpush1.xpose.msra.mxu0 0.0
        %697 = vmatprep.subr.mxu0 0.0
        %698 = vmatpush1.xpose.msra.mxu0 0.0
        %699 = vmatprep.subr.mxu0 0.0
        %700 = vmatpush1.xpose.msra.mxu0 0.0
        %701 = vmatprep.subr.mxu0 0.0
        %702 = vmatpush1.xpose.msra.mxu0 0.0
        %703 = vmatprep.subr.mxu0 0.0
        %704 = vmatpush1.xpose.msra.mxu0 0.0
        %705 = vmatprep.subr.mxu0 0.0
        %706 = vmatpush1.xpose.msra.mxu0 0.0
        %707 = vmatprep.subr.mxu0 0.0
        %708 = vmatpush1.xpose.msra.mxu0 0.0
        %709 = vmatprep.subr.mxu0 0.0
        %710 = vmatpush1.xpose.msra.mxu0 0.0
        %711 = vmatprep.subr.mxu0 0.0
        %712 = vmatpush1.xpose.msra.mxu0 0.0
        %713 = vmatprep.subr.mxu0 0.0
        %714 = vmatpush1.xpose.msra.mxu0 0.0
        %715 = vmatprep.subr.mxu0 0.0
        %716 = vmatpush1.xpose.msra.mxu0 0.0
        %717 = vmatprep.subr.mxu0 0.0
        %718 = vmatpush1.xpose.msra.mxu0 0.0
        %719 = vmatprep.subr.mxu0 0.0
        %720 = vmatpush1.xpose.msra.mxu0 0.0
        %721 = vmatprep.subr.mxu0 0.0
        %722 = vmatpush1.xpose.msra.mxu0 0.0
        %723 = vmatprep.subr.mxu0 0.0
        %724 = vmatpush1.xpose.msra.mxu0 0.0
        %725 = vmatprep.mubr.f32.mxu0 0.0
        %726 = vmatmul.mubr.f32.gmra.mrb[0].mxu0 %v657
        %v727 = vpop.f32.mrb[0].mxu0
        %v728 = vadd.f32 0.0, %v727
        %v729 = vpop.f32.mrb[0].mxu0
        %730 = vdwg.mxu0
        %v731 = vsel %vm490, %v728, -inf
        %732 = vmax.xlane.f32.xlu0 %v731
        %v733 = vpop.xlane.xlu0 %732
        %v734 = vsub.f32 %v728, %v733
        %v735 = vmul.f32 %v734, 1.442695
        %v736 = vpow.pop %v735
        %v737 = vsel %vm490, %v736, 0.0
        %738 = vadd.xlane.f32.xlu0 %v737
        %v739 = vpop.xlane.xlu0 %738
        %v740 = vrcp.pop %v739
        %v741 = vmul.f32 %v736, %v740
        %742 = vrot.lane.b32.xlu0 %v483, 56
        %v743 = vpop.permute.xlu0 %742
        %v746 = vsel %vm490, %v741, 0
        %748 = vmatprep.subr.mxu0 0.0
        %749 = vmatpush1.msra.mxu0 %v743
        %750 = vmatprep.subr.mxu0 0.0
        %751 = vmatpush1.msra.mxu0 0.0
        %752 = vmatprep.subr.mxu0 0.0
        %753 = vmatpush1.msra.mxu0 0.0
        %754 = vmatprep.subr.mxu0 0.0
        %755 = vmatpush1.msra.mxu0 0.0
        %756 = vmatprep.subr.mxu0 0.0
        %757 = vmatpush1.msra.mxu0 0.0
        %758 = vmatprep.subr.mxu0 0.0
        %759 = vmatpush1.msra.mxu0 0.0
        %760 = vmatprep.subr.mxu0 0.0
        %761 = vmatpush1.msra.mxu0 0.0
        %762 = vmatprep.subr.mxu0 0.0
        %763 = vmatpush1.msra.mxu0 0.0
        %764 = vmatprep.subr.mxu0 0.0
        %765 = vmatpush1.msra.mxu0 0.0
        %766 = vmatprep.subr.mxu0 0.0
        %767 = vmatpush1.msra.mxu0 0.0
        %768 = vmatprep.subr.mxu0 0.0
        %769 = vmatpush1.msra.mxu0 0.0
        %770 = vmatprep.subr.mxu0 0.0
        %771 = vmatpush1.msra.mxu0 0.0
        %772 = vmatprep.subr.mxu0 0.0
        %773 = vmatpush1.msra.mxu0 0.0
        %774 = vmatprep.subr.mxu0 0.0
        %775 = vmatpush1.msra.mxu0 0.0
        %776 = vmatprep.subr.mxu0 0.0
        %777 = vmatpush1.msra.mxu0 0.0
        %778 = vmatprep.subr.mxu0 0.0
        %779 = vmatpush1.msra.mxu0 0.0
        %780 = vmatprep.subr.mxu0 0.0
        %781 = vmatpush1.msra.mxu0 0.0
        %782 = vmatprep.subr.mxu0 0.0
        %783 = vmatpush1.msra.mxu0 0.0
        %784 = vmatprep.subr.mxu0 0.0
        %785 = vmatpush1.msra.mxu0 0.0
        %786 = vmatprep.subr.mxu0 0.0
        %787 = vmatpush1.msra.mxu0 0.0
        %788 = vmatprep.subr.mxu0 0.0
        %789 = vmatpush1.msra.mxu0 0.0
        %790 = vmatprep.subr.mxu0 0.0
        %791 = vmatpush1.msra.mxu0 0.0
        %792 = vmatprep.subr.mxu0 0.0
        %793 = vmatpush1.msra.mxu0 0.0
        %794 = vmatprep.subr.mxu0 0.0
        %795 = vmatpush1.msra.mxu0 0.0
        %796 = vmatprep.subr.mxu0 0.0
        %797 = vmatpush1.msra.mxu0 0.0
        %798 = vmatprep.subr.mxu0 0.0
        %799 = vmatpush1.msra.mxu0 0.0
        %800 = vmatprep.subr.mxu0 0.0
        %801 = vmatpush1.msra.mxu0 0.0
        %802 = vmatprep.subr.mxu0 0.0
        %803 = vmatpush1.msra.mxu0 0.0
        %804 = vmatprep.subr.mxu0 0.0
        %805 = vmatpush1.msra.mxu0 0.0
        %806 = vmatprep.subr.mxu0 0.0
        %807 = vmatpush1.msra.mxu0 0.0
        %808 = vmatprep.subr.mxu0 0.0
        %809 = vmatpush1.msra.mxu0 0.0
        %810 = vmatprep.subr.mxu0 0.0
        %811 = vmatpush1.msra.mxu0 0.0
        %812 = vmatprep.mubr.f32.mxu0 0.0
        %813 = vmatmul.mubr.f32.gmra.mrb[0].mxu0 %v746
        %v814 = vpop.f32.mrb[0].mxu0
        %v815 = vadd.f32 0.0, %v814
        %v816 = vpop.f32.mrb[0].mxu0
        %817 = vdwg.mxu0
        %818 = vrot.lane.b32.xlu0 %v486, 112
        %v819 = vpop.permute.xlu0 %818
        %820 = vrot.lane.b32.xlu0 %v483, 80
        %v821 = vpop.permute.xlu0 %820
        %v822 = vsel %vm490, %v819, 0
        %v824 = vsel %vm490, %v821, 0
        %826 = vmatprep.subr.mxu0 0.0
        %827 = vmatpush1.xpose.msra.mxu0 %v824
        %828 = vmatprep.subr.mxu0 0.0
        %829 = vmatpush1.xpose.msra.mxu0 0.0
        %830 = vmatprep.subr.mxu0 0.0
        %831 = vmatpush1.xpose.msra.mxu0 0.0
        %832 = vmatprep.subr.mxu0 0.0
        %833 = vmatpush1.xpose.msra.mxu0 0.0
        %834 = vmatprep.subr.mxu0 0.0
        %835 = vmatpush1.xpose.msra.mxu0 0.0
        %836 = vmatprep.subr.mxu0 0.0
        %837 = vmatpush1.xpose.msra.mxu0 0.0
        %838 = vmatprep.subr.mxu0 0.0
        %839 = vmatpush1.xpose.msra.mxu0 0.0
        %840 = vmatprep.subr.mxu0 0.0
        %841 = vmatpush1.xpose.msra.mxu0 0.0
        %842 = vmatprep.subr.mxu0 0.0
        %843 = vmatpush1.xpose.msra.mxu0 0.0
        %844 = vmatprep.subr.mxu0 0.0
        %845 = vmatpush1.xpose.msra.mxu0 0.0
        %846 = vmatprep.subr.mxu0 0.0
        %847 = vmatpush1.xpose.msra.mxu0 0.0
        %848 = vmatprep.subr.mxu0 0.0
        %849 = vmatpush1.xpose.msra.mxu0 0.0
        %850 = vmatprep.subr.mxu0 0.0
        %851 = vmatpush1.xpose.msra.mxu0 0.0
        %852 = vmatprep.subr.mxu0 0.0
        %853 = vmatpush1.xpose.msra.mxu0 0.0
        %854 = vmatprep.subr.mxu0 0.0
        %855 = vmatpush1.xpose.msra.mxu0 0.0
        %856 = vmatprep.subr.mxu0 0.0
        %857 = vmatpush1.xpose.msra.mxu0 0.0
        %858 = vmatprep.subr.mxu0 0.0
        %859 = vmatpush1.xpose.msra.mxu0 0.0
        %860 = vmatprep.subr.mxu0 0.0
        %861 = vmatpush1.xpose.msra.mxu0 0.0
        %862 = vmatprep.subr.mxu0 0.0
        %863 = vmatpush1.xpose.msra.mxu0 0.0
        %864 = vmatprep.subr.mxu0 0.0
        %865 = vmatpush1.xpose.msra.mxu0 0.0
        %866 = vmatprep.subr.mxu0 0.0
        %867 = vmatpush1.xpose.msra.mxu0 0.0
        %868 = vmatprep.subr.mxu0 0.0
        %869 = vmatpush1.xpose.msra.mxu0 0.0
        %870 = vmatprep.subr.mxu0 0.0
        %871 = vmatpush1.xpose.msra.mxu0 0.0
        %872 = vmatprep.subr.mxu0 0.0
        %873 = vmatpush1.xpose.msra.mxu0 0.0
        %874 = vmatprep.subr.mxu0 0.0
        %875 = vmatpush1.xpose.msra.mxu0 0.0
        %876 = vmatprep.subr.mxu0 0.0
        %877 = vmatpush1.xpose.msra.mxu0 0.0
        %878 = vmatprep.subr.mxu0 0.0
        %879 = vmatpush1.xpose.msra.mxu0 0.0
        %880 = vmatprep.subr.mxu0 0.0
        %881 = vmatpush1.xpose.msra.mxu0 0.0
        %882 = vmatprep.subr.mxu0 0.0
        %883 = vmatpush1.xpose.msra.mxu0 0.0
        %884 = vmatprep.subr.mxu0 0.0
        %885 = vmatpush1.xpose.msra.mxu0 0.0
        %886 = vmatprep.subr.mxu0 0.0
        %887 = vmatpush1.xpose.msra.mxu0 0.0
        %888 = vmatprep.subr.mxu0 0.0
        %889 = vmatpush1.xpose.msra.mxu0 0.0
        %890 = vmatprep.mubr.f32.mxu0 0.0
        %891 = vmatmul.mubr.f32.gmra.mrb[0].mxu0 %v822
        %v892 = vpop.f32.mrb[0].mxu0
        %v893 = vadd.f32 0.0, %v892
        %v894 = vpop.f32.mrb[0].mxu0
        %895 = vdwg.mxu0
        %v896 = vsel %vm490, %v893, -inf
        %897 = vmax.xlane.f32.xlu0 %v896
        %v898 = vpop.xlane.xlu0 %897
        %v899 = vsub.f32 %v893, %v898
        %v900 = vmul.f32 %v899, 1.442695
        %v901 = vpow.pop %v900
        %v902 = vsel %vm490, %v901, 0.0
        %903 = vadd.xlane.f32.xlu0 %v902
        %v904 = vpop.xlane.xlu0 %903
        %v905 = vrcp.pop %v904
        %v906 = vmul.f32 %v901, %v905
        %907 = vrot.lane.b32.xlu0 %v483, 48
        %v908 = vpop.permute.xlu0 %907
        %v911 = vsel %vm490, %v906, 0
        %913 = vmatprep.subr.mxu0 0.0
        %914 = vmatpush1.msra.mxu0 %v908
        %915 = vmatprep.subr.mxu0 0.0
        %916 = vmatpush1.msra.mxu0 0.0
        %917 = vmatprep.subr.mxu0 0.0
        %918 = vmatpush1.msra.mxu0 0.0
        %919 = vmatprep.subr.mxu0 0.0
        %920 = vmatpush1.msra.mxu0 0.0
        %921 = vmatprep.subr.mxu0 0.0
        %922 = vmatpush1.msra.mxu0 0.0
        %923 = vmatprep.subr.mxu0 0.0
        %924 = vmatpush1.msra.mxu0 0.0
        %925 = vmatprep.subr.mxu0 0.0
        %926 = vmatpush1.msra.mxu0 0.0
        %927 = vmatprep.subr.mxu0 0.0
        %928 = vmatpush1.msra.mxu0 0.0
        %929 = vmatprep.subr.mxu0 0.0
        %930 = vmatpush1.msra.mxu0 0.0
        %931 = vmatprep.subr.mxu0 0.0
        %932 = vmatpush1.msra.mxu0 0.0
        %933 = vmatprep.subr.mxu0 0.0
        %934 = vmatpush1.msra.mxu0 0.0
        %935 = vmatprep.subr.mxu0 0.0
        %936 = vmatpush1.msra.mxu0 0.0
        %937 = vmatprep.subr.mxu0 0.0
        %938 = vmatpush1.msra.mxu0 0.0
        %939 = vmatprep.subr.mxu0 0.0
        %940 = vmatpush1.msra.mxu0 0.0
        %941 = vmatprep.subr.mxu0 0.0
        %942 = vmatpush1.msra.mxu0 0.0
        %943 = vmatprep.subr.mxu0 0.0
        %944 = vmatpush1.msra.mxu0 0.0
        %945 = vmatprep.subr.mxu0 0.0
        %946 = vmatpush1.msra.mxu0 0.0
        %947 = vmatprep.subr.mxu0 0.0
        %948 = vmatpush1.msra.mxu0 0.0
        %949 = vmatprep.subr.mxu0 0.0
        %950 = vmatpush1.msra.mxu0 0.0
        %951 = vmatprep.subr.mxu0 0.0
        %952 = vmatpush1.msra.mxu0 0.0
        %953 = vmatprep.subr.mxu0 0.0
        %954 = vmatpush1.msra.mxu0 0.0
        %955 = vmatprep.subr.mxu0 0.0
        %956 = vmatpush1.msra.mxu0 0.0
        %957 = vmatprep.subr.mxu0 0.0
        %958 = vmatpush1.msra.mxu0 0.0
        %959 = vmatprep.subr.mxu0 0.0
        %960 = vmatpush1.msra.mxu0 0.0
        %961 = vmatprep.subr.mxu0 0.0
        %962 = vmatpush1.msra.mxu0 0.0
        %963 = vmatprep.subr.mxu0 0.0
        %964 = vmatpush1.msra.mxu0 0.0
        %965 = vmatprep.subr.mxu0 0.0
        %966 = vmatpush1.msra.mxu0 0.0
        %967 = vmatprep.subr.mxu0 0.0
        %968 = vmatpush1.msra.mxu0 0.0
        %969 = vmatprep.subr.mxu0 0.0
        %970 = vmatpush1.msra.mxu0 0.0
        %971 = vmatprep.subr.mxu0 0.0
        %972 = vmatpush1.msra.mxu0 0.0
        %973 = vmatprep.subr.mxu0 0.0
        %974 = vmatpush1.msra.mxu0 0.0
        %975 = vmatprep.subr.mxu0 0.0
        %976 = vmatpush1.msra.mxu0 0.0
        %977 = vmatprep.mubr.f32.mxu0 0.0
        %978 = vmatmul.mubr.f32.gmra.mrb[0].mxu0 %v911
        %v979 = vpop.f32.mrb[0].mxu0
        %v980 = vadd.f32 0.0, %v979
        %v981 = vpop.f32.mrb[0].mxu0
        %982 = vdwg.mxu0
        %983 = vrot.lane.b32.xlu0 %v486, 104
        %v984 = vpop.permute.xlu0 %983
        %985 = vrot.lane.b32.xlu0 %v483, 72
        %v986 = vpop.permute.xlu0 %985
        %v987 = vsel %vm490, %v984, 0
        %v989 = vsel %vm490, %v986, 0
        %991 = vmatprep.subr.mxu0 0.0
        %992 = vmatpush1.xpose.msra.mxu0 %v989
        %993 = vmatprep.subr.mxu0 0.0
        %994 = vmatpush1.xpose.msra.mxu0 0.0
        %995 = vmatprep.subr.mxu0 0.0
        %996 = vmatpush1.xpose.msra.mxu0 0.0
        %997 = vmatprep.subr.mxu0 0.0
        %998 = vmatpush1.xpose.msra.mxu0 0.0
        %999 = vmatprep.subr.mxu0 0.0
        %1000 = vmatpush1.xpose.msra.mxu0 0.0
        %1001 = vmatprep.subr.mxu0 0.0
        %1002 = vmatpush1.xpose.msra.mxu0 0.0
        %1003 = vmatprep.subr.mxu0 0.0
        %1004 = vmatpush1.xpose.msra.mxu0 0.0
        %1005 = vmatprep.subr.mxu0 0.0
        %1006 = vmatpush1.xpose.msra.mxu0 0.0
        %1007 = vmatprep.subr.mxu0 0.0
        %1008 = vmatpush1.xpose.msra.mxu0 0.0
        %1009 = vmatprep.subr.mxu0 0.0
        %1010 = vmatpush1.xpose.msra.mxu0 0.0
        %1011 = vmatprep.subr.mxu0 0.0
        %1012 = vmatpush1.xpose.msra.mxu0 0.0
        %1013 = vmatprep.subr.mxu0 0.0
        %1014 = vmatpush1.xpose.msra.mxu0 0.0
        %1015 = vmatprep.subr.mxu0 0.0
        %1016 = vmatpush1.xpose.msra.mxu0 0.0
        %1017 = vmatprep.subr.mxu0 0.0
        %1018 = vmatpush1.xpose.msra.mxu0 0.0
        %1019 = vmatprep.subr.mxu0 0.0
        %1020 = vmatpush1.xpose.msra.mxu0 0.0
        %1021 = vmatprep.subr.mxu0 0.0
        %1022 = vmatpush1.xpose.msra.mxu0 0.0
        %1023 = vmatprep.subr.mxu0 0.0
        %1024 = vmatpush1.xpose.msra.mxu0 0.0
        %1025 = vmatprep.subr.mxu0 0.0
        %1026 = vmatpush1.xpose.msra.mxu0 0.0
        %1027 = vmatprep.subr.mxu0 0.0
        %1028 = vmatpush1.xpose.msra.mxu0 0.0
        %1029 = vmatprep.subr.mxu0 0.0
        %1030 = vmatpush1.xpose.msra.mxu0 0.0
        %1031 = vmatprep.subr.mxu0 0.0
        %1032 = vmatpush1.xpose.msra.mxu0 0.0
        %1033 = vmatprep.subr.mxu0 0.0
        %1034 = vmatpush1.xpose.msra.mxu0 0.0
        %1035 = vmatprep.subr.mxu0 0.0
        %1036 = vmatpush1.xpose.msra.mxu0 0.0
        %1037 = vmatprep.subr.mxu0 0.0
        %1038 = vmatpush1.xpose.msra.mxu0 0.0
        %1039 = vmatprep.subr.mxu0 0.0
        %1040 = vmatpush1.xpose.msra.mxu0 0.0
        %1041 = vmatprep.subr.mxu0 0.0
        %1042 = vmatpush1.xpose.msra.mxu0 0.0
        %1043 = vmatprep.subr.mxu0 0.0
        %1044 = vmatpush1.xpose.msra.mxu0 0.0
        %1045 = vmatprep.subr.mxu0 0.0
        %1046 = vmatpush1.xpose.msra.mxu0 0.0
        %1047 = vmatprep.subr.mxu0 0.0
        %1048 = vmatpush1.xpose.msra.mxu0 0.0
        %1049 = vmatprep.subr.mxu0 0.0
        %1050 = vmatpush1.xpose.msra.mxu0 0.0
        %1051 = vmatprep.subr.mxu0 0.0
        %1052 = vmatpush1.xpose.msra.mxu0 0.0
        %1053 = vmatprep.subr.mxu0 0.0
        %1054 = vmatpush1.xpose.msra.mxu0 0.0
        %1055 = vmatprep.mubr.f32.mxu0 0.0
        %1056 = vmatmul.mubr.f32.gmra.mrb[0].mxu0 %v987
        %v1057 = vpop.f32.mrb[0].mxu0
        %v1058 = vadd.f32 0.0, %v1057
        %v1059 = vpop.f32.mrb[0].mxu0
        %1060 = vdwg.mxu0
        %v1061 = vsel %vm490, %v1058, -inf
        %1062 = vmax.xlane.f32.xlu0 %v1061
        %v1063 = vpop.xlane.xlu0 %1062
        %v1064 = vsub.f32 %v1058, %v1063
        %v1065 = vmul.f32 %v1064, 1.442695
        %v1066 = vpow.pop %v1065
        %v1067 = vsel %vm490, %v1066, 0.0
        %1068 = vadd.xlane.f32.xlu0 %v1067
        %v1069 = vpop.xlane.xlu0 %1068
        %v1070 = vrcp.pop %v1069
        %v1071 = vmul.f32 %v1066, %v1070
        %1072 = vrot.lane.b32.xlu0 %v483, 40
        %v1073 = vpop.permute.xlu0 %1072
        %v1076 = vsel %vm490, %v1071, 0
        %1078 = vmatprep.subr.mxu0 0.0
        %1079 = vmatpush1.msra.mxu0 %v1073
        %1080 = vmatprep.subr.mxu0 0.0
        %1081 = vmatpush1.msra.mxu0 0.0
        %1082 = vmatprep.subr.mxu0 0.0
        %1083 = vmatpush1.msra.mxu0 0.0
        %1084 = vmatprep.subr.mxu0 0.0
        %1085 = vmatpush1.msra.mxu0 0.0
        %1086 = vmatprep.subr.mxu0 0.0
        %1087 = vmatpush1.msra.mxu0 0.0
        %1088 = vmatprep.subr.mxu0 0.0
        %1089 = vmatpush1.msra.mxu0 0.0
        %1090 = vmatprep.subr.mxu0 0.0
        %1091 = vmatpush1.msra.mxu0 0.0
        %1092 = vmatprep.subr.mxu0 0.0
        %1093 = vmatpush1.msra.mxu0 0.0
        %1094 = vmatprep.subr.mxu0 0.0
        %1095 = vmatpush1.msra.mxu0 0.0
        %1096 = vmatprep.subr.mxu0 0.0
        %1097 = vmatpush1.msra.mxu0 0.0
        %1098 = vmatprep.subr.mxu0 0.0
        %1099 = vmatpush1.msra.mxu0 0.0
        %1100 = vmatprep.subr.mxu0 0.0
        %1101 = vmatpush1.msra.mxu0 0.0
        %1102 = vmatprep.subr.mxu0 0.0
        %1103 = vmatpush1.msra.mxu0 0.0
        %1104 = vmatprep.subr.mxu0 0.0
        %1105 = vmatpush1.msra.mxu0 0.0
        %1106 = vmatprep.subr.mxu0 0.0
        %1107 = vmatpush1.msra.mxu0 0.0
        %1108 = vmatprep.subr.mxu0 0.0
        %1109 = vmatpush1.msra.mxu0 0.0
        %1110 = vmatprep.subr.mxu0 0.0
        %1111 = vmatpush1.msra.mxu0 0.0
        %1112 = vmatprep.subr.mxu0 0.0
        %1113 = vmatpush1.msra.mxu0 0.0
        %1114 = vmatprep.subr.mxu0 0.0
        %1115 = vmatpush1.msra.mxu0 0.0
        %1116 = vmatprep.subr.mxu0 0.0
        %1117 = vmatpush1.msra.mxu0 0.0
        %1118 = vmatprep.subr.mxu0 0.0
        %1119 = vmatpush1.msra.mxu0 0.0
        %1120 = vmatprep.subr.mxu0 0.0
        %1121 = vmatpush1.msra.mxu0 0.0
        %1122 = vmatprep.subr.mxu0 0.0
        %1123 = vmatpush1.msra.mxu0 0.0
        %1124 = vmatprep.subr.mxu0 0.0
        %1125 = vmatpush1.msra.mxu0 0.0
        %1126 = vmatprep.subr.mxu0 0.0
        %1127 = vmatpush1.msra.mxu0 0.0
        %1128 = vmatprep.subr.mxu0 0.0
        %1129 = vmatpush1.msra.mxu0 0.0
        %1130 = vmatprep.subr.mxu0 0.0
        %1131 = vmatpush1.msra.mxu0 0.0
        %1132 = vmatprep.subr.mxu0 0.0
        %1133 = vmatpush1.msra.mxu0 0.0
        %1134 = vmatprep.subr.mxu0 0.0
        %1135 = vmatpush1.msra.mxu0 0.0
        %1136 = vmatprep.subr.mxu0 0.0
        %1137 = vmatpush1.msra.mxu0 0.0
        %1138 = vmatprep.subr.mxu0 0.0
        %1139 = vmatpush1.msra.mxu0 0.0
        %1140 = vmatprep.subr.mxu0 0.0
        %1141 = vmatpush1.msra.mxu0 0.0
        %1142 = vmatprep.mubr.f32.mxu0 0.0
        %1143 = vmatmul.mubr.f32.gmra.mrb[0].mxu0 %v1076
        %v1144 = vpop.f32.mrb[0].mxu0
        %v1145 = vadd.f32 0.0, %v1144
        %v1146 = vpop.f32.mrb[0].mxu0
        %1147 = vdwg.mxu0
        %1149 = vrot.lane.b32.xlu0 %v815, 8
        %v1150 = vpop.permute.xlu0 %1149
        %1153 = vrot.lane.b32.xlu0 %v980, 16
        %v1154 = vpop.permute.xlu0 %1153
        %1157 = vrot.lane.b32.xlu0 %v1145, 24
        %v1158 = vpop.permute.xlu0 %1157
        %v1160 = vsel %vm490, %v650, %v1150
        %vm1161 = vcmask 130048
        %v1162 = vsel %vm1161, %v1160, %v1154
        %vm1163 = vcmask 195584
        %v1164 = vsel %vm1163, %v1162, %v1158
        %v1166 = vlaneseq
        %v1167 = vshrl.u32 %v1166, 7
        %v1168 = vsub.s32 0, %v1167
        %v1169 = vrot.slane %v411, %v1168
        %v1172 = vsel %vm412, %v1164, 0
        %1174 = vmatprep.subr.mxu0 0.0
        %1175 = vmatpush1.msra.mxu0 %v407
        %1176 = vmatprep.subr.mxu0 0.0
        %1177 = vmatpush1.msra.mxu0 %v408
        %1178 = vmatprep.subr.mxu0 0.0
        %1179 = vmatpush1.msra.mxu0 %v409
        %1180 = vmatprep.subr.mxu0 0.0
        %1181 = vmatpush1.msra.mxu0 %v410
        %1182 = vmatprep.subr.mxu0 0.0
        %1183 = vmatpush1.msra.mxu0 0.0
        %1184 = vmatprep.subr.mxu0 0.0
        %1185 = vmatpush1.msra.mxu0 0.0
        %1186 = vmatprep.subr.mxu0 0.0
        %1187 = vmatpush1.msra.mxu0 0.0
        %1188 = vmatprep.subr.mxu0 0.0
        %1189 = vmatpush1.msra.mxu0 0.0
        %1190 = vmatprep.subr.mxu0 0.0
        %1191 = vmatpush1.msra.mxu0 0.0
        %1192 = vmatprep.subr.mxu0 0.0
        %1193 = vmatpush1.msra.mxu0 0.0
        %1194 = vmatprep.subr.mxu0 0.0
        %1195 = vmatpush1.msra.mxu0 0.0
        %1196 = vmatprep.subr.mxu0 0.0
        %1197 = vmatpush1.msra.mxu0 0.0
        %1198 = vmatprep.subr.mxu0 0.0
        %1199 = vmatpush1.msra.mxu0 0.0
        %1200 = vmatprep.subr.mxu0 0.0
        %1201 = vmatpush1.msra.mxu0 0.0
        %1202 = vmatprep.subr.mxu0 0.0
        %1203 = vmatpush1.msra.mxu0 0.0
        %1204 = vmatprep.subr.mxu0 0.0
        %1205 = vmatpush1.msra.mxu0 0.0
        %1206 = vmatprep.subr.mxu0 0.0
        %1207 = vmatpush1.msra.mxu0 0.0
        %1208 = vmatprep.subr.mxu0 0.0
        %1209 = vmatpush1.msra.mxu0 0.0
        %1210 = vmatprep.subr.mxu0 0.0
        %1211 = vmatpush1.msra.mxu0 0.0
        %1212 = vmatprep.subr.mxu0 0.0
        %1213 = vmatpush1.msra.mxu0 0.0
        %1214 = vmatprep.subr.mxu0 0.0
        %1215 = vmatpush1.msra.mxu0 0.0
        %1216 = vmatprep.subr.mxu0 0.0
        %1217 = vmatpush1.msra.mxu0 0.0
        %1218 = vmatprep.subr.mxu0 0.0
        %1219 = vmatpush1.msra.mxu0 0.0
        %1220 = vmatprep.subr.mxu0 0.0
        %1221 = vmatpush1.msra.mxu0 0.0
        %1222 = vmatprep.subr.mxu0 0.0
        %1223 = vmatpush1.msra.mxu0 0.0
        %1224 = vmatprep.subr.mxu0 0.0
        %1225 = vmatpush1.msra.mxu0 0.0
        %1226 = vmatprep.subr.mxu0 0.0
        %1227 = vmatpush1.msra.mxu0 0.0
        %1228 = vmatprep.subr.mxu0 0.0
        %1229 = vmatpush1.msra.mxu0 0.0
        %1230 = vmatprep.subr.mxu0 0.0
        %1231 = vmatpush1.msra.mxu0 0.0
        %1232 = vmatprep.subr.mxu0 0.0
        %1233 = vmatpush1.msra.mxu0 0.0
        %1234 = vmatprep.subr.mxu0 0.0
        %1235 = vmatpush1.msra.mxu0 0.0
        %1236 = vmatprep.subr.mxu0 0.0
        %1237 = vmatpush1.msra.mxu0 0.0
        %1238 = vmatprep.mubr.f32.mxu0 0.0
        %1239 = vmatmul.mubr.f32.gmra.mrb[0].mxu0 %v1172
        %v1240 = vpop.f32.mrb[0].mxu0
        %v1241 = vadd.f32 %v1169, %v1240
        %v1242 = vpop.f32.mrb[0].mxu0
        %1243 = vdwg.mxu0
        %v1244 = vadd.f32 %v1241, %v399
        %v1245 = vsel %vm412, %v1244, 0.0
        %1246 = vadd.xlane.f32.xlu0 %v1245
        %v1247 = vpop.xlane.xlu0 %1246
        %v1248 = vrcp.pop 32.0
        %v1249 = vmul.f32 %v1247, %v1248
        %v1250 = vsub.f32 %v1244, %v1249
        %v1251 = vmul.f32 %v1250, %v1250
        %v1252 = vsel %vm412, %v1251, 0.0
        %1253 = vadd.xlane.f32.xlu0 %v1252
        %v1254 = vpop.xlane.xlu0 %1253
        %v1255 = vmul.f32 %v1254, %v1248
        %v1256 = vadd.f32 %v1255, 1e-05
        %v1257 = vrsqrt.pop %v1256
        %v1258 = vmul.f32 %v1250, %v1257
        %v1260 = vlaneseq
        %v1261 = vshrl.u32 %v1260, 7
        %v1262 = vsub.s32 0, %v1261
        %v1263 = vrot.slane %v401, %v1262
        %v1265 = vmul.f32 %v1258, %v1263
        %v1267 = vlaneseq
        %v1268 = vshrl.u32 %v1267, 7
        %v1269 = vsub.s32 0, %v1268
        %v1270 = vrot.slane %v402, %v1269
        %v1272 = vadd.f32 %v1265, %v1270
        %v1274 = vsel %vm412, %v1272, 0
        %1276 = vmatprep.subr.mxu0 0.0
        %1277 = vmatpush1.msra.mxu0 %v403
        %1278 = vmatprep.subr.mxu0 0.0
        %1279 = vmatpush1.msra.mxu0 %v404
        %1280 = vmatprep.subr.mxu0 0.0
        %1281 = vmatpush1.msra.mxu0 %v405
        %1282 = vmatprep.subr.mxu0 0.0
        %1283 = vmatpush1.msra.mxu0 %v406
        %1284 = vmatprep.subr.mxu0 0.0
        %1285 = vmatpush1.msra.mxu0 0.0
        %1286 = vmatprep.subr.mxu0 0.0
        %1287 = vmatpush1.msra.mxu0 0.0
        %1288 = vmatprep.subr.mxu0 0.0
        %1289 = vmatpush1.msra.mxu0 0.0
        %1290 = vmatprep.subr.mxu0 0.0
        %1291 = vmatpush1.msra.mxu0 0.0
        %1292 = vmatprep.subr.mxu0 0.0
        %1293 = vmatpush1.msra.mxu0 0.0
        %1294 = vmatprep.subr.mxu0 0.0
        %1295 = vmatpush1.msra.mxu0 0.0
        %1296 = vmatprep.subr.mxu0 0.0
        %1297 = vmatpush1.msra.mxu0 0.0
        %1298 = vmatprep.subr.mxu0 0.0
        %1299 = vmatpush1.msra.mxu0 0.0
        %1300 = vmatprep.subr.mxu0 0.0
        %1301 = vmatpush1.msra.mxu0 0.0
        %1302 = vmatprep.subr.mxu0 0.0
        %1303 = vmatpush1.msra.mxu0 0.0
        %1304 = vmatprep.subr.mxu0 0.0
        %1305 = vmatpush1.msra.mxu0 0.0
        %1306 = vmatprep.subr.mxu0 0.0
        %1307 = vmatpush1.msra.mxu0 0.0
        %1308 = vmatprep.subr.mxu0 0.0
        %1309 = vmatpush1.msra.mxu0 0.0
        %1310 = vmatprep.subr.mxu0 0.0
        %1311 = vmatpush1.msra.mxu0 0.0
        %1312 = vmatprep.subr.mxu0 0.0
        %1313 = vmatpush1.msra.mxu0 0.0
        %1314 = vmatprep.subr.mxu0 0.0
        %1315 = vmatpush1.msra.mxu0 0.0
        %1316 = vmatprep.subr.mxu0 0.0
        %1317 = vmatpush1.msra.mxu0 0.0
        %1318 = vmatprep.subr.mxu0 0.0
        %1319 = vmatpush1.msra.mxu0 0.0
        %1320 = vmatprep.subr.mxu0 0.0
        %1321 = vmatpush1.msra.mxu0 0.0
        %1322 = vmatprep.subr.mxu0 0.0
        %1323 = vmatpush1.msra.mxu0 0.0
        %1324 = vmatprep.subr.mxu0 0.0
        %1325 = vmatpush1.msra.mxu0 0.0
        %1326 = vmatprep.subr.mxu0 0.0
        %1327 = vmatpush1.msra.mxu0 0.0
        %1328 = vmatprep.subr.mxu0 0.0
        %1329 = vmatpush1.msra.mxu0 0.0
        %1330 = vmatprep.subr.mxu0 0.0
        %1331 = vmatpush1.msra.mxu0 0.0
        %1332 = vmatprep.subr.mxu0 0.0
        %1333 = vmatpush1.msra.mxu0 0.0
        %1334 = vmatprep.subr.mxu0 0.0
        %1335 = vmatpush1.msra.mxu0 0.0
        %1336 = vmatprep.subr.mxu0 0.0
        %1337 = vmatpush1.msra.mxu0 0.0
        %1338 = vmatprep.subr.mxu0 0.0
        %1339 = vmatpush1.msra.mxu0 0.0
        %1340 = vmatprep.mubr.f32.mxu0 0.0
        %1341 = vmatmul.mubr.f32.gmra.mrb[0].mxu0 %v1274
        %v1342 = vpop.f32.mrb[0].mxu0
        %v1343 = vadd.f32 0.0, %v1342
        %v1344 = vpop.f32.mrb[0].mxu0
        %1345 = vdwg.mxu0
        %1350 = vrot.lane.b32.xlu0 %v403, 96
        %v1351 = vpop.permute.xlu0 %1350
        %1352 = vrot.lane.b32.xlu0 %v404, 96
        %v1353 = vpop.permute.xlu0 %1352
        %1354 = vrot.lane.b32.xlu0 %v405, 96
        %v1355 = vpop.permute.xlu0 %1354
        %1356 = vrot.lane.b32.xlu0 %v406, 96
        %v1357 = vpop.permute.xlu0 %1356
        %v1363 = vsel %vm412, %v400, 0
        %1365 = vmatprep.subr.mxu0 0.0
        %1366 = vmatpush1.msra.mxu0 %v1351
        %1367 = vmatprep.subr.mxu0 0.0
        %1368 = vmatpush1.msra.mxu0 %v1353
        %1369 = vmatprep.subr.mxu0 0.0
        %1370 = vmatpush1.msra.mxu0 %v1355
        %1371 = vmatprep.subr.mxu0 0.0
        %1372 = vmatpush1.msra.mxu0 %v1357
        %1373 = vmatprep.subr.mxu0 0.0
        %1374 = vmatpush1.msra.mxu0 0.0
        %1375 = vmatprep.subr.mxu0 0.0
        %1376 = vmatpush1.msra.mxu0 0.0
        %1377 = vmatprep.subr.mxu0 0.0
        %1378 = vmatpush1.msra.mxu0 0.0
        %1379 = vmatprep.subr.mxu0 0.0
        %1380 = vmatpush1.msra.mxu0 0.0
        %1381 = vmatprep.subr.mxu0 0.0
        %1382 = vmatpush1.msra.mxu0 0.0
        %1383 = vmatprep.subr.mxu0 0.0
        %1384 = vmatpush1.msra.mxu0 0.0
        %1385 = vmatprep.subr.mxu0 0.0
        %1386 = vmatpush1.msra.mxu0 0.0
        %1387 = vmatprep.subr.mxu0 0.0
        %1388 = vmatpush1.msra.mxu0 0.0
        %1389 = vmatprep.subr.mxu0 0.0
        %1390 = vmatpush1.msra.mxu0 0.0
        %1391 = vmatprep.subr.mxu0 0.0
        %1392 = vmatpush1.msra.mxu0 0.0
        %1393 = vmatprep.subr.mxu0 0.0
        %1394 = vmatpush1.msra.mxu0 0.0
        %1395 = vmatprep.subr.mxu0 0.0
        %1396 = vmatpush1.msra.mxu0 0.0
        %1397 = vmatprep.subr.mxu0 0.0
        %1398 = vmatpush1.msra.mxu0 0.0
        %1399 = vmatprep.subr.mxu0 0.0
        %1400 = vmatpush1.msra.mxu0 0.0
        %1401 = vmatprep.subr.mxu0 0.0
        %1402 = vmatpush1.msra.mxu0 0.0
        %1403 = vmatprep.subr.mxu0 0.0
        %1404 = vmatpush1.msra.mxu0 0.0
        %1405 = vmatprep.subr.mxu0 0.0
        %1406 = vmatpush1.msra.mxu0 0.0
        %1407 = vmatprep.subr.mxu0 0.0
        %1408 = vmatpush1.msra.mxu0 0.0
        %1409 = vmatprep.subr.mxu0 0.0
        %1410 = vmatpush1.msra.mxu0 0.0
        %1411 = vmatprep.subr.mxu0 0.0
        %1412 = vmatpush1.msra.mxu0 0.0
        %1413 = vmatprep.subr.mxu0 0.0
        %1414 = vmatpush1.msra.mxu0 0.0
        %1415 = vmatprep.subr.mxu0 0.0
        %1416 = vmatpush1.msra.mxu0 0.0
        %1417 = vmatprep.subr.mxu0 0.0
        %1418 = vmatpush1.msra.mxu0 0.0
        %1419 = vmatprep.subr.mxu0 0.0
        %1420 = vmatpush1.msra.mxu0 0.0
        %1421 = vmatprep.subr.mxu0 0.0
        %1422 = vmatpush1.msra.mxu0 0.0
        %1423 = vmatprep.subr.mxu0 0.0
        %1424 = vmatpush1.msra.mxu0 0.0
        %1425 = vmatprep.subr.mxu0 0.0
        %1426 = vmatpush1.msra.mxu0 0.0
        %1427 = vmatprep.subr.mxu0 0.0
        %1428 = vmatpush1.msra.mxu0 0.0
        %1429 = vmatprep.mubr.f32.mxu0 0.0
        %1430 = vmatmul.mubr.f32.gmra.mrb[0].mxu0 %v1363
        %v1431 = vpop.f32.mrb[0].mxu0
        %v1432 = vadd.f32 0.0, %v1431
        %v1433 = vpop.f32.mrb[0].mxu0
        %1434 = vdwg.mxu0
        %v1435 = vmul.f32 %v1343, 0.35355338
        %v1437 = vsel %vm490, %v1435, 0
        %v1440 = vsel %vm490, %v1432, 0
        %1442 = vmatprep.subr.mxu0 0.0
        %1443 = vmatpush1.xpose.msra.mxu0 %v1440
        %1444 = vmatprep.subr.mxu0 0.0
        %1445 = vmatpush1.xpose.msra.mxu0 0.0
        %1446 = vmatprep.subr.mxu0 0.0
        %1447 = vmatpush1.xpose.msra.mxu0 0.0
        %1448 = vmatprep.subr.mxu0 0.0
        %1449 = vmatpush1.xpose.msra.mxu0 0.0
        %1450 = vmatprep.subr.mxu0 0.0
        %1451 = vmatpush1.xpose.msra.mxu0 0.0
        %1452 = vmatprep.subr.mxu0 0.0
        %1453 = vmatpush1.xpose.msra.mxu0 0.0
        %1454 = vmatprep.subr.mxu0 0.0
        %1455 = vmatpush1.xpose.msra.mxu0 0.0
        %1456 = vmatprep.subr.mxu0 0.0
        %1457 = vmatpush1.xpose.msra.mxu0 0.0
        %1458 = vmatprep.subr.mxu0 0.0
        %1459 = vmatpush1.xpose.msra.mxu0 0.0
        %1460 = vmatprep.subr.mxu0 0.0
        %1461 = vmatpush1.xpose.msra.mxu0 0.0
        %1462 = vmatprep.subr.mxu0 0.0
        %1463 = vmatpush1.xpose.msra.mxu0 0.0
        %1464 = vmatprep.subr.mxu0 0.0
        %1465 = vmatpush1.xpose.msra.mxu0 0.0
        %1466 = vmatprep.subr.mxu0 0.0
        %1467 = vmatpush1.xpose.msra.mxu0 0.0
        %1468 = vmatprep.subr.mxu0 0.0
        %1469 = vmatpush1.xpose.msra.mxu0 0.0
        %1470 = vmatprep.subr.mxu0 0.0
        %1471 = vmatpush1.xpose.msra.mxu0 0.0
        %1472 = vmatprep.subr.mxu0 0.0
        %1473 = vmatpush1.xpose.msra.mxu0 0.0
        %1474 = vmatprep.subr.mxu0 0.0
        %1475 = vmatpush1.xpose.msra.mxu0 0.0
        %1476 = vmatprep.subr.mxu0 0.0
        %1477 = vmatpush1.xpose.msra.mxu0 0.0
        %1478 = vmatprep.subr.mxu0 0.0
        %1479 = vmatpush1.xpose.msra.mxu0 0.0
        %1480 = vmatprep.subr.mxu0 0.0
        %1481 = vmatpush1.xpose.msra.mxu0 0.0
        %1482 = vmatprep.subr.mxu0 0.0
        %1483 = vmatpush1.xpose.msra.mxu0 0.0
        %1484 = vmatprep.subr.mxu0 0.0
        %1485 = vmatpush1.xpose.msra.mxu0 0.0
        %1486 = vmatprep.subr.mxu0 0.0
        %1487 = vmatpush1.xpose.msra.mxu0 0.0
        %1488 = vmatprep.subr.mxu0 0.0
        %1489 = vmatpush1.xpose.msra.mxu0 0.0
        %1490 = vmatprep.subr.mxu0 0.0
        %1491 = vmatpush1.xpose.msra.mxu0 0.0
        %1492 = vmatprep.subr.mxu0 0.0
        %1493 = vmatpush1.xpose.msra.mxu0 0.0
        %1494 = vmatprep.subr.mxu0 0.0
        %1495 = vmatpush1.xpose.msra.mxu0 0.0
        %1496 = vmatprep.subr.mxu0 0.0
        %1497 = vmatpush1.xpose.msra.mxu0 0.0
        %1498 = vmatprep.subr.mxu0 0.0
        %1499 = vmatpush1.xpose.msra.mxu0 0.0
        %1500 = vmatprep.subr.mxu0 0.0
        %1501 = vmatpush1.xpose.msra.mxu0 0.0
        %1502 = vmatprep.subr.mxu0 0.0
        %1503 = vmatpush1.xpose.msra.mxu0 0.0
        %1504 = vmatprep.subr.mxu0 0.0
        %1505 = vmatpush1.xpose.msra.mxu0 0.0
        %1506 = vmatprep.mubr.f32.mxu0 0.0
        %1507 = vmatmul.mubr.f32.gmra.mrb[0].mxu0 %v1437
        %v1508 = vpop.f32.mrb[0].mxu0
        %v1509 = vadd.f32 0.0, %v1508
        %v1510 = vpop.f32.mrb[0].mxu0
        %1511 = vdwg.mxu0
        %v1512 = vsel %vm490, %v1509, -inf
        %1513 = vmax.xlane.f32.xlu0 %v1512
        %v1514 = vpop.xlane.xlu0 %1513
        %v1515 = vsub.f32 %v1509, %v1514
        %v1516 = vmul.f32 %v1515, 1.442695
        %v1517 = vpow.pop %v1516
        %v1518 = vsel %vm490, %v1517, 0.0
        %1519 = vadd.xlane.f32.xlu0 %v1518
        %v1520 = vpop.xlane.xlu0 %1519
        %v1521 = vrcp.pop %v1520
        %v1522 = vmul.f32 %v1517, %v1521
        %1523 = vrot.lane.b32.xlu0 %v1432, 96
        %v1524 = vpop.permute.xlu0 %1523
        %v1527 = vsel %vm490, %v1522, 0
        %1529 = vmatprep.subr.mxu0 0.0
        %1530 = vmatpush1.msra.mxu0 %v1524
        %1531 = vmatprep.subr.mxu0 0.0
        %1532 = vmatpush1.msra.mxu0 0.0
        %1533 = vmatprep.subr.mxu0 0.0
        %1534 = vmatpush1.msra.mxu0 0.0
        %1535 = vmatprep.subr.mxu0 0.0
        %1536 = vmatpush1.msra.mxu0 0.0
        %1537 = vmatprep.subr.mxu0 0.0
        %1538 = vmatpush1.msra.mxu0 0.0
        %1539 = vmatprep.subr.mxu0 0.0
        %1540 = vmatpush1.msra.mxu0 0.0
        %1541 = vmatprep.subr.mxu0 0.0
        %1542 = vmatpush1.msra.mxu0 0.0
        %1543 = vmatprep.subr.mxu0 0.0
        %1544 = vmatpush1.msra.mxu0 0.0
        %1545 = vmatprep.subr.mxu0 0.0
        %1546 = vmatpush1.msra.mxu0 0.0
        %1547 = vmatprep.subr.mxu0 0.0
        %1548 = vmatpush1.msra.mxu0 0.0
        %1549 = vmatprep.subr.mxu0 0.0
        %1550 = vmatpush1.msra.mxu0 0.0
        %1551 = vmatprep.subr.mxu0 0.0
        %1552 = vmatpush1.msra.mxu0 0.0
        %1553 = vmatprep.subr.mxu0 0.0
        %1554 = vmatpush1.msra.mxu0 0.0
        %1555 = vmatprep.subr.mxu0 0.0
        %1556 = vmatpush1.msra.mxu0 0.0
        %1557 = vmatprep.subr.mxu0 0.0
        %1558 = vmatpush1.msra.mxu0 0.0
        %1559 = vmatprep.subr.mxu0 0.0
        %1560 = vmatpush1.msra.mxu0 0.0
        %1561 = vmatprep.subr.mxu0 0.0
        %1562 = vmatpush1.msra.mxu0 0.0
        %1563 = vmatprep.subr.mxu0 0.0
        %1564 = vmatpush1.msra.mxu0 0.0
        %1565 = vmatprep.subr.mxu0 0.0
        %1566 = vmatpush1.msra.mxu0 0.0
        %1567 = vmatprep.subr.mxu0 0.0
        %1568 = vmatpush1.msra.mxu0 0.0
        %1569 = vmatprep.subr.mxu0 0.0
        %1570 = vmatpush1.msra.mxu0 0.0
        %1571 = vmatprep.subr.mxu0 0.0
        %1572 = vmatpush1.msra.mxu0 0.0
        %1573 = vmatprep.subr.mxu0 0.0
        %1574 = vmatpush1.msra.mxu0 0.0
        %1575 = vmatprep.subr.mxu0 0.0
        %1576 = vmatpush1.msra.mxu0 0.0
        %1577 = vmatprep.subr.mxu0 0.0
        %1578 = vmatpush1.msra.mxu0 0.0
        %1579 = vmatprep.subr.mxu0 0.0
        %1580 = vmatpush1.msra.mxu0 0.0
        %1581 = vmatprep.subr.mxu0 0.0
        %1582 = vmatpush1.msra.mxu0 0.0
        %1583 = vmatprep.subr.mxu0 0.0
        %1584 = vmatpush1.msra.mxu0 0.0
        %1585 = vmatprep.subr.mxu0 0.0
        %1586 = vmatpush1.msra.mxu0 0.0
        %1587 = vmatprep.subr.mxu0 0.0
        %1588 = vmatpush1.msra.mxu0 0.0
        %1589 = vmatprep.subr.mxu0 0.0
        %1590 = vmatpush1.msra.mxu0 0.0
        %1591 = vmatprep.subr.mxu0 0.0
        %1592 = vmatpush1.msra.mxu0 0.0
        %1593 = vmatprep.mubr.f32.mxu0 0.0
        %1594 = vmatmul.mubr.f32.gmra.mrb[0].mxu0 %v1527
        %v1595 = vpop.f32.mrb[0].mxu0
        %v1596 = vadd.f32 0.0, %v1595
        %v1597 = vpop.f32.mrb[0].mxu0
        %1598 = vdwg.mxu0
        %1599 = vrot.lane.b32.xlu0 %v1435, 120
        %v1600 = vpop.permute.xlu0 %1599
        %1601 = vrot.lane.b32.xlu0 %v1432, 120
        %v1602 = vpop.permute.xlu0 %1601
        %v1603 = vsel %vm490, %v1600, 0
        %v1605 = vsel %vm490, %v1602, 0
        %1607 = vmatprep.subr.mxu0 0.0
        %1608 = vmatpush1.xpose.msra.mxu0 %v1605
        %1609 = vmatprep.subr.mxu0 0.0
        %1610 = vmatpush1.xpose.msra.mxu0 0.0
        %1611 = vmatprep.subr.mxu0 0.0
        %1612 = vmatpush1.xpose.msra.mxu0 0.0
        %1613 = vmatprep.subr.mxu0 0.0
        %1614 = vmatpush1.xpose.msra.mxu0 0.0
        %1615 = vmatprep.subr.mxu0 0.0
        %1616 = vmatpush1.xpose.msra.mxu0 0.0
        %1617 = vmatprep.subr.mxu0 0.0
        %1618 = vmatpush1.xpose.msra.mxu0 0.0
        %1619 = vmatprep.subr.mxu0 0.0
        %1620 = vmatpush1.xpose.msra.mxu0 0.0
        %1621 = vmatprep.subr.mxu0 0.0
        %1622 = vmatpush1.xpose.msra.mxu0 0.0
        %1623 = vmatprep.subr.mxu0 0.0
        %1624 = vmatpush1.xpose.msra.mxu0 0.0
        %1625 = vmatprep.subr.mxu0 0.0
        %1626 = vmatpush1.xpose.msra.mxu0 0.0
        %1627 = vmatprep.subr.mxu0 0.0
        %1628 = vmatpush1.xpose.msra.mxu0 0.0
        %1629 = vmatprep.subr.mxu0 0.0
        %1630 = vmatpush1.xpose.msra.mxu0 0.0
        %1631 = vmatprep.subr.mxu0 0.0
        %1632 = vmatpush1.xpose.msra.mxu0 0.0
        %1633 = vmatprep.subr.mxu0 0.0
        %1634 = vmatpush1.xpose.msra.mxu0 0.0
        %1635 = vmatprep.subr.mxu0 0.0
        %1636 = vmatpush1.xpose.msra.mxu0 0.0
        %1637 = vmatprep.subr.mxu0 0.0
        %1638 = vmatpush1.xpose.msra.mxu0 0.0
        %1639 = vmatprep.subr.mxu0 0.0
        %1640 = vmatpush1.xpose.msra.mxu0 0.0
        %1641 = vmatprep.subr.mxu0 0.0
        %1642 = vmatpush1.xpose.msra.mxu0 0.0
        %1643 = vmatprep.subr.mxu0 0.0
        %1644 = vmatpush1.xpose.msra.mxu0 0.0
        %1645 = vmatprep.subr.mxu0 0.0
        %1646 = vmatpush1.xpose.msra.mxu0 0.0
        %1647 = vmatprep.subr.mxu0 0.0
        %1648 = vmatpush1.xpose.msra.mxu0 0.0
        %1649 = vmatprep.subr.mxu0 0.0
        %1650 = vmatpush1.xpose.msra.mxu0 0.0
        %1651 = vmatprep.subr.mxu0 0.0
        %1652 = vmatpush1.xpose.msra.mxu0 0.0
        %1653 = vmatprep.subr.mxu0 0.0
        %1654 = vmatpush1.xpose.msra.mxu0 0.0
        %1655 = vmatprep.subr.mxu0 0.0
        %1656 = vmatpush1.xpose.msra.mxu0 0.0
        %1657 = vmatprep.subr.mxu0 0.0
        %1658 = vmatpush1.xpose.msra.mxu0 0.0
        %1659 = vmatprep.subr.mxu0 0.0
        %1660 = vmatpush1.xpose.msra.mxu0 0.0
        %1661 = vmatprep.subr.mxu0 0.0
        %1662 = vmatpush1.xpose.msra.mxu0 0.0
        %1663 = vmatprep.subr.mxu0 0.0
        %1664 = vmatpush1.xpose.msra.mxu0 0.0
        %1665 = vmatprep.subr.mxu0 0.0
        %1666 = vmatpush1.xpose.msra.mxu0 0.0
        %1667 = vmatprep.subr.mxu0 0.0
        %1668 = vmatpush1.xpose.msra.mxu0 0.0
        %1669 = vmatprep.subr.mxu0 0.0
        %1670 = vmatpush1.xpose.msra.mxu0 0.0
        %1671 = vmatprep.mubr.f32.mxu0 0.0
        %1672 = vmatmul.mubr.f32.gmra.mrb[0].mxu0 %v1603
        %v1673 = vpop.f32.mrb[0].mxu0
        %v1674 = vadd.f32 0.0, %v1673
        %v1675 = vpop.f32.mrb[0].mxu0
        %1676 = vdwg.mxu0
        %v1677 = vsel %vm490, %v1674, -inf
        %1678 = vmax.xlane.f32.xlu0 %v1677
        %v1679 = vpop.xlane.xlu0 %1678
        %v1680 = vsub.f32 %v1674, %v1679
        %v1681 = vmul.f32 %v1680, 1.442695
        %v1682 = vpow.pop %v1681
        %v1683 = vsel %vm490, %v1682, 0.0
        %1684 = vadd.xlane.f32.xlu0 %v1683
        %v1685 = vpop.xlane.xlu0 %1684
        %v1686 = vrcp.pop %v1685
        %v1687 = vmul.f32 %v1682, %v1686
        %1688 = vrot.lane.b32.xlu0 %v1432, 88
        %v1689 = vpop.permute.xlu0 %1688
        %v1692 = vsel %vm490, %v1687, 0
        %1694 = vmatprep.subr.mxu0 0.0
        %1695 = vmatpush1.msra.mxu0 %v1689
        %1696 = vmatprep.subr.mxu0 0.0
        %1697 = vmatpush1.msra.mxu0 0.0
        %1698 = vmatprep.subr.mxu0 0.0
        %1699 = vmatpush1.msra.mxu0 0.0
        %1700 = vmatprep.subr.mxu0 0.0
        %1701 = vmatpush1.msra.mxu0 0.0
        %1702 = vmatprep.subr.mxu0 0.0
        %1703 = vmatpush1.msra.mxu0 0.0
        %1704 = vmatprep.subr.mxu0 0.0
        %1705 = vmatpush1.msra.mxu0 0.0
        %1706 = vmatprep.subr.mxu0 0.0
        %1707 = vmatpush1.msra.mxu0 0.0
        %1708 = vmatprep.subr.mxu0 0.0
        %1709 = vmatpush1.msra.mxu0 0.0
        %1710 = vmatprep.subr.mxu0 0.0
        %1711 = vmatpush1.msra.mxu0 0.0
        %1712 = vmatprep.subr.mxu0 0.0
        %1713 = vmatpush1.msra.mxu0 0.0
        %1714 = vmatprep.subr.mxu0 0.0
        %1715 = vmatpush1.msra.mxu0 0.0
        %1716 = vmatprep.subr.mxu0 0.0
        %1717 = vmatpush1.msra.mxu0 0.0
        %1718 = vmatprep.subr.mxu0 0.0
        %1719 = vmatpush1.msra.mxu0 0.0
        %1720 = vmatprep.subr.mxu0 0.0
        %1721 = vmatpush1.msra.mxu0 0.0
        %1722 = vmatprep.subr.mxu0 0.0
        %1723 = vmatpush1.msra.mxu0 0.0
        %1724 = vmatprep.subr.mxu0 0.0
        %1725 = vmatpush1.msra.mxu0 0.0
        %1726 = vmatprep.subr.mxu0 0.0
        %1727 = vmatpush1.msra.mxu0 0.0
        %1728 = vmatprep.subr.mxu0 0.0
        %1729 = vmatpush1.msra.mxu0 0.0
        %1730 = vmatprep.subr.mxu0 0.0
        %1731 = vmatpush1.msra.mxu0 0.0
        %1732 = vmatprep.subr.mxu0 0.0
        %1733 = vmatpush1.msra.mxu0 0.0
        %1734 = vmatprep.subr.mxu0 0.0
        %1735 = vmatpush1.msra.mxu0 0.0
        %1736 = vmatprep.subr.mxu0 0.0
        %1737 = vmatpush1.msra.mxu0 0.0
        %1738 = vmatprep.subr.mxu0 0.0
        %1739 = vmatpush1.msra.mxu0 0.0
        %1740 = vmatprep.subr.mxu0 0.0
        %1741 = vmatpush1.msra.mxu0 0.0
        %1742 = vmatprep.subr.mxu0 0.0
        %1743 = vmatpush1.msra.mxu0 0.0
        %1744 = vmatprep.subr.mxu0 0.0
        %1745 = vmatpush1.msra.mxu0 0.0
        %1746 = vmatprep.subr.mxu0 0.0
        %1747 = vmatpush1.msra.mxu0 0.0
        %1748 = vmatprep.subr.mxu0 0.0
        %1749 = vmatpush1.msra.mxu0 0.0
        %1750 = vmatprep.subr.mxu0 0.0
        %1751 = vmatpush1.msra.mxu0 0.0
        %1752 = vmatprep.subr.mxu0 0.0
        %1753 = vmatpush1.msra.mxu0 0.0
        %1754 = vmatprep.subr.mxu0 0.0
        %1755 = vmatpush1.msra.mxu0 0.0
        %1756 = vmatprep.subr.mxu0 0.0
        %1757 = vmatpush1.msra.mxu0 0.0
        %1758 = vmatprep.mubr.f32.mxu0 0.0
        %1759 = vmatmul.mubr.f32.gmra.mrb[0].mxu0 %v1692
        %v1760 = vpop.f32.mrb[0].mxu0
        %v1761 = vadd.f32 0.0, %v1760
        %v1762 = vpop.f32.mrb[0].mxu0
        %1763 = vdwg.mxu0
        %1764 = vrot.lane.b32.xlu0 %v1435, 112
        %v1765 = vpop.permute.xlu0 %1764
        %1766 = vrot.lane.b32.xlu0 %v1432, 112
        %v1767 = vpop.permute.xlu0 %1766
        %v1768 = vsel %vm490, %v1765, 0
        %v1770 = vsel %vm490, %v1767, 0
        %1772 = vmatprep.subr.mxu0 0.0
        %1773 = vmatpush1.xpose.msra.mxu0 %v1770
        %1774 = vmatprep.subr.mxu0 0.0
        %1775 = vmatpush1.xpose.msra.mxu0 0.0
        %1776 = vmatprep.subr.mxu0 0.0
        %1777 = vmatpush1.xpose.msra.mxu0 0.0
        %1778 = vmatprep.subr.mxu0 0.0
        %1779 = vmatpush1.xpose.msra.mxu0 0.0
        %1780 = vmatprep.subr.mxu0 0.0
        %1781 = vmatpush1.xpose.msra.mxu0 0.0
        %1782 = vmatprep.subr.mxu0 0.0
        %1783 = vmatpush1.xpose.msra.mxu0 0.0
        %1784 = vmatprep.subr.mxu0 0.0
        %1785 = vmatpush1.xpose.msra.mxu0 0.0
        %1786 = vmatprep.subr.mxu0 0.0
        %1787 = vmatpush1.xpose.msra.mxu0 0.0
        %1788 = vmatprep.subr.mxu0 0.0
        %1789 = vmatpush1.xpose.msra.mxu0 0.0
        %1790 = vmatprep.subr.mxu0 0.0
        %1791 = vmatpush1.xpose.msra.mxu0 0.0
        %1792 = vmatprep.subr.mxu0 0.0
        %1793 = vmatpush1.xpose.msra.mxu0 0.0
        %1794 = vmatprep.subr.mxu0 0.0
        %1795 = vmatpush1.xpose.msra.mxu0 0.0
        %1796 = vmatprep.subr.mxu0 0.0
        %1797 = vmatpush1.xpose.msra.mxu0 0.0
        %1798 = vmatprep.subr.mxu0 0.0
        %1799 = vmatpush1.xpose.msra.mxu0 0.0
        %1800 = vmatprep.subr.mxu0 0.0
        %1801 = vmatpush1.xpose.msra.mxu0 0.0
        %1802 = vmatprep.subr.mxu0 0.0
        %1803 = vmatpush1.xpose.msra.mxu0 0.0
        %1804 = vmatprep.subr.mxu0 0.0
        %1805 = vmatpush1.xpose.msra.mxu0 0.0
        %1806 = vmatprep.subr.mxu0 0.0
        %1807 = vmatpush1.xpose.msra.mxu0 0.0
        %1808 = vmatprep.subr.mxu0 0.0
        %1809 = vmatpush1.xpose.msra.mxu0 0.0
        %1810 = vmatprep.subr.mxu0 0.0
        %1811 = vmatpush1.xpose.msra.mxu0 0.0
        %1812 = vmatprep.subr.mxu0 0.0
        %1813 = vmatpush1.xpose.msra.mxu0 0.0
        %1814 = vmatprep.subr.mxu0 0.0
        %1815 = vmatpush1.xpose.msra.mxu0 0.0
        %1816 = vmatprep.subr.mxu0 0.0
        %1817 = vmatpush1.xpose.msra.mxu0 0.0
        %1818 = vmatprep.subr.mxu0 0.0
        %1819 = vmatpush1.xpose.msra.mxu0 0.0
        %1820 = vmatprep.subr.mxu0 0.0
        %1821 = vmatpush1.xpose.msra.mxu0 0.0
        %1822 = vmatprep.subr.mxu0 0.0
        %1823 = vmatpush1.xpose.msra.mxu0 0.0
        %1824 = vmatprep.subr.mxu0 0.0
        %1825 = vmatpush1.xpose.msra.mxu0 0.0
        %1826 = vmatprep.subr.mxu0 0.0
        %1827 = vmatpush1.xpose.msra.mxu0 0.0
        %1828 = vmatprep.subr.mxu0 0.0
        %1829 = vmatpush1.xpose.msra.mxu0 0.0
        %1830 = vmatprep.subr.mxu0 0.0
        %1831 = vmatpush1.xpose.msra.mxu0 0.0
        %1832 = vmatprep.subr.mxu0 0.0
        %1833 = vmatpush1.xpose.msra.mxu0 0.0
        %1834 = vmatprep.subr.mxu0 0.0
        %1835 = vmatpush1.xpose.msra.mxu0 0.0
        %1836 = vmatprep.mubr.f32.mxu0 0.0
        %1837 = vmatmul.mubr.f32.gmra.mrb[0].mxu0 %v1768
        %v1838 = vpop.f32.mrb[0].mxu0
        %v1839 = vadd.f32 0.0, %v1838
        %v1840 = vpop.f32.mrb[0].mxu0
        %1841 = vdwg.mxu0
        %v1842 = vsel %vm490, %v1839, -inf
        %1843 = vmax.xlane.f32.xlu0 %v1842
        %v1844 = vpop.xlane.xlu0 %1843
        %v1845 = vsub.f32 %v1839, %v1844
        %v1846 = vmul.f32 %v1845, 1.442695
        %v1847 = vpow.pop %v1846
        %v1848 = vsel %vm490, %v1847, 0.0
        %1849 = vadd.xlane.f32.xlu0 %v1848
        %v1850 = vpop.xlane.xlu0 %1849
        %v1851 = vrcp.pop %v1850
        %v1852 = vmul.f32 %v1847, %v1851
        %1853 = vrot.lane.b32.xlu0 %v1432, 80
        %v1854 = vpop.permute.xlu0 %1853
        %v1857 = vsel %vm490, %v1852, 0
        %1859 = vmatprep.subr.mxu0 0.0
        %1860 = vmatpush1.msra.mxu0 %v1854
        %1861 = vmatprep.subr.mxu0 0.0
        %1862 = vmatpush1.msra.mxu0 0.0
        %1863 = vmatprep.subr.mxu0 0.0
        %1864 = vmatpush1.msra.mxu0 0.0
        %1865 = vmatprep.subr.mxu0 0.0
        %1866 = vmatpush1.msra.mxu0 0.0
        %1867 = vmatprep.subr.mxu0 0.0
        %1868 = vmatpush1.msra.mxu0 0.0
        %1869 = vmatprep.subr.mxu0 0.0
        %1870 = vmatpush1.msra.mxu0 0.0
        %1871 = vmatprep.subr.mxu0 0.0
        %1872 = vmatpush1.msra.mxu0 0.0
        %1873 = vmatprep.subr.mxu0 0.0
        %1874 = vmatpush1.msra.mxu0 0.0
        %1875 = vmatprep.subr.mxu0 0.0
        %1876 = vmatpush1.msra.mxu0 0.0
        %1877 = vmatprep.subr.mxu0 0.0
        %1878 = vmatpush1.msra.mxu0 0.0
        %1879 = vmatprep.subr.mxu0 0.0
        %1880 = vmatpush1.msra.mxu0 0.0
        %1881 = vmatprep.subr.mxu0 0.0
        %1882 = vmatpush1.msra.mxu0 0.0
        %1883 = vmatprep.subr.mxu0 0.0
        %1884 = vmatpush1.msra.mxu0 0.0
        %1885 = vmatprep.subr.mxu0 0.0
        %1886 = vmatpush1.msra.mxu0 0.0
        %1887 = vmatprep.subr.mxu0 0.0
        %1888 = vmatpush1.msra.mxu0 0.0
        %1889 = vmatprep.subr.mxu0 0.0
        %1890 = vmatpush1.msra.mxu0 0.0
        %1891 = vmatprep.subr.mxu0 0.0
        %1892 = vmatpush1.msra.mxu0 0.0
        %1893 = vmatprep.subr.mxu0 0.0
        %1894 = vmatpush1.msra.mxu0 0.0
        %1895 = vmatprep.subr.mxu0 0.0
        %1896 = vmatpush1.msra.mxu0 0.0
        %1897 = vmatprep.subr.mxu0 0.0
        %1898 = vmatpush1.msra.mxu0 0.0
        %1899 = vmatprep.subr.mxu0 0.0
        %1900 = vmatpush1.msra.mxu0 0.0
        %1901 = vmatprep.subr.mxu0 0.0
        %1902 = vmatpush1.msra.mxu0 0.0
        %1903 = vmatprep.subr.mxu0 0.0
        %1904 = vmatpush1.msra.mxu0 0.0
        %1905 = vmatprep.subr.mxu0 0.0
        %1906 = vmatpush1.msra.mxu0 0.0
        %1907 = vmatprep.subr.mxu0 0.0
        %1908 = vmatpush1.msra.mxu0 0.0
        %1909 = vmatprep.subr.mxu0 0.0
        %1910 = vmatpush1.msra.mxu0 0.0
        %1911 = vmatprep.subr.mxu0 0.0
        %1912 = vmatpush1.msra.mxu0 0.0
        %1913 = vmatprep.subr.mxu0 0.0
        %1914 = vmatpush1.msra.mxu0 0.0
        %1915 = vmatprep.subr.mxu0 0.0
        %1916 = vmatpush1.msra.mxu0 0.0
        %1917 = vmatprep.subr.mxu0 0.0
        %1918 = vmatpush1.msra.mxu0 0.0
        %1919 = vmatprep.subr.mxu0 0.0
        %1920 = vmatpush1.msra.mxu0 0.0
        %1921 = vmatprep.subr.mxu0 0.0
        %1922 = vmatpush1.msra.mxu0 0.0
        %1923 = vmatprep.mubr.f32.mxu0 0.0
        %1924 = vmatmul.mubr.f32.gmra.mrb[0].mxu0 %v1857
        %v1925 = vpop.f32.mrb[0].mxu0
        %v1926 = vadd.f32 0.0, %v1925
        %v1927 = vpop.f32.mrb[0].mxu0
        %1928 = vdwg.mxu0
        %1929 = vrot.lane.b32.xlu0 %v1435, 104
        %v1930 = vpop.permute.xlu0 %1929
        %1931 = vrot.lane.b32.xlu0 %v1432, 104
        %v1932 = vpop.permute.xlu0 %1931
        %v1933 = vsel %vm490, %v1930, 0
        %v1935 = vsel %vm490, %v1932, 0
        %1937 = vmatprep.subr.mxu0 0.0
        %1938 = vmatpush1.xpose.msra.mxu0 %v1935
        %1939 = vmatprep.subr.mxu0 0.0
        %1940 = vmatpush1.xpose.msra.mxu0 0.0
        %1941 = vmatprep.subr.mxu0 0.0
        %1942 = vmatpush1.xpose.msra.mxu0 0.0
        %1943 = vmatprep.subr.mxu0 0.0
        %1944 = vmatpush1.xpose.msra.mxu0 0.0
        %1945 = vmatprep.subr.mxu0 0.0
        %1946 = vmatpush1.xpose.msra.mxu0 0.0
        %1947 = vmatprep.subr.mxu0 0.0
        %1948 = vmatpush1.xpose.msra.mxu0 0.0
        %1949 = vmatprep.subr.mxu0 0.0
        %1950 = vmatpush1.xpose.msra.mxu0 0.0
        %1951 = vmatprep.subr.mxu0 0.0
        %1952 = vmatpush1.xpose.msra.mxu0 0.0
        %1953 = vmatprep.subr.mxu0 0.0
        %1954 = vmatpush1.xpose.msra.mxu0 0.0
        %1955 = vmatprep.subr.mxu0 0.0
        %1956 = vmatpush1.xpose.msra.mxu0 0.0
        %1957 = vmatprep.subr.mxu0 0.0
        %1958 = vmatpush1.xpose.msra.mxu0 0.0
        %1959 = vmatprep.subr.mxu0 0.0
        %1960 = vmatpush1.xpose.msra.mxu0 0.0
        %1961 = vmatprep.subr.mxu0 0.0
        %1962 = vmatpush1.xpose.msra.mxu0 0.0
        %1963 = vmatprep.subr.mxu0 0.0
        %1964 = vmatpush1.xpose.msra.mxu0 0.0
        %1965 = vmatprep.subr.mxu0 0.0
        %1966 = vmatpush1.xpose.msra.mxu0 0.0
        %1967 = vmatprep.subr.mxu0 0.0
        %1968 = vmatpush1.xpose.msra.mxu0 0.0
        %1969 = vmatprep.subr.mxu0 0.0
        %1970 = vmatpush1.xpose.msra.mxu0 0.0
        %1971 = vmatprep.subr.mxu0 0.0
        %1972 = vmatpush1.xpose.msra.mxu0 0.0
        %1973 = vmatprep.subr.mxu0 0.0
        %1974 = vmatpush1.xpose.msra.mxu0 0.0
        %1975 = vmatprep.subr.mxu0 0.0
        %1976 = vmatpush1.xpose.msra.mxu0 0.0
        %1977 = vmatprep.subr.mxu0 0.0
        %1978 = vmatpush1.xpose.msra.mxu0 0.0
        %1979 = vmatprep.subr.mxu0 0.0
        %1980 = vmatpush1.xpose.msra.mxu0 0.0
        %1981 = vmatprep.subr.mxu0 0.0
        %1982 = vmatpush1.xpose.msra.mxu0 0.0
        %1983 = vmatprep.subr.mxu0 0.0
        %1984 = vmatpush1.xpose.msra.mxu0 0.0
        %1985 = vmatprep.subr.mxu0 0.0
        %1986 = vmatpush1.xpose.msra.mxu0 0.0
        %1987 = vmatprep.subr.mxu0 0.0
        %1988 = vmatpush1.xpose.msra.mxu0 0.0
        %1989 = vmatprep.subr.mxu0 0.0
        %1990 = vmatpush1.xpose.msra.mxu0 0.0
        %1991 = vmatprep.subr.mxu0 0.0
        %1992 = vmatpush1.xpose.msra.mxu0 0.0
        %1993 = vmatprep.subr.mxu0 0.0
        %1994 = vmatpush1.xpose.msra.mxu0 0.0
        %1995 = vmatprep.subr.mxu0 0.0
        %1996 = vmatpush1.xpose.msra.mxu0 0.0
        %1997 = vmatprep.subr.mxu0 0.0
        %1998 = vmatpush1.xpose.msra.mxu0 0.0
        %1999 = vmatprep.subr.mxu0 0.0
        %2000 = vmatpush1.xpose.msra.mxu0 0.0
        %2001 = vmatprep.mubr.f32.mxu0 0.0
        %2002 = vmatmul.mubr.f32.gmra.mrb[0].mxu0 %v1933
        %v2003 = vpop.f32.mrb[0].mxu0
        %v2004 = vadd.f32 0.0, %v2003
        %v2005 = vpop.f32.mrb[0].mxu0
        %2006 = vdwg.mxu0
        %v2007 = vsel %vm490, %v2004, -inf
        %2008 = vmax.xlane.f32.xlu0 %v2007
        %v2009 = vpop.xlane.xlu0 %2008
        %v2010 = vsub.f32 %v2004, %v2009
        %v2011 = vmul.f32 %v2010, 1.442695
        %v2012 = vpow.pop %v2011
        %v2013 = vsel %vm490, %v2012, 0.0
        %2014 = vadd.xlane.f32.xlu0 %v2013
        %v2015 = vpop.xlane.xlu0 %2014
        %v2016 = vrcp.pop %v2015
        %v2017 = vmul.f32 %v2012, %v2016
        %2018 = vrot.lane.b32.xlu0 %v1432, 72
        %v2019 = vpop.permute.xlu0 %2018
        %v2022 = vsel %vm490, %v2017, 0
        %2024 = vmatprep.subr.mxu0 0.0
        %2025 = vmatpush1.msra.mxu0 %v2019
        %2026 = vmatprep.subr.mxu0 0.0
        %2027 = vmatpush1.msra.mxu0 0.0
        %2028 = vmatprep.subr.mxu0 0.0
        %2029 = vmatpush1.msra.mxu0 0.0
        %2030 = vmatprep.subr.mxu0 0.0
        %2031 = vmatpush1.msra.mxu0 0.0
        %2032 = vmatprep.subr.mxu0 0.0
        %2033 = vmatpush1.msra.mxu0 0.0
        %2034 = vmatprep.subr.mxu0 0.0
        %2035 = vmatpush1.msra.mxu0 0.0
        %2036 = vmatprep.subr.mxu0 0.0
        %2037 = vmatpush1.msra.mxu0 0.0
        %2038 = vmatprep.subr.mxu0 0.0
        %2039 = vmatpush1.msra.mxu0 0.0
        %2040 = vmatprep.subr.mxu0 0.0
        %2041 = vmatpush1.msra.mxu0 0.0
        %2042 = vmatprep.subr.mxu0 0.0
        %2043 = vmatpush1.msra.mxu0 0.0
        %2044 = vmatprep.subr.mxu0 0.0
        %2045 = vmatpush1.msra.mxu0 0.0
        %2046 = vmatprep.subr.mxu0 0.0
        %2047 = vmatpush1.msra.mxu0 0.0
        %2048 = vmatprep.subr.mxu0 0.0
        %2049 = vmatpush1.msra.mxu0 0.0
        %2050 = vmatprep.subr.mxu0 0.0
        %2051 = vmatpush1.msra.mxu0 0.0
        %2052 = vmatprep.subr.mxu0 0.0
        %2053 = vmatpush1.msra.mxu0 0.0
        %2054 = vmatprep.subr.mxu0 0.0
        %2055 = vmatpush1.msra.mxu0 0.0
        %2056 = vmatprep.subr.mxu0 0.0
        %2057 = vmatpush1.msra.mxu0 0.0
        %2058 = vmatprep.subr.mxu0 0.0
        %2059 = vmatpush1.msra.mxu0 0.0
        %2060 = vmatprep.subr.mxu0 0.0
        %2061 = vmatpush1.msra.mxu0 0.0
        %2062 = vmatprep.subr.mxu0 0.0
        %2063 = vmatpush1.msra.mxu0 0.0
        %2064 = vmatprep.subr.mxu0 0.0
        %2065 = vmatpush1.msra.mxu0 0.0
        %2066 = vmatprep.subr.mxu0 0.0
        %2067 = vmatpush1.msra.mxu0 0.0
        %2068 = vmatprep.subr.mxu0 0.0
        %2069 = vmatpush1.msra.mxu0 0.0
        %2070 = vmatprep.subr.mxu0 0.0
        %2071 = vmatpush1.msra.mxu0 0.0
        %2072 = vmatprep.subr.mxu0 0.0
        %2073 = vmatpush1.msra.mxu0 0.0
        %2074 = vmatprep.subr.mxu0 0.0
        %2075 = vmatpush1.msra.mxu0 0.0
        %2076 = vmatprep.subr.mxu0 0.0
        %2077 = vmatpush1.msra.mxu0 0.0
        %2078 = vmatprep.subr.mxu0 0.0
        %2079 = vmatpush1.msra.mxu0 0.0
        %2080 = vmatprep.subr.mxu0 0.0
        %2081 = vmatpush1.msra.mxu0 0.0
        %2082 = vmatprep.subr.mxu0 0.0
        %2083 = vmatpush1.msra.mxu0 0.0
        %2084 = vmatprep.subr.mxu0 0.0
        %2085 = vmatpush1.msra.mxu0 0.0
        %2086 = vmatprep.subr.mxu0 0.0
        %2087 = vmatpush1.msra.mxu0 0.0
        %2088 = vmatprep.mubr.f32.mxu0 0.0
        %2089 = vmatmul.mubr.f32.gmra.mrb[0].mxu0 %v2022
        %v2090 = vpop.f32.mrb[0].mxu0
        %v2091 = vadd.f32 0.0, %v2090
        %v2092 = vpop.f32.mrb[0].mxu0
        %2093 = vdwg.mxu0
        %2095 = vrot.lane.b32.xlu0 %v1761, 8
        %v2096 = vpop.permute.xlu0 %2095
        %2099 = vrot.lane.b32.xlu0 %v1926, 16
        %v2100 = vpop.permute.xlu0 %2099
        %2103 = vrot.lane.b32.xlu0 %v2091, 24
        %v2104 = vpop.permute.xlu0 %2103
        %v2106 = vsel %vm490, %v1596, %v2096
        %v2107 = vsel %vm1161, %v2106, %v2100
        %v2108 = vsel %vm1163, %v2107, %v2104
        %v2110 = vsel %vm412, %v2108, 0
        %2112 = vmatprep.subr.mxu0 0.0
        %2113 = vmatpush1.msra.mxu0 %v407
        %2114 = vmatprep.subr.mxu0 0.0
        %2115 = vmatpush1.msra.mxu0 %v408
        %2116 = vmatprep.subr.mxu0 0.0
        %2117 = vmatpush1.msra.mxu0 %v409
        %2118 = vmatprep.subr.mxu0 0.0
        %2119 = vmatpush1.msra.mxu0 %v410
        %2120 = vmatprep.subr.mxu0 0.0
        %2121 = vmatpush1.msra.mxu0 0.0
        %2122 = vmatprep.subr.mxu0 0.0
        %2123 = vmatpush1.msra.mxu0 0.0
        %2124 = vmatprep.subr.mxu0 0.0
        %2125 = vmatpush1.msra.mxu0 0.0
        %2126 = vmatprep.subr.mxu0 0.0
        %2127 = vmatpush1.msra.mxu0 0.0
        %2128 = vmatprep.subr.mxu0 0.0
        %2129 = vmatpush1.msra.mxu0 0.0
        %2130 = vmatprep.subr.mxu0 0.0
        %2131 = vmatpush1.msra.mxu0 0.0
        %2132 = vmatprep.subr.mxu0 0.0
        %2133 = vmatpush1.msra.mxu0 0.0
        %2134 = vmatprep.subr.mxu0 0.0
        %2135 = vmatpush1.msra.mxu0 0.0
        %2136 = vmatprep.subr.mxu0 0.0
        %2137 = vmatpush1.msra.mxu0 0.0
        %2138 = vmatprep.subr.mxu0 0.0
        %2139 = vmatpush1.msra.mxu0 0.0
        %2140 = vmatprep.subr.mxu0 0.0
        %2141 = vmatpush1.msra.mxu0 0.0
        %2142 = vmatprep.subr.mxu0 0.0
        %2143 = vmatpush1.msra.mxu0 0.0
        %2144 = vmatprep.subr.mxu0 0.0
        %2145 = vmatpush1.msra.mxu0 0.0
        %2146 = vmatprep.subr.mxu0 0.0
        %2147 = vmatpush1.msra.mxu0 0.0
        %2148 = vmatprep.subr.mxu0 0.0
        %2149 = vmatpush1.msra.mxu0 0.0
        %2150 = vmatprep.subr.mxu0 0.0
        %2151 = vmatpush1.msra.mxu0 0.0
        %2152 = vmatprep.subr.mxu0 0.0
        %2153 = vmatpush1.msra.mxu0 0.0
        %2154 = vmatprep.subr.mxu0 0.0
        %2155 = vmatpush1.msra.mxu0 0.0
        %2156 = vmatprep.subr.mxu0 0.0
        %2157 = vmatpush1.msra.mxu0 0.0
        %2158 = vmatprep.subr.mxu0 0.0
        %2159 = vmatpush1.msra.mxu0 0.0
        %2160 = vmatprep.subr.mxu0 0.0
        %2161 = vmatpush1.msra.mxu0 0.0
        %2162 = vmatprep.subr.mxu0 0.0
        %2163 = vmatpush1.msra.mxu0 0.0
        %2164 = vmatprep.subr.mxu0 0.0
        %2165 = vmatpush1.msra.mxu0 0.0
        %2166 = vmatprep.subr.mxu0 0.0
        %2167 = vmatpush1.msra.mxu0 0.0
        %2168 = vmatprep.subr.mxu0 0.0
        %2169 = vmatpush1.msra.mxu0 0.0
        %2170 = vmatprep.subr.mxu0 0.0
        %2171 = vmatpush1.msra.mxu0 0.0
        %2172 = vmatprep.subr.mxu0 0.0
        %2173 = vmatpush1.msra.mxu0 0.0
        %2174 = vmatprep.subr.mxu0 0.0
        %2175 = vmatpush1.msra.mxu0 0.0
        %2176 = vmatprep.mubr.f32.mxu0 0.0
        %2177 = vmatmul.mubr.f32.gmra.mrb[0].mxu0 %v2110
        %v2178 = vpop.f32.mrb[0].mxu0
        %v2179 = vadd.f32 %v1169, %v2178
        %v2180 = vpop.f32.mrb[0].mxu0
        %2181 = vdwg.mxu0
        %v2182 = vmax.f32 %v2179, 0.0
        %v2183 = vadd.f32 %v2182, %v1272
        %v2184 = vsel %vm412, %v2183, 0.0
        %2185 = vadd.xlane.f32.xlu0 %v2184
        %v2186 = vpop.xlane.xlu0 %2185
        %v2187 = vmul.f32 %v2186, %v1248
        %v2188 = vsub.f32 %v2183, %v2187
        %v2189 = vmul.f32 %v2188, %v2188
        %v2190 = vsel %vm412, %v2189, 0.0
        %2191 = vadd.xlane.f32.xlu0 %v2190
        %v2192 = vpop.xlane.xlu0 %2191
        %v2193 = vmul.f32 %v2192, %v1248
        %v2194 = vadd.f32 %v2193, 1e-05
        %v2195 = vrsqrt.pop %v2194
        %v2196 = vmul.f32 %v2188, %v2195
        %v2197 = vmul.f32 %v2196, %v1263
        %v2198 = vadd.f32 %v2197, %v1270
        %v2199 = vld [vmem:[%s7] sm:$0xff]
        %v2200 = vld [vmem:[%s7 + $0x8] sm:$0xff]
        %v2201 = vld [vmem:[%s7 + $0x10] sm:$0xff]
        %v2202 = vld [vmem:[%s7 + $0x18] sm:$0xff]
        %v2203 = vld [vmem:[%s8] sm:$0x1]
        %v2205 = vlaneseq
        %v2206 = vshrl.u32 %v2205, 7
        %v2207 = vsub.s32 0, %v2206
        %v2208 = vrot.slane %v2203, %v2207
        %v2211 = vsel %vm412, %v2198, 0
        %2213 = vmatprep.subr.mxu0 0.0
        %2214 = vmatpush1.msra.mxu0 %v2199
        %2215 = vmatprep.subr.mxu0 0.0
        %2216 = vmatpush1.msra.mxu0 %v2200
        %2217 = vmatprep.subr.mxu0 0.0
        %2218 = vmatpush1.msra.mxu0 %v2201
        %2219 = vmatprep.subr.mxu0 0.0
        %2220 = vmatpush1.msra.mxu0 %v2202
        %2221 = vmatprep.subr.mxu0 0.0
        %2222 = vmatpush1.msra.mxu0 0.0
        %2223 = vmatprep.subr.mxu0 0.0
        %2224 = vmatpush1.msra.mxu0 0.0
        %2225 = vmatprep.subr.mxu0 0.0
        %2226 = vmatpush1.msra.mxu0 0.0
        %2227 = vmatprep.subr.mxu0 0.0
        %2228 = vmatpush1.msra.mxu0 0.0
        %2229 = vmatprep.subr.mxu0 0.0
        %2230 = vmatpush1.msra.mxu0 0.0
        %2231 = vmatprep.subr.mxu0 0.0
        %2232 = vmatpush1.msra.mxu0 0.0
        %2233 = vmatprep.subr.mxu0 0.0
        %2234 = vmatpush1.msra.mxu0 0.0
        %2235 = vmatprep.subr.mxu0 0.0
        %2236 = vmatpush1.msra.mxu0 0.0
        %2237 = vmatprep.subr.mxu0 0.0
        %2238 = vmatpush1.msra.mxu0 0.0
        %2239 = vmatprep.subr.mxu0 0.0
        %2240 = vmatpush1.msra.mxu0 0.0
        %2241 = vmatprep.subr.mxu0 0.0
        %2242 = vmatpush1.msra.mxu0 0.0
        %2243 = vmatprep.subr.mxu0 0.0
        %2244 = vmatpush1.msra.mxu0 0.0
        %2245 = vmatprep.subr.mxu0 0.0
        %2246 = vmatpush1.msra.mxu0 0.0
        %2247 = vmatprep.subr.mxu0 0.0
        %2248 = vmatpush1.msra.mxu0 0.0
        %2249 = vmatprep.subr.mxu0 0.0
        %2250 = vmatpush1.msra.mxu0 0.0
        %2251 = vmatprep.subr.mxu0 0.0
        %2252 = vmatpush1.msra.mxu0 0.0
        %2253 = vmatprep.subr.mxu0 0.0
        %2254 = vmatpush1.msra.mxu0 0.0
        %2255 = vmatprep.subr.mxu0 0.0
        %2256 = vmatpush1.msra.mxu0 0.0
        %2257 = vmatprep.subr.mxu0 0.0
        %2258 = vmatpush1.msra.mxu0 0.0
        %2259 = vmatprep.subr.mxu0 0.0
        %2260 = vmatpush1.msra.mxu0 0.0
        %2261 = vmatprep.subr.mxu0 0.0
        %2262 = vmatpush1.msra.mxu0 0.0
        %2263 = vmatprep.subr.mxu0 0.0
        %2264 = vmatpush1.msra.mxu0 0.0
        %2265 = vmatprep.subr.mxu0 0.0
        %2266 = vmatpush1.msra.mxu0 0.0
        %2267 = vmatprep.subr.mxu0 0.0
        %2268 = vmatpush1.msra.mxu0 0.0
        %2269 = vmatprep.subr.mxu0 0.0
        %2270 = vmatpush1.msra.mxu0 0.0
        %2271 = vmatprep.subr.mxu0 0.0
        %2272 = vmatpush1.msra.mxu0 0.0
        %2273 = vmatprep.subr.mxu0 0.0
        %2274 = vmatpush1.msra.mxu0 0.0
        %2275 = vmatprep.subr.mxu0 0.0
        %2276 = vmatpush1.msra.mxu0 0.0
        %2277 = vmatprep.mubr.f32.mxu0 0.0
        %2278 = vmatmul.mubr.f32.gmra.mrb[0].mxu0 %v2211
        %v2279 = vpop.f32.mrb[0].mxu0
        %v2280 = vadd.f32 %v2208, %v2279
        %v2281 = vpop.f32.mrb[0].mxu0
        %2282 = vdwg.mxu0
        %v2283 = vmax.f32 %v2280, 0.0
        %v2284 = vld [vmem:[%s9] sm:$0xff]
        %v2285 = vld [vmem:[%s9 + $0x8] sm:$0xff]
        %v2286 = vld [vmem:[%s9 + $0x10] sm:$0xff]
        %v2287 = vld [vmem:[%s9 + $0x18] sm:$0xff]
        %v2288 = vld [vmem:[%s9 + $0x20] sm:$0xff]
        %v2289 = vld [vmem:[%s9 + $0x28] sm:$0xff]
        %v2290 = vld [vmem:[%s9 + $0x30] sm:$0xff]
        %v2291 = vld [vmem:[%s9 + $0x38] sm:$0xff]
        %v2292 = vld [vmem:[%s10] sm:$0x1]
        %v2294 = vlaneseq
        %v2295 = vshrl.u32 %v2294, 7
        %v2296 = vsub.s32 0, %v2295
        %v2297 = vrot.slane %v2292, %v2296
        %vm2299 = vcmask 523264
        %v2301 = vsel %vm2299, %v2283, 0
        %2303 = vmatprep.subr.mxu0 0.0
        %2304 = vmatpush1.msra.mxu0 %v2284
        %2305 = vmatprep.subr.mxu0 0.0
        %2306 = vmatpush1.msra.mxu0 %v2285
        %2307 = vmatprep.subr.mxu0 0.0
        %2308 = vmatpush1.msra.mxu0 %v2286
        %2309 = vmatprep.subr.mxu0 0.0
        %2310 = vmatpush1.msra.mxu0 %v2287
        %2311 = vmatprep.subr.mxu0 0.0
        %2312 = vmatpush1.msra.mxu0 %v2288
        %2313 = vmatprep.subr.mxu0 0.0
        %2314 = vmatpush1.msra.mxu0 %v2289
        %2315 = vmatprep.subr.mxu0 0.0
        %2316 = vmatpush1.msra.mxu0 %v2290
        %2317 = vmatprep.subr.mxu0 0.0
        %2318 = vmatpush1.msra.mxu0 %v2291
        %2319 = vmatprep.subr.mxu0 0.0
        %2320 = vmatpush1.msra.mxu0 0.0
        %2321 = vmatprep.subr.mxu0 0.0
        %2322 = vmatpush1.msra.mxu0 0.0
        %2323 = vmatprep.subr.mxu0 0.0
        %2324 = vmatpush1.msra.mxu0 0.0
        %2325 = vmatprep.subr.mxu0 0.0
        %2326 = vmatpush1.msra.mxu0 0.0
        %2327 = vmatprep.subr.mxu0 0.0
        %2328 = vmatpush1.msra.mxu0 0.0
        %2329 = vmatprep.subr.mxu0 0.0
        %2330 = vmatpush1.msra.mxu0 0.0
        %2331 = vmatprep.subr.mxu0 0.0
        %2332 = vmatpush1.msra.mxu0 0.0
        %2333 = vmatprep.subr.mxu0 0.0
        %2334 = vmatpush1.msra.mxu0 0.0
        %2335 = vmatprep.subr.mxu0 0.0
        %2336 = vmatpush1.msra.mxu0 0.0
        %2337 = vmatprep.subr.mxu0 0.0
        %2338 = vmatpush1.msra.mxu0 0.0
        %2339 = vmatprep.subr.mxu0 0.0
        %2340 = vmatpush1.msra.mxu0 0.0
        %2341 = vmatprep.subr.mxu0 0.0
        %2342 = vmatpush1.msra.mxu0 0.0
        %2343 = vmatprep.subr.mxu0 0.0
        %2344 = vmatpush1.msra.mxu0 0.0
        %2345 = vmatprep.subr.mxu0 0.0
        %2346 = vmatpush1.msra.mxu0 0.0
        %2347 = vmatprep.subr.mxu0 0.0
        %2348 = vmatpush1.msra.mxu0 0.0
        %2349 = vmatprep.subr.mxu0 0.0
        %2350 = vmatpush1.msra.mxu0 0.0
        %2351 = vmatprep.subr.mxu0 0.0
        %2352 = vmatpush1.msra.mxu0 0.0
        %2353 = vmatprep.subr.mxu0 0.0
        %2354 = vmatpush1.msra.mxu0 0.0
        %2355 = vmatprep.subr.mxu0 0.0
        %2356 = vmatpush1.msra.mxu0 0.0
        %2357 = vmatprep.subr.mxu0 0.0
        %2358 = vmatpush1.msra.mxu0 0.0
        %2359 = vmatprep.subr.mxu0 0.0
        %2360 = vmatpush1.msra.mxu0 0.0
        %2361 = vmatprep.subr.mxu0 0.0
        %2362 = vmatpush1.msra.mxu0 0.0
        %2363 = vmatprep.subr.mxu0 0.0
        %2364 = vmatpush1.msra.mxu0 0.0
        %2365 = vmatprep.subr.mxu0 0.0
        %2366 = vmatpush1.msra.mxu0 0.0
        %2367 = vmatprep.mubr.f32.mxu0 0.0
        %2368 = vmatmul.mubr.f32.gmra.mrb[0].mxu0 %v2301
        %v2369 = vpop.f32.mrb[0].mxu0
        %v2370 = vadd.f32 %v2297, %v2369
        %v2371 = vpop.f32.mrb[0].mxu0
        %2372 = vdwg.mxu0
        %v2373 = vadd.f32 %v2370, %v2198
        %v2374 = vsel %vm412, %v2373, 0.0
        %2375 = vadd.xlane.f32.xlu0 %v2374
        %v2376 = vpop.xlane.xlu0 %2375
        %v2377 = vmul.f32 %v2376, %v1248
        %v2378 = vsub.f32 %v2373, %v2377
        %v2379 = vmul.f32 %v2378, %v2378
        %v2380 = vsel %vm412, %v2379, 0.0
        %2381 = vadd.xlane.f32.xlu0 %v2380
        %v2382 = vpop.xlane.xlu0 %2381
        %v2383 = vmul.f32 %v2382, %v1248
        %v2384 = vadd.f32 %v2383, 1e-05
        %v2385 = vrsqrt.pop %v2384
        %v2386 = vmul.f32 %v2378, %v2385
        %v2387 = vmul.f32 %v2386, %v1263
        %v2388 = vadd.f32 %v2387, %v1270
        %2389 = vst.msk [vmem:[%s390] sm:$0xff] %vm412, %v2388
        %s2390 = sand.u32 %s274, 1
        %s2391 = scalar_lea.sflag [#allocation3], %s2390
        %s2392 = sand.u32 %s274, 1
        %s2393 = smul.addr %s2392, 8
        %s2394 = scalar_lea.vmem [#allocation2], %s2393
        // Predicated region
        $region65: #{decoder_forward.3} parent=63 // pred_check
          %p2395 = pneg %p284
        $region66: #{decoder_forward.3} parent=63 // pred_check_branch
          %2397 = sbr.rel (%p2395) target = $region68
        $region67: #{decoder_forward.3} parent=63 // pred_region
          %s2399 = ssub.s32 128, 128
          %2400 = vsyncadd %s2391, %s2399
          %s2401 = smul.addr %s25, 128
          %s2402 = scalar_lea.hbm %s11, %s2401
          %s2404 = sshll.u32 %s2394, 4
          %s2405 = int_to_ptr.vmem [resolvable:$true] %s2404
          %2407 = dma.vmem_to_hbm [thread:$0]  %s2405, 128, %s2402, %s2391
        $region68: #{decoder_forward.3} parent=63 // pred_fallthru
          _
      $region64: #{decoder_forward.3} parent=5 // pred_fallthru
        _
      %p2408 = scmp.le.s32.totalorder 2, %s20
      // Predicated region
      $region69: #{decoder_forward.3} parent=5 // pred_check
        %p2409 = pneg %p2408
      $region70: #{decoder_forward.3} parent=5 // pred_check_branch
        %2411 = sbr.rel (%p2409) target = $region72
      $region71: #{decoder_forward.3} parent=5 // pred_region
        %s2412 = ssub.s32 %s20, 2
        // Predicated region
        $region73: #{decoder_forward.3} parent=71 // pred_check
          %p2413 = pneg %p290
        $region74: #{decoder_forward.3} parent=71 // pred_check_branch
          %2415 = sbr.rel (%p2413) target = $region76
        $region75: #{decoder_forward.3} parent=71 // pred_region
          %s2416 = sand.u32 %s275, 1
          %s2417 = scalar_lea.sflag [#allocation3], %s2416
          %s2418 = sand.u32 %s275, 1
          %s2419 = smul.addr %s2418, 8
          %s2420 = scalar_lea.vmem [#allocation2], %s2419
          %2421 = dma.done %s2417, 128
        $region76: #{decoder_forward.3} parent=71 // pred_fallthru
          _
      $region72: #{decoder_forward.3} parent=5 // pred_fallthru
        _
    $region6: #{decoder_forward.3} parent=1 // loop_footer
      %s24 = sadd.s32 1, %s20
    $region7: #{decoder_forward.3} parent=1 // loop_footer_branch
      %19 = sbr.rel target = $region3
    $region8: #{decoder_forward.3} parent=1 // loop_exit
      _
    %2422 = vsyncpa [#allocation3], 1
    %s2423 = scalar_lea.sflag [#allocation3], 1
    %2424 = vsyncpa %s2423, 1

// kernel: decoder_forward.2
$region0: #{decoder_forward.2}
  #allocation0 [shape = 'u32[]', space=smem, size = 0x4, offset = 0x4, fixed_abs, tag = 'smem constant byte address 0x4 - core index']
  #allocation1 [shape = 'u32[144,128]{1,0:T(1,128)}', space=vmem, size = 0x12000, scoped, tag = 'internal scratch']
  %s0 = inlined_call_operand.vmem [shape: f32[2,8,32], index: 0, kind: input, shape index: {}]
  %s1 = inlined_call_operand.vmem [shape: f32[2,8,32], index: 1, kind: input, shape index: {}]
  %s2 = inlined_call_operand.vmem [shape: f32[32,96], index: 2, kind: input, shape index: {}]
  %s3 = inlined_call_operand.vmem [shape: f32[32,32], index: 3, kind: input, shape index: {}]
  %s4 = inlined_call_operand.vmem [shape: f32[1,32], index: 4, kind: input, shape index: {}]
  %s5 = inlined_call_operand.vmem [shape: f32[1,32], index: 5, kind: input, shape index: {}]
  %s6 = inlined_call_operand.vmem [shape: f32[1,32], index: 6, kind: input, shape index: {}]
  %s7 = inlined_call_operand.vmem [shape: f32[32,64], index: 7, kind: input, shape index: {}]
  %s8 = inlined_call_operand.vmem [shape: f32[1,64], index: 8, kind: input, shape index: {}]
  %s9 = inlined_call_operand.vmem [shape: f32[64,32], index: 9, kind: input, shape index: {}]
  %s10 = inlined_call_operand.vmem [shape: f32[1,32], index: 10, kind: input, shape index: {}]
  %s11 = inlined_call_operand.vmem [shape: f32[2,8,32], index: 11, kind: output, shape index: {}]
  %s12 = sld [smem:[#allocation0]]
  $region77: #{decoder_forward.2} parent=0
    _
  %s14 = ssub.s32 1, %s12
  %s15 = scalar_select 0, %s14, %s12
  loop: start=0, step=1, limit=4
  $region2: #{decoder_forward.2} parent=0 // loop_pre_header
    _
  $region3: #{decoder_forward.2} parent=0 // loop_header
    %s17 = sphi 0, %s21
    %p18 = scmp.ge.s32.totalorder %s17, 4
    %s27 = sphi 0, %s29
    %s30 = sphi 0, %s27
    %s31 = sphi 0, %s30
    %s47 = sphi 0, %s31
    %s53 = sphi 0, %s55
    %s56 = sphi 0, %s53
    %s57 = sphi 0, %s56
    %s73 = sphi 0, %s57
    %s77 = sphi 0, %s77
    %s79 = sphi 0, %s77
    %s80 = sphi 0, %s79
    %s94 = sphi 0, %s80
    %s98 = sphi 0, %s98
    %s100 = sphi 0, %s98
    %s101 = sphi 0, %s100
    %s115 = sphi 0, %s101
    %s119 = sphi 0, %s119
    %s121 = sphi 0, %s119
    %s122 = sphi 0, %s121
    %s136 = sphi 0, %s122
    %s140 = sphi 0, %s140
    %s142 = sphi 0, %s140
    %s143 = sphi 0, %s142
    %s157 = sphi 0, %s143
    %s161 = sphi 0, %s161
    %s163 = sphi 0, %s161
    %s164 = sphi 0, %s163
    %s178 = sphi 0, %s164
    %s182 = sphi 0, %s182
    %s184 = sphi 0, %s182
    %s185 = sphi 0, %s184
    %s199 = sphi 0, %s185
    %s203 = sphi 0, %s203
    %s205 = sphi 0, %s203
    %s206 = sphi 0, %s205
    %s220 = sphi 0, %s206
    %s224 = sphi 0, %s224
    %s226 = sphi 0, %s224
    %s227 = sphi 0, %s226
    %s241 = sphi 0, %s227
    %s245 = sphi 0, %s245
    %s247 = sphi 0, %s245
    %s248 = sphi 0, %s247
    %s262 = sphi 0, %s248
    %s268 = sphi 0, %s270
    %s271 = sphi 0, %s268
    %s272 = sphi 0, %s271
    %s288 = sphi 0, %s272
  $region4: #{decoder_forward.2} parent=0 // loop_header_branch
    %20 = sbr.rel (%p18) target = $region8
  $region5: #{decoder_forward.2} parent=0 // loop_body
    %s22 = ssub.s32 %s17, 1
    %s23 = ssub.s32 %s17, 2
    %s24 = sadd.s32 %s17, 1
    %s25 = ssub.s32 %s17, %s24
    %p26 = scmp.eq.s32.totalorder %s25, 0
    %s28 = sadd.s32 %s27, 1
    %s29 = scalar_select %p26, %s27, %s28
    %p32 = pneg %p26
    %p33 = scmp.eq.s32.totalorder %s17, 1
    %p34 = por %p32, %p33
    %p35 = scmp.ne.s32.totalorder %s27, %s30
    %p36 = scmp.eq.s32.totalorder %s17, 0
    %p37 = por %p35, %p36
    %p38 = scmp.ne.s32.totalorder %s27, %s30
    %p39 = scmp.eq.s32.totalorder %s22, 1
    %p40 = por %p38, %p39
    %p41 = scmp.ne.s32.totalorder %s30, %s31
    %p42 = scmp.eq.s32.totalorder %s22, 0
    %p43 = por %p41, %p42
    %p44 = scmp.ne.s32.totalorder %s30, %s31
    %p45 = scmp.eq.s32.totalorder %s23, 1
    %p46 = por %p44, %p45
    %p48 = scmp.ne.s32.totalorder %s31, %s47
    %p49 = scmp.eq.s32.totalorder %s23, 0
    %p50 = por %p48, %p49
    %s51 = ssub.s32 %s17, %s24
    %p52 = scmp.eq.s32.totalorder %s51, 0
    %s54 = sadd.s32 %s53, 1
    %s55 = scalar_select %p52, %s53, %s54
    %p58 = pneg %p52
    %p59 = scmp.eq.s32.totalorder %s17, 1
    %p60 = por %p58, %p59
    %p61 = scmp.ne.s32.totalorder %s53, %s56
    %p62 = scmp.eq.s32.totalorder %s17, 0
    %p63 = por %p61, %p62
    %p64 = scmp.ne.s32.totalorder %s53, %s56
    %p65 = scmp.eq.s32.totalorder %s22, 1
    %p66 = por %p64, %p65
    %p67 = scmp.ne.s32.totalorder %s56, %s57
    %p68 = scmp.eq.s32.totalorder %s22, 0
    %p69 = por %p67, %p68
    %p70 = scmp.ne.s32.totalorder %s56, %s57
    %p71 = scmp.eq.s32.totalorder %s23, 1
    %p72 = por %p70, %p71
    %p74 = scmp.ne.s32.totalorder %s57, %s73
    %p75 = scmp.eq.s32.totalorder %s23, 0
    %p76 = por %p74, %p75
    %s78 = sadd.s32 %s77, 1
    %p81 = scmp.eq.s32.totalorder %s17, 1
    %p82 = scmp.ne.s32.totalorder %s77, %s79
    %p83 = scmp.eq.s32.totalorder %s17, 0
    %p84 = por %p82, %p83
    %p85 = scmp.ne.s32.totalorder %s77, %s79
    %p86 = scmp.eq.s32.totalorder %s22, 1
    %p87 = por %p85, %p86
    %p88 = scmp.ne.s32.totalorder %s79, %s80
    %p89 = scmp.eq.s32.totalorder %s22, 0
    %p90 = por %p88, %p89
    %p91 = scmp.ne.s32.totalorder %s79, %s80
    %p92 = scmp.eq.s32.totalorder %s23, 1
    %p93 = por %p91, %p92
    %p95 = scmp.ne.s32.totalorder %s80, %s94
    %p96 = scmp.eq.s32.totalorder %s23, 0
    %p97 = por %p95, %p96
    %s99 = sadd.s32 %s98, 1
    %p102 = scmp.eq.s32.totalorder %s17, 1
    %p103 = scmp.ne.s32.totalorder %s98, %s100
    %p104 = scmp.eq.s32.totalorder %s17, 0
    %p105 = por %p103, %p104
    %p106 = scmp.ne.s32.totalorder %s98, %s100
    %p107 = scmp.eq.s32.totalorder %s22, 1
    %p108 = por %p106, %p107
    %p109 = scmp.ne.s32.totalorder %s100, %s101
    %p110 = scmp.eq.s32.totalorder %s22, 0
    %p111 = por %p109, %p110
    %p112 = scmp.ne.s32.totalorder %s100, %s101
    %p113 = scmp.eq.s32.totalorder %s23, 1
    %p114 = por %p112, %p113
    %p116 = scmp.ne.s32.totalorder %s101, %s115
    %p117 = scmp.eq.s32.totalorder %s23, 0
    %p118 = por %p116, %p117
    %s120 = sadd.s32 %s119, 1
    %p123 = scmp.eq.s32.totalorder %s17, 1
    %p124 = scmp.ne.s32.totalorder %s119, %s121
    %p125 = scmp.eq.s32.totalorder %s17, 0
    %p126 = por %p124, %p125
    %p127 = scmp.ne.s32.totalorder %s119, %s121
    %p128 = scmp.eq.s32.totalorder %s22, 1
    %p129 = por %p127, %p128
    %p130 = scmp.ne.s32.totalorder %s121, %s122
    %p131 = scmp.eq.s32.totalorder %s22, 0
    %p132 = por %p130, %p131
    %p133 = scmp.ne.s32.totalorder %s121, %s122
    %p134 = scmp.eq.s32.totalorder %s23, 1
    %p135 = por %p133, %p134
    %p137 = scmp.ne.s32.totalorder %s122, %s136
    %p138 = scmp.eq.s32.totalorder %s23, 0
    %p139 = por %p137, %p138
    %s141 = sadd.s32 %s140, 1
    %p144 = scmp.eq.s32.totalorder %s17, 1
    %p145 = scmp.ne.s32.totalorder %s140, %s142
    %p146 = scmp.eq.s32.totalorder %s17, 0
    %p147 = por %p145, %p146
    %p148 = scmp.ne.s32.totalorder %s140, %s142
    %p149 = scmp.eq.s32.totalorder %s22, 1
    %p150 = por %p148, %p149
    %p151 = scmp.ne.s32.totalorder %s142, %s143
    %p152 = scmp.eq.s32.totalorder %s22, 0
    %p153 = por %p151, %p152
    %p154 = scmp.ne.s32.totalorder %s142, %s143
    %p155 = scmp.eq.s32.totalorder %s23, 1
    %p156 = por %p154, %p155
    %p158 = scmp.ne.s32.totalorder %s143, %s157
    %p159 = scmp.eq.s32.totalorder %s23, 0
    %p160 = por %p158, %p159
    %s162 = sadd.s32 %s161, 1
    %p165 = scmp.eq.s32.totalorder %s17, 1
    %p166 = scmp.ne.s32.totalorder %s161, %s163
    %p167 = scmp.eq.s32.totalorder %s17, 0
    %p168 = por %p166, %p167
    %p169 = scmp.ne.s32.totalorder %s161, %s163
    %p170 = scmp.eq.s32.totalorder %s22, 1
    %p171 = por %p169, %p170
    %p172 = scmp.ne.s32.totalorder %s163, %s164
    %p173 = scmp.eq.s32.totalorder %s22, 0
    %p174 = por %p172, %p173
    %p175 = scmp.ne.s32.totalorder %s163, %s164
    %p176 = scmp.eq.s32.totalorder %s23, 1
    %p177 = por %p175, %p176
    %p179 = scmp.ne.s32.totalorder %s164, %s178
    %p180 = scmp.eq.s32.totalorder %s23, 0
    %p181 = por %p179, %p180
    %s183 = sadd.s32 %s182, 1
    %p186 = scmp.eq.s32.totalorder %s17, 1
    %p187 = scmp.ne.s32.totalorder %s182, %s184
    %p188 = scmp.eq.s32.totalorder %s17, 0
    %p189 = por %p187, %p188
    %p190 = scmp.ne.s32.totalorder %s182, %s184
    %p191 = scmp.eq.s32.totalorder %s22, 1
    %p192 = por %p190, %p191
    %p193 = scmp.ne.s32.totalorder %s184, %s185
    %p194 = scmp.eq.s32.totalorder %s22, 0
    %p195 = por %p193, %p194
    %p196 = scmp.ne.s32.totalorder %s184, %s185
    %p197 = scmp.eq.s32.totalorder %s23, 1
    %p198 = por %p196, %p197
    %p200 = scmp.ne.s32.totalorder %s185, %s199
    %p201 = scmp.eq.s32.totalorder %s23, 0
    %p202 = por %p200, %p201
    %s204 = sadd.s32 %s203, 1
    %p207 = scmp.eq.s32.totalorder %s17, 1
    %p208 = scmp.ne.s32.totalorder %s203, %s205
    %p209 = scmp.eq.s32.totalorder %s17, 0
    %p210 = por %p208, %p209
    %p211 = scmp.ne.s32.totalorder %s203, %s205
    %p212 = scmp.eq.s32.totalorder %s22, 1
    %p213 = por %p211, %p212
    %p214 = scmp.ne.s32.totalorder %s205, %s206
    %p215 = scmp.eq.s32.totalorder %s22, 0
    %p216 = por %p214, %p215
    %p217 = scmp.ne.s32.totalorder %s205, %s206
    %p218 = scmp.eq.s32.totalorder %s23, 1
    %p219 = por %p217, %p218
    %p221 = scmp.ne.s32.totalorder %s206, %s220
    %p222 = scmp.eq.s32.totalorder %s23, 0
    %p223 = por %p221, %p222
    %s225 = sadd.s32 %s224, 1
    %p228 = scmp.eq.s32.totalorder %s17, 1
    %p229 = scmp.ne.s32.totalorder %s224, %s226
    %p230 = scmp.eq.s32.totalorder %s17, 0
    %p231 = por %p229, %p230
    %p232 = scmp.ne.s32.totalorder %s224, %s226
    %p233 = scmp.eq.s32.totalorder %s22, 1
    %p234 = por %p232, %p233
    %p235 = scmp.ne.s32.totalorder %s226, %s227
    %p236 = scmp.eq.s32.totalorder %s22, 0
    %p237 = por %p235, %p236
    %p238 = scmp.ne.s32.totalorder %s226, %s227
    %p239 = scmp.eq.s32.totalorder %s23, 1
    %p240 = por %p238, %p239
    %p242 = scmp.ne.s32.totalorder %s227, %s241
    %p243 = scmp.eq.s32.totalorder %s23, 0
    %p244 = por %p242, %p243
    %s246 = sadd.s32 %s245, 1
    %p249 = scmp.eq.s32.totalorder %s17, 1
    %p250 = scmp.ne.s32.totalorder %s245, %s247
    %p251 = scmp.eq.s32.totalorder %s17, 0
    %p252 = por %p250, %p251
    %p253 = scmp.ne.s32.totalorder %s245, %s247
    %p254 = scmp.eq.s32.totalorder %s22, 1
    %p255 = por %p253, %p254
    %p256 = scmp.ne.s32.totalorder %s247, %s248
    %p257 = scmp.eq.s32.totalorder %s22, 0
    %p258 = por %p256, %p257
    %p259 = scmp.ne.s32.totalorder %s247, %s248
    %p260 = scmp.eq.s32.totalorder %s23, 1
    %p261 = por %p259, %p260
    %p263 = scmp.ne.s32.totalorder %s248, %s262
    %p264 = scmp.eq.s32.totalorder %s23, 0
    %p265 = por %p263, %p264
    %s266 = ssub.s32 %s17, %s24
    %p267 = scmp.eq.s32.totalorder %s266, 0
    %s269 = sadd.s32 %s268, 1
    %s270 = scalar_select %p267, %s268, %s269
    %p273 = pneg %p267
    %p274 = scmp.eq.s32.totalorder %s17, 1
    %p275 = por %p273, %p274
    %p276 = scmp.ne.s32.totalorder %s268, %s271
    %p277 = scmp.eq.s32.totalorder %s17, 0
    %p278 = por %p276, %p277
    %p279 = scmp.ne.s32.totalorder %s268, %s271
    %p280 = scmp.eq.s32.totalorder %s22, 1
    %p281 = por %p279, %p280
    %p282 = scmp.ne.s32.totalorder %s271, %s272
    %p283 = scmp.eq.s32.totalorder %s22, 0
    %p284 = por %p282, %p283
    %p285 = scmp.ne.s32.totalorder %s271, %s272
    %p286 = scmp.eq.s32.totalorder %s23, 1
    %p287 = por %p285, %p286
    %p289 = scmp.ne.s32.totalorder %s272, %s288
    %p290 = scmp.eq.s32.totalorder %s23, 0
    %p291 = por %p289, %p290
    %p292 = scmp.le.s32.totalorder 1, %s17
    %p293 = scmp.lt.s32.totalorder %s17, 3
    %p294 = pnand %p292, %p293
    %p295 = pneg %p294
    // Predicated region
    $region9: #{decoder_forward.2} parent=5 // pred_check
      _
    $region10: #{decoder_forward.2} parent=5 // pred_check_branch
      %297 = sbr.rel (%p294) target = $region12
    $region11: #{decoder_forward.2} parent=5 // pred_region
      %s298 = ssub.s32 %s17, 1
      // Predicated region
      $region13: #{decoder_forward.2} parent=11 // pred_check
        %p299 = pneg %p90
      $region14: #{decoder_forward.2} parent=11 // pred_check_branch
        %301 = sbr.rel (%p299) target = $region16
      $region15: #{decoder_forward.2} parent=11 // pred_region
        _
      $region16: #{decoder_forward.2} parent=11 // pred_fallthru
        _
      // Predicated region
      $region17: #{decoder_forward.2} parent=11 // pred_check
        %p302 = pneg %p111
      $region18: #{decoder_forward.2} parent=11 // pred_check_branch
        %304 = sbr.rel (%p302) target = $region20
      $region19: #{decoder_forward.2} parent=11 // pred_region
        _
      $region20: #{decoder_forward.2} parent=11 // pred_fallthru
        _
      // Predicated region
      $region21: #{decoder_forward.2} parent=11 // pred_check
        %p305 = pneg %p132
      $region22: #{decoder_forward.2} parent=11 // pred_check_branch
        %307 = sbr.rel (%p305) target = $region24
      $region23: #{decoder_forward.2} parent=11 // pred_region
        _
      $region24: #{decoder_forward.2} parent=11 // pred_fallthru
        _
      // Predicated region
      $region25: #{decoder_forward.2} parent=11 // pred_check
        %p308 = pneg %p153
      $region26: #{decoder_forward.2} parent=11 // pred_check_branch
        %310 = sbr.rel (%p308) target = $region28
      $region27: #{decoder_forward.2} parent=11 // pred_region
        _
      $region28: #{decoder_forward.2} parent=11 // pred_fallthru
        _
      // Predicated region
      $region29: #{decoder_forward.2} parent=11 // pred_check
        %p311 = pneg %p174
      $region30: #{decoder_forward.2} parent=11 // pred_check_branch
        %313 = sbr.rel (%p311) target = $region32
      $region31: #{decoder_forward.2} parent=11 // pred_region
        _
      $region32: #{decoder_forward.2} parent=11 // pred_fallthru
        _
      // Predicated region
      $region33: #{decoder_forward.2} parent=11 // pred_check
        %p314 = pneg %p195
      $region34: #{decoder_forward.2} parent=11 // pred_check_branch
        %316 = sbr.rel (%p314) target = $region36
      $region35: #{decoder_forward.2} parent=11 // pred_region
        _
      $region36: #{decoder_forward.2} parent=11 // pred_fallthru
        _
      // Predicated region
      $region37: #{decoder_forward.2} parent=11 // pred_check
        %p317 = pneg %p216
      $region38: #{decoder_forward.2} parent=11 // pred_check_branch
        %319 = sbr.rel (%p317) target = $region40
      $region39: #{decoder_forward.2} parent=11 // pred_region
        _
      $region40: #{decoder_forward.2} parent=11 // pred_fallthru
        _
      // Predicated region
      $region41: #{decoder_forward.2} parent=11 // pred_check
        %p320 = pneg %p237
      $region42: #{decoder_forward.2} parent=11 // pred_check_branch
        %322 = sbr.rel (%p320) target = $region44
      $region43: #{decoder_forward.2} parent=11 // pred_region
        _
      $region44: #{decoder_forward.2} parent=11 // pred_fallthru
        _
      // Predicated region
      $region45: #{decoder_forward.2} parent=11 // pred_check
        %p323 = pneg %p258
      $region46: #{decoder_forward.2} parent=11 // pred_check_branch
        %325 = sbr.rel (%p323) target = $region48
      $region47: #{decoder_forward.2} parent=11 // pred_region
        _
      $region48: #{decoder_forward.2} parent=11 // pred_fallthru
        _
    $region12: #{decoder_forward.2} parent=5 // pred_fallthru
      _
    %p326 = scmp.lt.s32.totalorder %s17, 2
    // Predicated region
    $region49: #{decoder_forward.2} parent=5 // pred_check
      %p327 = pneg %p326
    $region50: #{decoder_forward.2} parent=5 // pred_check_branch
      %329 = sbr.rel (%p327) target = $region52
    $region51: #{decoder_forward.2} parent=5 // pred_region
      // Predicated region
      $region53: #{decoder_forward.2} parent=51 // pred_check
        %p330 = pneg %p37
      $region54: #{decoder_forward.2} parent=51 // pred_check_branch
        %332 = sbr.rel (%p330) target = $region56
      $region55: #{decoder_forward.2} parent=51 // pred_region
        %p333 = scmp.lt.s32.totalorder %s17, 1
        %s334 = scalar_select %p333, %s17, 1
        %s335 = smul.addr %s334, 8
        %s336 = scalar_lea.vmem %s0, %s335
      $region56: #{decoder_forward.2} parent=51 // pred_fallthru
        _
      // Predicated region
      $region57: #{decoder_forward.2} parent=51 // pred_check
        %p337 = pneg %p63
      $region58: #{decoder_forward.2} parent=51 // pred_check_branch
        %339 = sbr.rel (%p337) target = $region60
      $region59: #{decoder_forward.2} parent=51 // pred_region
        %p340 = scmp.lt.s32.totalorder %s17, 1
        %s341 = scalar_select %p340, %s17, 1
        %s342 = smul.addr %s341, 8
        %s343 = scalar_lea.vmem %s1, %s342
      $region60: #{decoder_forward.2} parent=51 // pred_fallthru
        _
    $region52: #{decoder_forward.2} parent=5 // pred_fallthru
      _
    %p344 = scmp.le.s32.totalorder 1, %s17
    %p345 = scmp.lt.s32.totalorder %s17, 3
    %p346 = pnand %p344, %p345
    %p347 = pneg %p346
    // Predicated region
    $region61: #{decoder_forward.2} parent=5 // pred_check
      _
    $region62: #{decoder_forward.2} parent=5 // pred_check_branch
      %349 = sbr.rel (%p346) target = $region64
    $region63: #{decoder_forward.2} parent=5 // pred_region
      %s350 = ssub.s32 %s17, 1
      %p351 = scmp.lt.s32.totalorder %s22, 1
      %s352 = scalar_select %p351, %s22, 1
      %s353 = smul.addr %s352, 8
      %s354 = scalar_lea.vmem %s0, %s353
      %p355 = pneg %p43
      %p356 = pneg %p40
      %p357 = scmp.lt.s32.totalorder %s22, 1
      %s358 = scalar_select %p357, %s22, 1
      %s359 = smul.addr %s358, 8
      %s360 = scalar_lea.vmem %s1, %s359
      %p361 = pneg %p69
      %p362 = pneg %p66
      %p363 = pneg %p90
      %p364 = pneg %p87
      %p365 = pneg %p111
      %p366 = pneg %p108
      %p367 = pneg %p132
      %p368 = pneg %p129
      %p369 = pneg %p153
      %p370 = pneg %p150
      %p371 = pneg %p174
      %p372 = pneg %p171
      %p373 = pneg %p195
      %p374 = pneg %p192
      %p375 = pneg %p216
      %p376 = pneg %p213
      %p377 = pneg %p237
      %p378 = pneg %p234
      %p379 = pneg %p258
      %p380 = pneg %p255
      %p381 = pneg %p284
      %p382 = pneg %p281
      %p383 = scmp.lt.s32.totalorder %s22, 1
      %s384 = scalar_select %p383, %s22, 1
      %s385 = smul.addr %s384, 8
      %s386 = scalar_lea.vmem %s11, %s385
      %p387 = scmp.lt.s32.totalorder %s22, 1
      %s388 = scalar_select %p387, %s22, 1
      %s389 = smul.addr %s388, 8
      %s390 = scalar_lea.vmem %s0, %s389
      %p391 = scmp.lt.s32.totalorder %s22, 1
      %s392 = scalar_select %p391, %s22, 1
      %s393 = smul.addr %s392, 8
      %s394 = scalar_lea.vmem %s1, %s393
      %p395 = scmp.lt.s32.totalorder %s22, 1
      %s396 = scalar_select %p395, %s22, 1
      %s397 = smul.addr %s396, 8
      %s398 = scalar_lea.vmem %s11, %s397
      %v399 = vld [vmem:[%s390] sm:$0xff]
      %v400 = vld [vmem:[%s394] sm:$0xff]
      %v401 = vld [vmem:[%s5] sm:$0x1]
      %v402 = vld [vmem:[%s6] sm:$0x1]
      %v403 = vld [vmem:[%s2] sm:$0xff]
      %v404 = vld [vmem:[%s2 + $0x8] sm:$0xff]
      %v405 = vld [vmem:[%s2 + $0x10] sm:$0xff]
      %v406 = vld [vmem:[%s2 + $0x18] sm:$0xff]
      %v407 = vld [vmem:[%s3] sm:$0xff]
      %v408 = vld [vmem:[%s3 + $0x8] sm:$0xff]
      %v409 = vld [vmem:[%s3 + $0x10] sm:$0xff]
      %v410 = vld [vmem:[%s3 + $0x18] sm:$0xff]
      %v411 = vld [vmem:[%s4] sm:$0x1]
      %vm412 = vcmask 261120
      %v414 = vsel %vm412, %v399, 0
      %416 = vmatprep.subr.mxu0 0.0
      %417 = vmatpush1.msra.mxu0 %v403
      %418 = vmatprep.subr.mxu0 0.0
      %419 = vmatpush1.msra.mxu0 %v404
      %420 = vmatprep.subr.mxu0 0.0
      %421 = vmatpush1.msra.mxu0 %v405
      %422 = vmatprep.subr.mxu0 0.0
      %423 = vmatpush1.msra.mxu0 %v406
      %424 = vmatprep.subr.mxu0 0.0
      %425 = vmatpush1.msra.mxu0 0.0
      %426 = vmatprep.subr.mxu0 0.0
      %427 = vmatpush1.msra.mxu0 0.0
      %428 = vmatprep.subr.mxu0 0.0
      %429 = vmatpush1.msra.mxu0 0.0
      %430 = vmatprep.subr.mxu0 0.0
      %431 = vmatpush1.msra.mxu0 0.0
      %432 = vmatprep.subr.mxu0 0.0
      %433 = vmatpush1.msra.mxu0 0.0
      %434 = vmatprep.subr.mxu0 0.0
      %435 = vmatpush1.msra.mxu0 0.0
      %436 = vmatprep.subr.mxu0 0.0
      %437 = vmatpush1.msra.mxu0 0.0
      %438 = vmatprep.subr.mxu0 0.0
      %439 = vmatpush1.msra.mxu0 0.0
      %440 = vmatprep.subr.mxu0 0.0
      %441 = vmatpush1.msra.mxu0 0.0
      %442 = vmatprep.subr.mxu0 0.0
      %443 = vmatpush1.msra.mxu0 0.0
      %444 = vmatprep.subr.mxu0 0.0
      %445 = vmatpush1.msra.mxu0 0.0
      %446 = vmatprep.subr.mxu0 0.0
      %447 = vmatpush1.msra.mxu0 0.0
      %448 = vmatprep.subr.mxu0 0.0
      %449 = vmatpush1.msra.mxu0 0.0
      %450 = vmatprep.subr.mxu0 0.0
      %451 = vmatpush1.msra.mxu0 0.0
      %452 = vmatprep.subr.mxu0 0.0
      %453 = vmatpush1.msra.mxu0 0.0
      %454 = vmatprep.subr.mxu0 0.0
      %455 = vmatpush1.msra.mxu0 0.0
      %456 = vmatprep.subr.mxu0 0.0
      %457 = vmatpush1.msra.mxu0 0.0
      %458 = vmatprep.subr.mxu0 0.0
      %459 = vmatpush1.msra.mxu0 0.0
      %460 = vmatprep.subr.mxu0 0.0
      %461 = vmatpush1.msra.mxu0 0.0
      %462 = vmatprep.subr.mxu0 0.0
      %463 = vmatpush1.msra.mxu0 0.0
      %464 = vmatprep.subr.mxu0 0.0
      %465 = vmatpush1.msra.mxu0 0.0
      %466 = vmatprep.subr.mxu0 0.0
      %467 = vmatpush1.msra.mxu0 0.0
      %468 = vmatprep.subr.mxu0 0.0
      %469 = vmatpush1.msra.mxu0 0.0
      %470 = vmatprep.subr.mxu0 0.0
      %471 = vmatpush1.msra.mxu0 0.0
      %472 = vmatprep.subr.mxu0 0.0
      %473 = vmatpush1.msra.mxu0 0.0
      %474 = vmatprep.subr.mxu0 0.0
      %475 = vmatpush1.msra.mxu0 0.0
      %476 = vmatprep.subr.mxu0 0.0
      %477 = vmatpush1.msra.mxu0 0.0
      %478 = vmatprep.subr.mxu0 0.0
      %479 = vmatpush1.msra.mxu0 0.0
      %480 = vmatprep.mubr.f32.mxu0 0.0
      %481 = vmatmul.mubr.f32.gmra.mrb[0].mxu0 %v414
      %v482 = vpop.f32.mrb[0].mxu0
      %v483 = vadd.f32 0.0, %v482
      %v484 = vpop.f32.mrb[0].mxu0
      %485 = vdwg.mxu0
      %v486 = vmul.f32 %v483, 0.35355338
      %488 = vrot.lane.b32.xlu0 %v483, 96
      %v489 = vpop.permute.xlu0 %488
      %vm490 = vcmask 64512
      %v492 = vsel %vm490, %v486, 0
      %v494 = vsel %vm490, %v489, 0
      %496 = vmatprep.subr.mxu0 0.0
      %497 = vmatpush1.xpose.msra.mxu0 %v494
      %498 = vmatprep.subr.mxu0 0.0
      %499 = vmatpush1.xpose.msra.mxu0 0.0
      %500 = vmatprep.subr.mxu0 0.0
      %501 = vmatpush1.xpose.msra.mxu0 0.0
      %502 = vmatprep.subr.mxu0 0.0
      %503 = vmatpush1.xpose.msra.mxu0 0.0
      %504 = vmatprep.subr.mxu0 0.0
      %505 = vmatpush1.xpose.msra.mxu0 0.0
      %506 = vmatprep.subr.mxu0 0.0
      %507 = vmatpush1.xpose.msra.mxu0 0.0
      %508 = vmatprep.subr.mxu0 0.0
      %509 = vmatpush1.xpose.msra.mxu0 0.0
      %510 = vmatprep.subr.mxu0 0.0
      %511 = vmatpush1.xpose.msra.mxu0 0.0
      %512 = vmatprep.subr.mxu0 0.0
      %513 = vmatpush1.xpose.msra.mxu0 0.0
      %514 = vmatprep.subr.mxu0 0.0
      %515 = vmatpush1.xpose.msra.mxu0 0.0
      %516 = vmatprep.subr.mxu0 0.0
      %517 = vmatpush1.xpose.msra.mxu0 0.0
      %518 = vmatprep.subr.mxu0 0.0
      %519 = vmatpush1.xpose.msra.mxu0 0.0
      %520 = vmatprep.subr.mxu0 0.0
      %521 = vmatpush1.xpose.msra.mxu0 0.0
      %522 = vmatprep.subr.mxu0 0.0
      %523 = vmatpush1.xpose.msra.mxu0 0.0
      %524 = vmatprep.subr.mxu0 0.0
      %525 = vmatpush1.xpose.msra.mxu0 0.0
      %526 = vmatprep.subr.mxu0 0.0
      %527 = vmatpush1.xpose.msra.mxu0 0.0
      %528 = vmatprep.subr.mxu0 0.0
      %529 = vmatpush1.xpose.msra.mxu0 0.0
      %530 = vmatprep.subr.mxu0 0.0
      %531 = vmatpush1.xpose.msra.mxu0 0.0
      %532 = vmatprep.subr.mxu0 0.0
      %533 = vmatpush1.xpose.msra.mxu0 0.0
      %534 = vmatprep.subr.mxu0 0.0
      %535 = vmatpush1.xpose.msra.mxu0 0.0
      %536 = vmatprep.subr.mxu0 0.0
      %537 = vmatpush1.xpose.msra.mxu0 0.0
      %538 = vmatprep.subr.mxu0 0.0
      %539 = vmatpush1.xpose.msra.mxu0 0.0
      %540 = vmatprep.subr.mxu0 0.0
      %541 = vmatpush1.xpose.msra.mxu0 0.0
      %542 = vmatprep.subr.mxu0 0.0
      %543 = vmatpush1.xpose.msra.mxu0 0.0
      %544 = vmatprep.subr.mxu0 0.0
      %545 = vmatpush1.xpose.msra.mxu0 0.0
      %546 = vmatprep.subr.mxu0 0.0
      %547 = vmatpush1.xpose.msra.mxu0 0.0
      %548 = vmatprep.subr.mxu0 0.0
      %549 = vmatpush1.xpose.msra.mxu0 0.0
      %550 = vmatprep.subr.mxu0 0.0
      %551 = vmatpush1.xpose.msra.mxu0 0.0
      %552 = vmatprep.subr.mxu0 0.0
      %553 = vmatpush1.xpose.msra.mxu0 0.0
      %554 = vmatprep.subr.mxu0 0.0
      %555 = vmatpush1.xpose.msra.mxu0 0.0
      %556 = vmatprep.subr.mxu0 0.0
      %557 = vmatpush1.xpose.msra.mxu0 0.0
      %558 = vmatprep.subr.mxu0 0.0
      %559 = vmatpush1.xpose.msra.mxu0 0.0
      %560 = vmatprep.mubr.f32.mxu0 0.0
      %561 = vmatmul.mubr.f32.gmra.mrb[0].mxu0 %v492
      %v562 = vpop.f32.mrb[0].mxu0
      %v563 = vadd.f32 0.0, %v562
      %v564 = vpop.f32.mrb[0].mxu0
      %565 = vdwg.mxu0
      %v566 = vsel %vm490, %v563, -inf
      %567 = vmax.xlane.f32.xlu0 %v566
      %v568 = vpop.xlane.xlu0 %567
      %v569 = vsub.f32 %v563, %v568
      %v570 = vmul.f32 %v569, 1.442695
      %v571 = vpow.pop %v570
      %v572 = vsel %vm490, %v571, 0.0
      %573 = vadd.xlane.f32.xlu0 %v572
      %v574 = vpop.xlane.xlu0 %573
      %v575 = vrcp.pop %v574
      %v576 = vmul.f32 %v571, %v575
      %577 = vrot.lane.b32.xlu0 %v483, 64
      %v578 = vpop.permute.xlu0 %577
      %v581 = vsel %vm490, %v576, 0
      %583 = vmatprep.subr.mxu0 0.0
      %584 = vmatpush1.msra.mxu0 %v578
      %585 = vmatprep.subr.mxu0 0.0
      %586 = vmatpush1.msra.mxu0 0.0
      %587 = vmatprep.subr.mxu0 0.0
      %588 = vmatpush1.msra.mxu0 0.0
      %589 = vmatprep.subr.mxu0 0.0
      %590 = vmatpush1.msra.mxu0 0.0
      %591 = vmatprep.subr.mxu0 0.0
      %592 = vmatpush1.msra.mxu0 0.0
      %593 = vmatprep.subr.mxu0 0.0
      %594 = vmatpush1.msra.mxu0 0.0
      %595 = vmatprep.subr.mxu0 0.0
      %596 = vmatpush1.msra.mxu0 0.0
      %597 = vmatprep.subr.mxu0 0.0
      %598 = vmatpush1.msra.mxu0 0.0
      %599 = vmatprep.subr.mxu0 0.0
      %600 = vmatpush1.msra.mxu0 0.0
      %601 = vmatprep.subr.mxu0 0.0
      %602 = vmatpush1.msra.mxu0 0.0
      %603 = vmatprep.subr.mxu0 0.0
      %604 = vmatpush1.msra.mxu0 0.0
      %605 = vmatprep.subr.mxu0 0.0
      %606 = vmatpush1.msra.mxu0 0.0
      %607 = vmatprep.subr.mxu0 0.0
      %608 = vmatpush1.msra.mxu0 0.0
      %609 = vmatprep.subr.mxu0 0.0
      %610 = vmatpush1.msra.mxu0 0.0
      %611 = vmatprep.subr.mxu0 0.0
      %612 = vmatpush1.msra.mxu0 0.0
      %613 = vmatprep.subr.mxu0 0.0
      %614 = vmatpush1.msra.mxu0 0.0
      %615 = vmatprep.subr.mxu0 0.0
      %616 = vmatpush1.msra.mxu0 0.0
      %617 = vmatprep.subr.mxu0 0.0
      %618 = vmatpush1.msra.mxu0 0.0
      %619 = vmatprep.subr.mxu0 0.0
      %620 = vmatpush1.msra.mxu0 0.0
      %621 = vmatprep.subr.mxu0 0.0
      %622 = vmatpush1.msra.mxu0 0.0
      %623 = vmatprep.subr.mxu0 0.0
      %624 = vmatpush1.msra.mxu0 0.0
      %625 = vmatprep.subr.mxu0 0.0
      %626 = vmatpush1.msra.mxu0 0.0
      %627 = vmatprep.subr.mxu0 0.0
      %628 = vmatpush1.msra.mxu0 0.0
      %629 = vmatprep.subr.mxu0 0.0
      %630 = vmatpush1.msra.mxu0 0.0
      %631 = vmatprep.subr.mxu0 0.0
      %632 = vmatpush1.msra.mxu0 0.0
      %633 = vmatprep.subr.mxu0 0.0
      %634 = vmatpush1.msra.mxu0 0.0
      %635 = vmatprep.subr.mxu0 0.0
      %636 = vmatpush1.msra.mxu0 0.0
      %637 = vmatprep.subr.mxu0 0.0
      %638 = vmatpush1.msra.mxu0 0.0
      %639 = vmatprep.subr.mxu0 0.0
      %640 = vmatpush1.msra.mxu0 0.0
      %641 = vmatprep.subr.mxu0 0.0
      %642 = vmatpush1.msra.mxu0 0.0
      %643 = vmatprep.subr.mxu0 0.0
      %644 = vmatpush1.msra.mxu0 0.0
      %645 = vmatprep.subr.mxu0 0.0
      %646 = vmatpush1.msra.mxu0 0.0
      %647 = vmatprep.mubr.f32.mxu0 0.0
      %648 = vmatmul.mubr.f32.gmra.mrb[0].mxu0 %v581
      %v649 = vpop.f32.mrb[0].mxu0
      %v650 = vadd.f32 0.0, %v649
      %v651 = vpop.f32.mrb[0].mxu0
      %652 = vdwg.mxu0
      %653 = vrot.lane.b32.xlu0 %v486, 120
      %v654 = vpop.permute.xlu0 %653
      %655 = vrot.lane.b32.xlu0 %v483, 88
      %v656 = vpop.permute.xlu0 %655
      %v657 = vsel %vm490, %v654, 0
      %v659 = vsel %vm490, %v656, 0
      %661 = vmatprep.subr.mxu0 0.0
      %662 = vmatpush1.xpose.msra.mxu0 %v659
      %663 = vmatprep.subr.mxu0 0.0
      %664 = vmatpush1.xpose.msra.mxu0 0.0
      %665 = vmatprep.subr.mxu0 0.0
      %666 = vmatpush1.xpose.msra.mxu0 0.0
      %667 = vmatprep.subr.mxu0 0.0
      %668 = vmatpush1.xpose.msra.mxu0 0.0
      %669 = vmatprep.subr.mxu0 0.0
      %670 = vmatpush1.xpose.msra.mxu0 0.0
      %671 = vmatprep.subr.mxu0 0.0
      %672 = vmatpush1.xpose.msra.mxu0 0.0
      %673 = vmatprep.subr.mxu0 0.0
      %674 = vmatpush1.xpose.msra.mxu0 0.0
      %675 = vmatprep.subr.mxu0 0.0
      %676 = vmatpush1.xpose.msra.mxu0 0.0
      %677 = vmatprep.subr.mxu0 0.0
      %678 = vmatpush1.xpose.msra.mxu0 0.0
      %679 = vmatprep.subr.mxu0 0.0
      %680 = vmatpush1.xpose.msra.mxu0 0.0
      %681 = vmatprep.subr.mxu0 0.0
      %682 = vmatpush1.xpose.msra.mxu0 0.0
      %683 = vmatprep.subr.mxu0 0.0
      %684 = vmatpush1.xpose.msra.mxu0 0.0
      %685 = vmatprep.subr.mxu0 0.0
      %686 = vmatpush1.xpose.msra.mxu0 0.0
      %687 = vmatprep.subr.mxu0 0.0
      %688 = vmatpush1.xpose.msra.mxu0 0.0
      %689 = vmatprep.subr.mxu0 0.0
      %690 = vmatpush1.xpose.msra.mxu0 0.0
      %691 = vmatprep.subr.mxu0 0.0
      %692 = vmatpush1.xpose.msra.mxu0 0.0
      %693 = vmatprep.subr.mxu0 0.0
      %694 = vmatpush1.xpose.msra.mxu0 0.0
      %695 = vmatprep.subr.mxu0 0.0
      %696 = vmatpush1.xpose.msra.mxu0 0.0
      %697 = vmatprep.subr.mxu0 0.0
      %698 = vmatpush1.xpose.msra.mxu0 0.0
      %699 = vmatprep.subr.mxu0 0.0
      %700 = vmatpush1.xpose.msra.mxu0 0.0
      %701 = vmatprep.subr.mxu0 0.0
      %702 = vmatpush1.xpose.msra.mxu0 0.0
      %703 = vmatprep.subr.mxu0 0.0
      %704 = vmatpush1.xpose.msra.mxu0 0.0
      %705 = vmatprep.subr.mxu0 0.0
      %706 = vmatpush1.xpose.msra.mxu0 0.0
      %707 = vmatprep.subr.mxu0 0.0
      %708 = vmatpush1.xpose.msra.mxu0 0.0
      %709 = vmatprep.subr.mxu0 0.0
      %710 = vmatpush1.xpose.msra.mxu0 0.0
      %711 = vmatprep.subr.mxu0 0.0
      %712 = vmatpush1.xpose.msra.mxu0 0.0
      %713 = vmatprep.subr.mxu0 0.0
      %714 = vmatpush1.xpose.msra.mxu0 0.0
      %715 = vmatprep.subr.mxu0 0.0
      %716 = vmatpush1.xpose.msra.mxu0 0.0
      %717 = vmatprep.subr.mxu0 0.0
      %718 = vmatpush1.xpose.msra.mxu0 0.0
      %719 = vmatprep.subr.mxu0 0.0
      %720 = vmatpush1.xpose.msra.mxu0 0.0
      %721 = vmatprep.subr.mxu0 0.0
      %722 = vmatpush1.xpose.msra.mxu0 0.0
      %723 = vmatprep.subr.mxu0 0.0
      %724 = vmatpush1.xpose.msra.mxu0 0.0
      %725 = vmatprep.mubr.f32.mxu0 0.0
      %726 = vmatmul.mubr.f32.gmra.mrb[0].mxu0 %v657
      %v727 = vpop.f32.mrb[0].mxu0
      %v728 = vadd.f32 0.0, %v727
      %v729 = vpop.f32.mrb[0].mxu0
      %730 = vdwg.mxu0
      %v731 = vsel %vm490, %v728, -inf
      %732 = vmax.xlane.f32.xlu0 %v731
      %v733 = vpop.xlane.xlu0 %732
      %v734 = vsub.f32 %v728, %v733
      %v735 = vmul.f32 %v734, 1.442695
      %v736 = vpow.pop %v735
      %v737 = vsel %vm490, %v736, 0.0
      %738 = vadd.xlane.f32.xlu0 %v737
      %v739 = vpop.xlane.xlu0 %738
      %v740 = vrcp.pop %v739
      %v741 = vmul.f32 %v736, %v740
      %742 = vrot.lane.b32.xlu0 %v483, 56
      %v743 = vpop.permute.xlu0 %742
      %v746 = vsel %vm490, %v741, 0
      %748 = vmatprep.subr.mxu0 0.0
      %749 = vmatpush1.msra.mxu0 %v743
      %750 = vmatprep.subr.mxu0 0.0
      %751 = vmatpush1.msra.mxu0 0.0
      %752 = vmatprep.subr.mxu0 0.0
      %753 = vmatpush1.msra.mxu0 0.0
      %754 = vmatprep.subr.mxu0 0.0
      %755 = vmatpush1.msra.mxu0 0.0
      %756 = vmatprep.subr.mxu0 0.0
      %757 = vmatpush1.msra.mxu0 0.0
      %758 = vmatprep.subr.mxu0 0.0
      %759 = vmatpush1.msra.mxu0 0.0
      %760 = vmatprep.subr.mxu0 0.0
      %761 = vmatpush1.msra.mxu0 0.0
      %762 = vmatprep.subr.mxu0 0.0
      %763 = vmatpush1.msra.mxu0 0.0
      %764 = vmatprep.subr.mxu0 0.0
      %765 = vmatpush1.msra.mxu0 0.0
      %766 = vmatprep.subr.mxu0 0.0
      %767 = vmatpush1.msra.mxu0 0.0
      %768 = vmatprep.subr.mxu0 0.0
      %769 = vmatpush1.msra.mxu0 0.0
      %770 = vmatprep.subr.mxu0 0.0
      %771 = vmatpush1.msra.mxu0 0.0
      %772 = vmatprep.subr.mxu0 0.0
      %773 = vmatpush1.msra.mxu0 0.0
      %774 = vmatprep.subr.mxu0 0.0
      %775 = vmatpush1.msra.mxu0 0.0
      %776 = vmatprep.subr.mxu0 0.0
      %777 = vmatpush1.msra.mxu0 0.0
      %778 = vmatprep.subr.mxu0 0.0
      %779 = vmatpush1.msra.mxu0 0.0
      %780 = vmatprep.subr.mxu0 0.0
      %781 = vmatpush1.msra.mxu0 0.0
      %782 = vmatprep.subr.mxu0 0.0
      %783 = vmatpush1.msra.mxu0 0.0
      %784 = vmatprep.subr.mxu0 0.0
      %785 = vmatpush1.msra.mxu0 0.0
      %786 = vmatprep.subr.mxu0 0.0
      %787 = vmatpush1.msra.mxu0 0.0
      %788 = vmatprep.subr.mxu0 0.0
      %789 = vmatpush1.msra.mxu0 0.0
      %790 = vmatprep.subr.mxu0 0.0
      %791 = vmatpush1.msra.mxu0 0.0
      %792 = vmatprep.subr.mxu0 0.0
      %793 = vmatpush1.msra.mxu0 0.0
      %794 = vmatprep.subr.mxu0 0.0
      %795 = vmatpush1.msra.mxu0 0.0
      %796 = vmatprep.subr.mxu0 0.0
      %797 = vmatpush1.msra.mxu0 0.0
      %798 = vmatprep.subr.mxu0 0.0
      %799 = vmatpush1.msra.mxu0 0.0
      %800 = vmatprep.subr.mxu0 0.0
      %801 = vmatpush1.msra.mxu0 0.0
      %802 = vmatprep.subr.mxu0 0.0
      %803 = vmatpush1.msra.mxu0 0.0
      %804 = vmatprep.subr.mxu0 0.0
      %805 = vmatpush1.msra.mxu0 0.0
      %806 = vmatprep.subr.mxu0 0.0
      %807 = vmatpush1.msra.mxu0 0.0
      %808 = vmatprep.subr.mxu0 0.0
      %809 = vmatpush1.msra.mxu0 0.0
      %810 = vmatprep.subr.mxu0 0.0
      %811 = vmatpush1.msra.mxu0 0.0
      %812 = vmatprep.mubr.f32.mxu0 0.0
      %813 = vmatmul.mubr.f32.gmra.mrb[0].mxu0 %v746
      %v814 = vpop.f32.mrb[0].mxu0
      %v815 = vadd.f32 0.0, %v814
      %v816 = vpop.f32.mrb[0].mxu0
      %817 = vdwg.mxu0
      %818 = vrot.lane.b32.xlu0 %v486, 112
      %v819 = vpop.permute.xlu0 %818
      %820 = vrot.lane.b32.xlu0 %v483, 80
      %v821 = vpop.permute.xlu0 %820
      %v822 = vsel %vm490, %v819, 0
      %v824 = vsel %vm490, %v821, 0
      %826 = vmatprep.subr.mxu0 0.0
      %827 = vmatpush1.xpose.msra.mxu0 %v824
      %828 = vmatprep.subr.mxu0 0.0
      %829 = vmatpush1.xpose.msra.mxu0 0.0
      %830 = vmatprep.subr.mxu0 0.0
      %831 = vmatpush1.xpose.msra.mxu0 0.0
      %832 = vmatprep.subr.mxu0 0.0
      %833 = vmatpush1.xpose.msra.mxu0 0.0
      %834 = vmatprep.subr.mxu0 0.0
      %835 = vmatpush1.xpose.msra.mxu0 0.0
      %836 = vmatprep.subr.mxu0 0.0
      %837 = vmatpush1.xpose.msra.mxu0 0.0
      %838 = vmatprep.subr.mxu0 0.0
      %839 = vmatpush1.xpose.msra.mxu0 0.0
      %840 = vmatprep.subr.mxu0 0.0
      %841 = vmatpush1.xpose.msra.mxu0 0.0
      %842 = vmatprep.subr.mxu0 0.0
      %843 = vmatpush1.xpose.msra.mxu0 0.0
      %844 = vmatprep.subr.mxu0 0.0
      %845 = vmatpush1.xpose.msra.mxu0 0.0
      %846 = vmatprep.subr.mxu0 0.0
      %847 = vmatpush1.xpose.msra.mxu0 0.0
      %848 = vmatprep.subr.mxu0 0.0
      %849 = vmatpush1.xpose.msra.mxu0 0.0
      %850 = vmatprep.subr.mxu0 0.0
      %851 = vmatpush1.xpose.msra.mxu0 0.0
      %852 = vmatprep.subr.mxu0 0.0
      %853 = vmatpush1.xpose.msra.mxu0 0.0
      %854 = vmatprep.subr.mxu0 0.0
      %855 = vmatpush1.xpose.msra.mxu0 0.0
      %856 = vmatprep.subr.mxu0 0.0
      %857 = vmatpush1.xpose.msra.mxu0 0.0
      %858 = vmatprep.subr.mxu0 0.0
      %859 = vmatpush1.xpose.msra.mxu0 0.0
      %860 = vmatprep.subr.mxu0 0.0
      %861 = vmatpush1.xpose.msra.mxu0 0.0
      %862 = vmatprep.subr.mxu0 0.0
      %863 = vmatpush1.xpose.msra.mxu0 0.0
      %864 = vmatprep.subr.mxu0 0.0
      %865 = vmatpush1.xpose.msra.mxu0 0.0
      %866 = vmatprep.subr.mxu0 0.0
      %867 = vmatpush1.xpose.msra.mxu0 0.0
      %868 = vmatprep.subr.mxu0 0.0
      %869 = vmatpush1.xpose.msra.mxu0 0.0
      %870 = vmatprep.subr.mxu0 0.0
      %871 = vmatpush1.xpose.msra.mxu0 0.0
      %872 = vmatprep.subr.mxu0 0.0
      %873 = vmatpush1.xpose.msra.mxu0 0.0
      %874 = vmatprep.subr.mxu0 0.0
      %875 = vmatpush1.xpose.msra.mxu0 0.0
      %876 = vmatprep.subr.mxu0 0.0
      %877 = vmatpush1.xpose.msra.mxu0 0.0
      %878 = vmatprep.subr.mxu0 0.0
      %879 = vmatpush1.xpose.msra.mxu0 0.0
      %880 = vmatprep.subr.mxu0 0.0
      %881 = vmatpush1.xpose.msra.mxu0 0.0
      %882 = vmatprep.subr.mxu0 0.0
      %883 = vmatpush1.xpose.msra.mxu0 0.0
      %884 = vmatprep.subr.mxu0 0.0
      %885 = vmatpush1.xpose.msra.mxu0 0.0
      %886 = vmatprep.subr.mxu0 0.0
      %887 = vmatpush1.xpose.msra.mxu0 0.0
      %888 = vmatprep.subr.mxu0 0.0
      %889 = vmatpush1.xpose.msra.mxu0 0.0
      %890 = vmatprep.mubr.f32.mxu0 0.0
      %891 = vmatmul.mubr.f32.gmra.mrb[0].mxu0 %v822
      %v892 = vpop.f32.mrb[0].mxu0
      %v893 = vadd.f32 0.0, %v892
      %v894 = vpop.f32.mrb[0].mxu0
      %895 = vdwg.mxu0
      %v896 = vsel %vm490, %v893, -inf
      %897 = vmax.xlane.f32.xlu0 %v896
      %v898 = vpop.xlane.xlu0 %897
      %v899 = vsub.f32 %v893, %v898
      %v900 = vmul.f32 %v899, 1.442695
      %v901 = vpow.pop %v900
      %v902 = vsel %vm490, %v901, 0.0
      %903 = vadd.xlane.f32.xlu0 %v902
      %v904 = vpop.xlane.xlu0 %903
      %v905 = vrcp.pop %v904
      %v906 = vmul.f32 %v901, %v905
      %907 = vrot.lane.b32.xlu0 %v483, 48
      %v908 = vpop.permute.xlu0 %907
      %v911 = vsel %vm490, %v906, 0
      %913 = vmatprep.subr.mxu0 0.0
      %914 = vmatpush1.msra.mxu0 %v908
      %915 = vmatprep.subr.mxu0 0.0
      %916 = vmatpush1.msra.mxu0 0.0
      %917 = vmatprep.subr.mxu0 0.0
      %918 = vmatpush1.msra.mxu0 0.0
      %919 = vmatprep.subr.mxu0 0.0
      %920 = vmatpush1.msra.mxu0 0.0
      %921 = vmatprep.subr.mxu0 0.0
      %922 = vmatpush1.msra.mxu0 0.0
      %923 = vmatprep.subr.mxu0 0.0
      %924 = vmatpush1.msra.mxu0 0.0
      %925 = vmatprep.subr.mxu0 0.0
      %926 = vmatpush1.msra.mxu0 0.0
      %927 = vmatprep.subr.mxu0 0.0
      %928 = vmatpush1.msra.mxu0 0.0
      %929 = vmatprep.subr.mxu0 0.0
      %930 = vmatpush1.msra.mxu0 0.0
      %931 = vmatprep.subr.mxu0 0.0
      %932 = vmatpush1.msra.mxu0 0.0
      %933 = vmatprep.subr.mxu0 0.0
      %934 = vmatpush1.msra.mxu0 0.0
      %935 = vmatprep.subr.mxu0 0.0
      %936 = vmatpush1.msra.mxu0 0.0
      %937 = vmatprep.subr.mxu0 0.0
      %938 = vmatpush1.msra.mxu0 0.0
      %939 = vmatprep.subr.mxu0 0.0
      %940 = vmatpush1.msra.mxu0 0.0
      %941 = vmatprep.subr.mxu0 0.0
      %942 = vmatpush1.msra.mxu0 0.0
      %943 = vmatprep.subr.mxu0 0.0
      %944 = vmatpush1.msra.mxu0 0.0
      %945 = vmatprep.subr.mxu0 0.0
      %946 = vmatpush1.msra.mxu0 0.0
      %947 = vmatprep.subr.mxu0 0.0
      %948 = vmatpush1.msra.mxu0 0.0
      %949 = vmatprep.subr.mxu0 0.0
      %950 = vmatpush1.msra.mxu0 0.0
      %951 = vmatprep.subr.mxu0 0.0
      %952 = vmatpush1.msra.mxu0 0.0
      %953 = vmatprep.subr.mxu0 0.0
      %954 = vmatpush1.msra.mxu0 0.0
      %955 = vmatprep.subr.mxu0 0.0
      %956 = vmatpush1.msra.mxu0 0.0
      %957 = vmatprep.subr.mxu0 0.0
      %958 = vmatpush1.msra.mxu0 0.0
      %959 = vmatprep.subr.mxu0 0.0
      %960 = vmatpush1.msra.mxu0 0.0
      %961 = vmatprep.subr.mxu0 0.0
      %962 = vmatpush1.msra.mxu0 0.0
      %963 = vmatprep.subr.mxu0 0.0
      %964 = vmatpush1.msra.mxu0 0.0
      %965 = vmatprep.subr.mxu0 0.0
      %966 = vmatpush1.msra.mxu0 0.0
      %967 = vmatprep.subr.mxu0 0.0
      %968 = vmatpush1.msra.mxu0 0.0
      %969 = vmatprep.subr.mxu0 0.0
      %970 = vmatpush1.msra.mxu0 0.0
      %971 = vmatprep.subr.mxu0 0.0
      %972 = vmatpush1.msra.mxu0 0.0
      %973 = vmatprep.subr.mxu0 0.0
      %974 = vmatpush1.msra.mxu0 0.0
      %975 = vmatprep.subr.mxu0 0.0
      %976 = vmatpush1.msra.mxu0 0.0
      %977 = vmatprep.mubr.f32.mxu0 0.0
      %978 = vmatmul.mubr.f32.gmra.mrb[0].mxu0 %v911
      %v979 = vpop.f32.mrb[0].mxu0
      %v980 = vadd.f32 0.0, %v979
      %v981 = vpop.f32.mrb[0].mxu0
      %982 = vdwg.mxu0
      %983 = vrot.lane.b32.xlu0 %v486, 104
      %v984 = vpop.permute.xlu0 %983
      %985 = vrot.lane.b32.xlu0 %v483, 72
      %v986 = vpop.permute.xlu0 %985
      %v987 = vsel %vm490, %v984, 0
      %v989 = vsel %vm490, %v986, 0
      %991 = vmatprep.subr.mxu0 0.0
      %992 = vmatpush1.xpose.msra.mxu0 %v989
      %993 = vmatprep.subr.mxu0 0.0
      %994 = vmatpush1.xpose.msra.mxu0 0.0
      %995 = vmatprep.subr.mxu0 0.0
      %996 = vmatpush1.xpose.msra.mxu0 0.0
      %997 = vmatprep.subr.mxu0 0.0
      %998 = vmatpush1.xpose.msra.mxu0 0.0
      %999 = vmatprep.subr.mxu0 0.0
      %1000 = vmatpush1.xpose.msra.mxu0 0.0
      %1001 = vmatprep.subr.mxu0 0.0
      %1002 = vmatpush1.xpose.msra.mxu0 0.0
      %1003 = vmatprep.subr.mxu0 0.0
      %1004 = vmatpush1.xpose.msra.mxu0 0.0
      %1005 = vmatprep.subr.mxu0 0.0
      %1006 = vmatpush1.xpose.msra.mxu0 0.0
      %1007 = vmatprep.subr.mxu0 0.0
      %1008 = vmatpush1.xpose.msra.mxu0 0.0
      %1009 = vmatprep.subr.mxu0 0.0
      %1010 = vmatpush1.xpose.msra.mxu0 0.0
      %1011 = vmatprep.subr.mxu0 0.0
      %1012 = vmatpush1.xpose.msra.mxu0 0.0
      %1013 = vmatprep.subr.mxu0 0.0
      %1014 = vmatpush1.xpose.msra.mxu0 0.0
      %1015 = vmatprep.subr.mxu0 0.0
      %1016 = vmatpush1.xpose.msra.mxu0 0.0
      %1017 = vmatprep.subr.mxu0 0.0
      %1018 = vmatpush1.xpose.msra.mxu0 0.0
      %1019 = vmatprep.subr.mxu0 0.0
      %1020 = vmatpush1.xpose.msra.mxu0 0.0
      %1021 = vmatprep.subr.mxu0 0.0
      %1022 = vmatpush1.xpose.msra.mxu0 0.0
      %1023 = vmatprep.subr.mxu0 0.0
      %1024 = vmatpush1.xpose.msra.mxu0 0.0
      %1025 = vmatprep.subr.mxu0 0.0
      %1026 = vmatpush1.xpose.msra.mxu0 0.0
      %1027 = vmatprep.subr.mxu0 0.0
      %1028 = vmatpush1.xpose.msra.mxu0 0.0
      %1029 = vmatprep.subr.mxu0 0.0
      %1030 = vmatpush1.xpose.msra.mxu0 0.0
      %1031 = vmatprep.subr.mxu0 0.0
      %1032 = vmatpush1.xpose.msra.mxu0 0.0
      %1033 = vmatprep.subr.mxu0 0.0
      %1034 = vmatpush1.xpose.msra.mxu0 0.0
      %1035 = vmatprep.subr.mxu0 0.0
      %1036 = vmatpush1.xpose.msra.mxu0 0.0
      %1037 = vmatprep.subr.mxu0 0.0
      %1038 = vmatpush1.xpose.msra.mxu0 0.0
      %1039 = vmatprep.subr.mxu0 0.0
      %1040 = vmatpush1.xpose.msra.mxu0 0.0
      %1041 = vmatprep.subr.mxu0 0.0
      %1042 = vmatpush1.xpose.msra.mxu0 0.0
      %1043 = vmatprep.subr.mxu0 0.0
      %1044 = vmatpush1.xpose.msra.mxu0 0.0
      %1045 = vmatprep.subr.mxu0 0.0
      %1046 = vmatpush1.xpose.msra.mxu0 0.0
      %1047 = vmatprep.subr.mxu0 0.0
      %1048 = vmatpush1.xpose.msra.mxu0 0.0
      %1049 = vmatprep.subr.mxu0 0.0
      %1050 = vmatpush1.xpose.msra.mxu0 0.0
      %1051 = vmatprep.subr.mxu0 0.0
      %1052 = vmatpush1.xpose.msra.mxu0 0.0
      %1053 = vmatprep.subr.mxu0 0.0
      %1054 = vmatpush1.xpose.msra.mxu0 0.0
      %1055 = vmatprep.mubr.f32.mxu0 0.0
      %1056 = vmatmul.mubr.f32.gmra.mrb[0].mxu0 %v987
      %v1057 = vpop.f32.mrb[0].mxu0
      %v1058 = vadd.f32 0.0, %v1057
      %v1059 = vpop.f32.mrb[0].mxu0
      %1060 = vdwg.mxu0
      %v1061 = vsel %vm490, %v1058, -inf
      %1062 = vmax.xlane.f32.xlu0 %v1061
      %v1063 = vpop.xlane.xlu0 %1062
      %v1064 = vsub.f32 %v1058, %v1063
      %v1065 = vmul.f32 %v1064, 1.442695
      %v1066 = vpow.pop %v1065
      %v1067 = vsel %vm490, %v1066, 0.0
      %1068 = vadd.xlane.f32.xlu0 %v1067
      %v1069 = vpop.xlane.xlu0 %1068
      %v1070 = vrcp.pop %v1069
      %v1071 = vmul.f32 %v1066, %v1070
      %1072 = vrot.lane.b32.xlu0 %v483, 40
      %v1073 = vpop.permute.xlu0 %1072
      %v1076 = vsel %vm490, %v1071, 0
      %1078 = vmatprep.subr.mxu0 0.0
      %1079 = vmatpush1.msra.mxu0 %v1073
      %1080 = vmatprep.subr.mxu0 0.0
      %1081 = vmatpush1.msra.mxu0 0.0
      %1082 = vmatprep.subr.mxu0 0.0
      %1083 = vmatpush1.msra.mxu0 0.0
      %1084 = vmatprep.subr.mxu0 0.0
      %1085 = vmatpush1.msra.mxu0 0.0
      %1086 = vmatprep.subr.mxu0 0.0
      %1087 = vmatpush1.msra.mxu0 0.0
      %1088 = vmatprep.subr.mxu0 0.0
      %1089 = vmatpush1.msra.mxu0 0.0
      %1090 = vmatprep.subr.mxu0 0.0
      %1091 = vmatpush1.msra.mxu0 0.0
      %1092 = vmatprep.subr.mxu0 0.0
      %1093 = vmatpush1.msra.mxu0 0.0
      %1094 = vmatprep.subr.mxu0 0.0
      %1095 = vmatpush1.msra.mxu0 0.0
      %1096 = vmatprep.subr.mxu0 0.0
      %1097 = vmatpush1.msra.mxu0 0.0
      %1098 = vmatprep.subr.mxu0 0.0
      %1099 = vmatpush1.msra.mxu0 0.0
      %1100 = vmatprep.subr.mxu0 0.0
      %1101 = vmatpush1.msra.mxu0 0.0
      %1102 = vmatprep.subr.mxu0 0.0
      %1103 = vmatpush1.msra.mxu0 0.0
      %1104 = vmatprep.subr.mxu0 0.0
      %1105 = vmatpush1.msra.mxu0 0.0
      %1106 = vmatprep.subr.mxu0 0.0
      %1107 = vmatpush1.msra.mxu0 0.0
      %1108 = vmatprep.subr.mxu0 0.0
      %1109 = vmatpush1.msra.mxu0 0.0
      %1110 = vmatprep.subr.mxu0 0.0
      %1111 = vmatpush1.msra.mxu0 0.0
      %1112 = vmatprep.subr.mxu0 0.0
      %1113 = vmatpush1.msra.mxu0 0.0
      %1114 = vmatprep.subr.mxu0 0.0
      %1115 = vmatpush1.msra.mxu0 0.0
      %1116 = vmatprep.subr.mxu0 0.0
      %1117 = vmatpush1.msra.mxu0 0.0
      %1118 = vmatprep.subr.mxu0 0.0
      %1119 = vmatpush1.msra.mxu0 0.0
      %1120 = vmatprep.subr.mxu0 0.0
      %1121 = vmatpush1.msra.mxu0 0.0
      %1122 = vmatprep.subr.mxu0 0.0
      %1123 = vmatpush1.msra.mxu0 0.0
      %1124 = vmatprep.subr.mxu0 0.0
      %1125 = vmatpush1.msra.mxu0 0.0
      %1126 = vmatprep.subr.mxu0 0.0
      %1127 = vmatpush1.msra.mxu0 0.0
      %1128 = vmatprep.subr.mxu0 0.0
      %1129 = vmatpush1.msra.mxu0 0.0
      %1130 = vmatprep.subr.mxu0 0.0
      %1131 = vmatpush1.msra.mxu0 0.0
      %1132 = vmatprep.subr.mxu0 0.0
      %1133 = vmatpush1.msra.mxu0 0.0
      %1134 = vmatprep.subr.mxu0 0.0
      %1135 = vmatpush1.msra.mxu0 0.0
      %1136 = vmatprep.subr.mxu0 0.0
      %1137 = vmatpush1.msra.mxu0 0.0
      %1138 = vmatprep.subr.mxu0 0.0
      %1139 = vmatpush1.msra.mxu0 0.0
      %1140 = vmatprep.subr.mxu0 0.0
      %1141 = vmatpush1.msra.mxu0 0.0
      %1142 = vmatprep.mubr.f32.mxu0 0.0
      %1143 = vmatmul.mubr.f32.gmra.mrb[0].mxu0 %v1076
      %v1144 = vpop.f32.mrb[0].mxu0
      %v1145 = vadd.f32 0.0, %v1144
      %v1146 = vpop.f32.mrb[0].mxu0
      %1147 = vdwg.mxu0
      %1149 = vrot.lane.b32.xlu0 %v815, 8
      %v1150 = vpop.permute.xlu0 %1149
      %1153 = vrot.lane.b32.xlu0 %v980, 16
      %v1154 = vpop.permute.xlu0 %1153
      %1157 = vrot.lane.b32.xlu0 %v1145, 24
      %v1158 = vpop.permute.xlu0 %1157
      %v1160 = vsel %vm490, %v650, %v1150
      %vm1161 = vcmask 130048
      %v1162 = vsel %vm1161, %v1160, %v1154
      %vm1163 = vcmask 195584
      %v1164 = vsel %vm1163, %v1162, %v1158
      %v1166 = vlaneseq
      %v1167 = vshrl.u32 %v1166, 7
      %v1168 = vsub.s32 0, %v1167
      %v1169 = vrot.slane %v411, %v1168
      %v1172 = vsel %vm412, %v1164, 0
      %1174 = vmatprep.subr.mxu0 0.0
      %1175 = vmatpush1.msra.mxu0 %v407
      %1176 = vmatprep.subr.mxu0 0.0
      %1177 = vmatpush1.msra.mxu0 %v408
      %1178 = vmatprep.subr.mxu0 0.0
      %1179 = vmatpush1.msra.mxu0 %v409
      %1180 = vmatprep.subr.mxu0 0.0
      %1181 = vmatpush1.msra.mxu0 %v410
      %1182 = vmatprep.subr.mxu0 0.0
      %1183 = vmatpush1.msra.mxu0 0.0
      %1184 = vmatprep.subr.mxu0 0.0
      %1185 = vmatpush1.msra.mxu0 0.0
      %1186 = vmatprep.subr.mxu0 0.0
      %1187 = vmatpush1.msra.mxu0 0.0
      %1188 = vmatprep.subr.mxu0 0.0
      %1189 = vmatpush1.msra.mxu0 0.0
      %1190 = vmatprep.subr.mxu0 0.0
      %1191 = vmatpush1.msra.mxu0 0.0
      %1192 = vmatprep.subr.mxu0 0.0
      %1193 = vmatpush1.msra.mxu0 0.0
      %1194 = vmatprep.subr.mxu0 0.0
      %1195 = vmatpush1.msra.mxu0 0.0
      %1196 = vmatprep.subr.mxu0 0.0
      %1197 = vmatpush1.msra.mxu0 0.0
      %1198 = vmatprep.subr.mxu0 0.0
      %1199 = vmatpush1.msra.mxu0 0.0
      %1200 = vmatprep.subr.mxu0 0.0
      %1201 = vmatpush1.msra.mxu0 0.0
      %1202 = vmatprep.subr.mxu0 0.0
      %1203 = vmatpush1.msra.mxu0 0.0
      %1204 = vmatprep.subr.mxu0 0.0
      %1205 = vmatpush1.msra.mxu0 0.0
      %1206 = vmatprep.subr.mxu0 0.0
      %1207 = vmatpush1.msra.mxu0 0.0
      %1208 = vmatprep.subr.mxu0 0.0
      %1209 = vmatpush1.msra.mxu0 0.0
      %1210 = vmatprep.subr.mxu0 0.0
      %1211 = vmatpush1.msra.mxu0 0.0
      %1212 = vmatprep.subr.mxu0 0.0
      %1213 = vmatpush1.msra.mxu0 0.0
      %1214 = vmatprep.subr.mxu0 0.0
      %1215 = vmatpush1.msra.mxu0 0.0
      %1216 = vmatprep.subr.mxu0 0.0
      %1217 = vmatpush1.msra.mxu0 0.0
      %1218 = vmatprep.subr.mxu0 0.0
      %1219 = vmatpush1.msra.mxu0 0.0
      %1220 = vmatprep.subr.mxu0 0.0
      %1221 = vmatpush1.msra.mxu0 0.0
      %1222 = vmatprep.subr.mxu0 0.0
      %1223 = vmatpush1.msra.mxu0 0.0
      %1224 = vmatprep.subr.mxu0 0.0
      %1225 = vmatpush1.msra.mxu0 0.0
      %1226 = vmatprep.subr.mxu0 0.0
      %1227 = vmatpush1.msra.mxu0 0.0
      %1228 = vmatprep.subr.mxu0 0.0
      %1229 = vmatpush1.msra.mxu0 0.0
      %1230 = vmatprep.subr.mxu0 0.0
      %1231 = vmatpush1.msra.mxu0 0.0
      %1232 = vmatprep.subr.mxu0 0.0
      %1233 = vmatpush1.msra.mxu0 0.0
      %1234 = vmatprep.subr.mxu0 0.0
      %1235 = vmatpush1.msra.mxu0 0.0
      %1236 = vmatprep.subr.mxu0 0.0
      %1237 = vmatpush1.msra.mxu0 0.0
      %1238 = vmatprep.mubr.f32.mxu0 0.0
      %1239 = vmatmul.mubr.f32.gmra.mrb[0].mxu0 %v1172
      %v1240 = vpop.f32.mrb[0].mxu0
      %v1241 = vadd.f32 %v1169, %v1240
      %v1242 = vpop.f32.mrb[0].mxu0
      %1243 = vdwg.mxu0
      %v1244 = vadd.f32 %v1241, %v399
      %v1245 = vsel %vm412, %v1244, 0.0
      %1246 = vadd.xlane.f32.xlu0 %v1245
      %v1247 = vpop.xlane.xlu0 %1246
      %v1248 = vrcp.pop 32.0
      %v1249 = vmul.f32 %v1247, %v1248
      %v1250 = vsub.f32 %v1244, %v1249
      %v1251 = vmul.f32 %v1250, %v1250
      %v1252 = vsel %vm412, %v1251, 0.0
      %1253 = vadd.xlane.f32.xlu0 %v1252
      %v1254 = vpop.xlane.xlu0 %1253
      %v1255 = vmul.f32 %v1254, %v1248
      %v1256 = vadd.f32 %v1255, 1e-05
      %v1257 = vrsqrt.pop %v1256
      %v1258 = vmul.f32 %v1250, %v1257
      %v1260 = vlaneseq
      %v1261 = vshrl.u32 %v1260, 7
      %v1262 = vsub.s32 0, %v1261
      %v1263 = vrot.slane %v401, %v1262
      %v1265 = vmul.f32 %v1258, %v1263
      %v1267 = vlaneseq
      %v1268 = vshrl.u32 %v1267, 7
      %v1269 = vsub.s32 0, %v1268
      %v1270 = vrot.slane %v402, %v1269
      %v1272 = vadd.f32 %v1265, %v1270
      %v1274 = vsel %vm412, %v1272, 0
      %1276 = vmatprep.subr.mxu0 0.0
      %1277 = vmatpush1.msra.mxu0 %v403
      %1278 = vmatprep.subr.mxu0 0.0
      %1279 = vmatpush1.msra.mxu0 %v404
      %1280 = vmatprep.subr.mxu0 0.0
      %1281 = vmatpush1.msra.mxu0 %v405
      %1282 = vmatprep.subr.mxu0 0.0
      %1283 = vmatpush1.msra.mxu0 %v406
      %1284 = vmatprep.subr.mxu0 0.0
      %1285 = vmatpush1.msra.mxu0 0.0
      %1286 = vmatprep.subr.mxu0 0.0
      %1287 = vmatpush1.msra.mxu0 0.0
      %1288 = vmatprep.subr.mxu0 0.0
      %1289 = vmatpush1.msra.mxu0 0.0
      %1290 = vmatprep.subr.mxu0 0.0
      %1291 = vmatpush1.msra.mxu0 0.0
      %1292 = vmatprep.subr.mxu0 0.0
      %1293 = vmatpush1.msra.mxu0 0.0
      %1294 = vmatprep.subr.mxu0 0.0
      %1295 = vmatpush1.msra.mxu0 0.0
      %1296 = vmatprep.subr.mxu0 0.0
      %1297 = vmatpush1.msra.mxu0 0.0
      %1298 = vmatprep.subr.mxu0 0.0
      %1299 = vmatpush1.msra.mxu0 0.0
      %1300 = vmatprep.subr.mxu0 0.0
      %1301 = vmatpush1.msra.mxu0 0.0
      %1302 = vmatprep.subr.mxu0 0.0
      %1303 = vmatpush1.msra.mxu0 0.0
      %1304 = vmatprep.subr.mxu0 0.0
      %1305 = vmatpush1.msra.mxu0 0.0
      %1306 = vmatprep.subr.mxu0 0.0
      %1307 = vmatpush1.msra.mxu0 0.0
      %1308 = vmatprep.subr.mxu0 0.0
      %1309 = vmatpush1.msra.mxu0 0.0
      %1310 = vmatprep.subr.mxu0 0.0
      %1311 = vmatpush1.msra.mxu0 0.0
      %1312 = vmatprep.subr.mxu0 0.0
      %1313 = vmatpush1.msra.mxu0 0.0
      %1314 = vmatprep.subr.mxu0 0.0
      %1315 = vmatpush1.msra.mxu0 0.0
      %1316 = vmatprep.subr.mxu0 0.0
      %1317 = vmatpush1.msra.mxu0 0.0
      %1318 = vmatprep.subr.mxu0 0.0
      %1319 = vmatpush1.msra.mxu0 0.0
      %1320 = vmatprep.subr.mxu0 0.0
      %1321 = vmatpush1.msra.mxu0 0.0
      %1322 = vmatprep.subr.mxu0 0.0
      %1323 = vmatpush1.msra.mxu0 0.0
      %1324 = vmatprep.subr.mxu0 0.0
      %1325 = vmatpush1.msra.mxu0 0.0
      %1326 = vmatprep.subr.mxu0 0.0
      %1327 = vmatpush1.msra.mxu0 0.0
      %1328 = vmatprep.subr.mxu0 0.0
      %1329 = vmatpush1.msra.mxu0 0.0
      %1330 = vmatprep.subr.mxu0 0.0
      %1331 = vmatpush1.msra.mxu0 0.0
      %1332 = vmatprep.subr.mxu0 0.0
      %1333 = vmatpush1.msra.mxu0 0.0
      %1334 = vmatprep.subr.mxu0 0.0
      %1335 = vmatpush1.msra.mxu0 0.0
      %1336 = vmatprep.subr.mxu0 0.0
      %1337 = vmatpush1.msra.mxu0 0.0
      %1338 = vmatprep.subr.mxu0 0.0
      %1339 = vmatpush1.msra.mxu0 0.0
      %1340 = vmatprep.mubr.f32.mxu0 0.0
      %1341 = vmatmul.mubr.f32.gmra.mrb[0].mxu0 %v1274
      %v1342 = vpop.f32.mrb[0].mxu0
      %v1343 = vadd.f32 0.0, %v1342
      %v1344 = vpop.f32.mrb[0].mxu0
      %1345 = vdwg.mxu0
      %1350 = vrot.lane.b32.xlu0 %v403, 96
      %v1351 = vpop.permute.xlu0 %1350
      %1352 = vrot.lane.b32.xlu0 %v404, 96
      %v1353 = vpop.permute.xlu0 %1352
      %1354 = vrot.lane.b32.xlu0 %v405, 96
      %v1355 = vpop.permute.xlu0 %1354
      %1356 = vrot.lane.b32.xlu0 %v406, 96
      %v1357 = vpop.permute.xlu0 %1356
      %v1363 = vsel %vm412, %v400, 0
      %1365 = vmatprep.subr.mxu0 0.0
      %1366 = vmatpush1.msra.mxu0 %v1351
      %1367 = vmatprep.subr.mxu0 0.0
      %1368 = vmatpush1.msra.mxu0 %v1353
      %1369 = vmatprep.subr.mxu0 0.0
      %1370 = vmatpush1.msra.mxu0 %v1355
      %1371 = vmatprep.subr.mxu0 0.0
      %1372 = vmatpush1.msra.mxu0 %v1357
      %1373 = vmatprep.subr.mxu0 0.0
      %1374 = vmatpush1.msra.mxu0 0.0
      %1375 = vmatprep.subr.mxu0 0.0
      %1376 = vmatpush1.msra.mxu0 0.0
      %1377 = vmatprep.subr.mxu0 0.0
      %1378 = vmatpush1.msra.mxu0 0.0
      %1379 = vmatprep.subr.mxu0 0.0
      %1380 = vmatpush1.msra.mxu0 0.0
      %1381 = vmatprep.subr.mxu0 0.0
      %1382 = vmatpush1.msra.mxu0 0.0
      %1383 = vmatprep.subr.mxu0 0.0
      %1384 = vmatpush1.msra.mxu0 0.0
      %1385 = vmatprep.subr.mxu0 0.0
      %1386 = vmatpush1.msra.mxu0 0.0
      %1387 = vmatprep.subr.mxu0 0.0
      %1388 = vmatpush1.msra.mxu0 0.0
      %1389 = vmatprep.subr.mxu0 0.0
      %1390 = vmatpush1.msra.mxu0 0.0
      %1391 = vmatprep.subr.mxu0 0.0
      %1392 = vmatpush1.msra.mxu0 0.0
      %1393 = vmatprep.subr.mxu0 0.0
      %1394 = vmatpush1.msra.mxu0 0.0
      %1395 = vmatprep.subr.mxu0 0.0
      %1396 = vmatpush1.msra.mxu0 0.0
      %1397 = vmatprep.subr.mxu0 0.0
      %1398 = vmatpush1.msra.mxu0 0.0
      %1399 = vmatprep.subr.mxu0 0.0
      %1400 = vmatpush1.msra.mxu0 0.0
      %1401 = vmatprep.subr.mxu0 0.0
      %1402 = vmatpush1.msra.mxu0 0.0
      %1403 = vmatprep.subr.mxu0 0.0
      %1404 = vmatpush1.msra.mxu0 0.0
      %1405 = vmatprep.subr.mxu0 0.0
      %1406 = vmatpush1.msra.mxu0 0.0
      %1407 = vmatprep.subr.mxu0 0.0
      %1408 = vmatpush1.msra.mxu0 0.0
      %1409 = vmatprep.subr.mxu0 0.0
      %1410 = vmatpush1.msra.mxu0 0.0
      %1411 = vmatprep.subr.mxu0 0.0
      %1412 = vmatpush1.msra.mxu0 0.0
      %1413 = vmatprep.subr.mxu0 0.0
      %1414 = vmatpush1.msra.mxu0 0.0
      %1415 = vmatprep.subr.mxu0 0.0
      %1416 = vmatpush1.msra.mxu0 0.0
      %1417 = vmatprep.subr.mxu0 0.0
      %1418 = vmatpush1.msra.mxu0 0.0
      %1419 = vmatprep.subr.mxu0 0.0
      %1420 = vmatpush1.msra.mxu0 0.0
      %1421 = vmatprep.subr.mxu0 0.0
      %1422 = vmatpush1.msra.mxu0 0.0
      %1423 = vmatprep.subr.mxu0 0.0
      %1424 = vmatpush1.msra.mxu0 0.0
      %1425 = vmatprep.subr.mxu0 0.0
      %1426 = vmatpush1.msra.mxu0 0.0
      %1427 = vmatprep.subr.mxu0 0.0
      %1428 = vmatpush1.msra.mxu0 0.0
      %1429 = vmatprep.mubr.f32.mxu0 0.0
      %1430 = vmatmul.mubr.f32.gmra.mrb[0].mxu0 %v1363
      %v1431 = vpop.f32.mrb[0].mxu0
      %v1432 = vadd.f32 0.0, %v1431
      %v1433 = vpop.f32.mrb[0].mxu0
      %1434 = vdwg.mxu0
      %v1435 = vmul.f32 %v1343, 0.35355338
      %v1437 = vsel %vm490, %v1435, 0
      %v1440 = vsel %vm490, %v1432, 0
      %1442 = vmatprep.subr.mxu0 0.0
      %1443 = vmatpush1.xpose.msra.mxu0 %v1440
      %1444 = vmatprep.subr.mxu0 0.0
      %1445 = vmatpush1.xpose.msra.mxu0 0.0
      %1446 = vmatprep.subr.mxu0 0.0
      %1447 = vmatpush1.xpose.msra.mxu0 0.0
      %1448 = vmatprep.subr.mxu0 0.0
      %1449 = vmatpush1.xpose.msra.mxu0 0.0
      %1450 = vmatprep.subr.mxu0 0.0
      %1451 = vmatpush1.xpose.msra.mxu0 0.0
      %1452 = vmatprep.subr.mxu0 0.0
      %1453 = vmatpush1.xpose.msra.mxu0 0.0
      %1454 = vmatprep.subr.mxu0 0.0
      %1455 = vmatpush1.xpose.msra.mxu0 0.0
      %1456 = vmatprep.subr.mxu0 0.0
      %1457 = vmatpush1.xpose.msra.mxu0 0.0
      %1458 = vmatprep.subr.mxu0 0.0
      %1459 = vmatpush1.xpose.msra.mxu0 0.0
      %1460 = vmatprep.subr.mxu0 0.0
      %1461 = vmatpush1.xpose.msra.mxu0 0.0
      %1462 = vmatprep.subr.mxu0 0.0
      %1463 = vmatpush1.xpose.msra.mxu0 0.0
      %1464 = vmatprep.subr.mxu0 0.0
      %1465 = vmatpush1.xpose.msra.mxu0 0.0
      %1466 = vmatprep.subr.mxu0 0.0
      %1467 = vmatpush1.xpose.msra.mxu0 0.0
      %1468 = vmatprep.subr.mxu0 0.0
      %1469 = vmatpush1.xpose.msra.mxu0 0.0
      %1470 = vmatprep.subr.mxu0 0.0
      %1471 = vmatpush1.xpose.msra.mxu0 0.0
      %1472 = vmatprep.subr.mxu0 0.0
      %1473 = vmatpush1.xpose.msra.mxu0 0.0
      %1474 = vmatprep.subr.mxu0 0.0
      %1475 = vmatpush1.xpose.msra.mxu0 0.0
      %1476 = vmatprep.subr.mxu0 0.0
      %1477 = vmatpush1.xpose.msra.mxu0 0.0
      %1478 = vmatprep.subr.mxu0 0.0
      %1479 = vmatpush1.xpose.msra.mxu0 0.0
      %1480 = vmatprep.subr.mxu0 0.0
      %1481 = vmatpush1.xpose.msra.mxu0 0.0
      %1482 = vmatprep.subr.mxu0 0.0
      %1483 = vmatpush1.xpose.msra.mxu0 0.0
      %1484 = vmatprep.subr.mxu0 0.0
      %1485 = vmatpush1.xpose.msra.mxu0 0.0
      %1486 = vmatprep.subr.mxu0 0.0
      %1487 = vmatpush1.xpose.msra.mxu0 0.0
      %1488 = vmatprep.subr.mxu0 0.0
      %1489 = vmatpush1.xpose.msra.mxu0 0.0
      %1490 = vmatprep.subr.mxu0 0.0
      %1491 = vmatpush1.xpose.msra.mxu0 0.0
      %1492 = vmatprep.subr.mxu0 0.0
      %1493 = vmatpush1.xpose.msra.mxu0 0.0
      %1494 = vmatprep.subr.mxu0 0.0
      %1495 = vmatpush1.xpose.msra.mxu0 0.0
      %1496 = vmatprep.subr.mxu0 0.0
      %1497 = vmatpush1.xpose.msra.mxu0 0.0
      %1498 = vmatprep.subr.mxu0 0.0
      %1499 = vmatpush1.xpose.msra.mxu0 0.0
      %1500 = vmatprep.subr.mxu0 0.0
      %1501 = vmatpush1.xpose.msra.mxu0 0.0
      %1502 = vmatprep.subr.mxu0 0.0
      %1503 = vmatpush1.xpose.msra.mxu0 0.0
      %1504 = vmatprep.subr.mxu0 0.0
      %1505 = vmatpush1.xpose.msra.mxu0 0.0
      %1506 = vmatprep.mubr.f32.mxu0 0.0
      %1507 = vmatmul.mubr.f32.gmra.mrb[0].mxu0 %v1437
      %v1508 = vpop.f32.mrb[0].mxu0
      %v1509 = vadd.f32 0.0, %v1508
      %v1510 = vpop.f32.mrb[0].mxu0
      %1511 = vdwg.mxu0
      %v1512 = vsel %vm490, %v1509, -inf
      %1513 = vmax.xlane.f32.xlu0 %v1512
      %v1514 = vpop.xlane.xlu0 %1513
      %v1515 = vsub.f32 %v1509, %v1514
      %v1516 = vmul.f32 %v1515, 1.442695
      %v1517 = vpow.pop %v1516
      %v1518 = vsel %vm490, %v1517, 0.0
      %1519 = vadd.xlane.f32.xlu0 %v1518
      %v1520 = vpop.xlane.xlu0 %1519
      %v1521 = vrcp.pop %v1520
      %v1522 = vmul.f32 %v1517, %v1521
      %1523 = vrot.lane.b32.xlu0 %v1432, 96
      %v1524 = vpop.permute.xlu0 %1523
      %v1527 = vsel %vm490, %v1522, 0
      %1529 = vmatprep.subr.mxu0 0.0
      %1530 = vmatpush1.msra.mxu0 %v1524
      %1531 = vmatprep.subr.mxu0 0.0
      %1532 = vmatpush1.msra.mxu0 0.0
      %1533 = vmatprep.subr.mxu0 0.0
      %1534 = vmatpush1.msra.mxu0 0.0
      %1535 = vmatprep.subr.mxu0 0.0
      %1536 = vmatpush1.msra.mxu0 0.0
      %1537 = vmatprep.subr.mxu0 0.0
      %1538 = vmatpush1.msra.mxu0 0.0
      %1539 = vmatprep.subr.mxu0 0.0
      %1540 = vmatpush1.msra.mxu0 0.0
      %1541 = vmatprep.subr.mxu0 0.0
      %1542 = vmatpush1.msra.mxu0 0.0
      %1543 = vmatprep.subr.mxu0 0.0
      %1544 = vmatpush1.msra.mxu0 0.0
      %1545 = vmatprep.subr.mxu0 0.0
      %1546 = vmatpush1.msra.mxu0 0.0
      %1547 = vmatprep.subr.mxu0 0.0
      %1548 = vmatpush1.msra.mxu0 0.0
      %1549 = vmatprep.subr.mxu0 0.0
      %1550 = vmatpush1.msra.mxu0 0.0
      %1551 = vmatprep.subr.mxu0 0.0
      %1552 = vmatpush1.msra.mxu0 0.0
      %1553 = vmatprep.subr.mxu0 0.0
      %1554 = vmatpush1.msra.mxu0 0.0
      %1555 = vmatprep.subr.mxu0 0.0
      %1556 = vmatpush1.msra.mxu0 0.0
      %1557 = vmatprep.subr.mxu0 0.0
      %1558 = vmatpush1.msra.mxu0 0.0
      %1559 = vmatprep.subr.mxu0 0.0
      %1560 = vmatpush1.msra.mxu0 0.0
      %1561 = vmatprep.subr.mxu0 0.0
      %1562 = vmatpush1.msra.mxu0 0.0
      %1563 = vmatprep.subr.mxu0 0.0
      %1564 = vmatpush1.msra.mxu0 0.0
      %1565 = vmatprep.subr.mxu0 0.0
      %1566 = vmatpush1.msra.mxu0 0.0
      %1567 = vmatprep.subr.mxu0 0.0
      %1568 = vmatpush1.msra.mxu0 0.0
      %1569 = vmatprep.subr.mxu0 0.0
      %1570 = vmatpush1.msra.mxu0 0.0
      %1571 = vmatprep.subr.mxu0 0.0
      %1572 = vmatpush1.msra.mxu0 0.0
      %1573 = vmatprep.subr.mxu0 0.0
      %1574 = vmatpush1.msra.mxu0 0.0
      %1575 = vmatprep.subr.mxu0 0.0
      %1576 = vmatpush1.msra.mxu0 0.0
      %1577 = vmatprep.subr.mxu0 0.0
      %1578 = vmatpush1.msra.mxu0 0.0
      %1579 = vmatprep.subr.mxu0 0.0
      %1580 = vmatpush1.msra.mxu0 0.0
      %1581 = vmatprep.subr.mxu0 0.0
      %1582 = vmatpush1.msra.mxu0 0.0
      %1583 = vmatprep.subr.mxu0 0.0
      %1584 = vmatpush1.msra.mxu0 0.0
      %1585 = vmatprep.subr.mxu0 0.0
      %1586 = vmatpush1.msra.mxu0 0.0
      %1587 = vmatprep.subr.mxu0 0.0
      %1588 = vmatpush1.msra.mxu0 0.0
      %1589 = vmatprep.subr.mxu0 0.0
      %1590 = vmatpush1.msra.mxu0 0.0
      %1591 = vmatprep.subr.mxu0 0.0
      %1592 = vmatpush1.msra.mxu0 0.0
      %1593 = vmatprep.mubr.f32.mxu0 0.0
      %1594 = vmatmul.mubr.f32.gmra.mrb[0].mxu0 %v1527
      %v1595 = vpop.f32.mrb[0].mxu0
      %v1596 = vadd.f32 0.0, %v1595
      %v1597 = vpop.f32.mrb[0].mxu0
      %1598 = vdwg.mxu0
      %1599 = vrot.lane.b32.xlu0 %v1435, 120
      %v1600 = vpop.permute.xlu0 %1599
      %1601 = vrot.lane.b32.xlu0 %v1432, 120
      %v1602 = vpop.permute.xlu0 %1601
      %v1603 = vsel %vm490, %v1600, 0
      %v1605 = vsel %vm490, %v1602, 0
      %1607 = vmatprep.subr.mxu0 0.0
      %1608 = vmatpush1.xpose.msra.mxu0 %v1605
      %1609 = vmatprep.subr.mxu0 0.0
      %1610 = vmatpush1.xpose.msra.mxu0 0.0
      %1611 = vmatprep.subr.mxu0 0.0
      %1612 = vmatpush1.xpose.msra.mxu0 0.0
      %1613 = vmatprep.subr.mxu0 0.0
      %1614 = vmatpush1.xpose.msra.mxu0 0.0
      %1615 = vmatprep.subr.mxu0 0.0
      %1616 = vmatpush1.xpose.msra.mxu0 0.0
      %1617 = vmatprep.subr.mxu0 0.0
      %1618 = vmatpush1.xpose.msra.mxu0 0.0
      %1619 = vmatprep.subr.mxu0 0.0
      %1620 = vmatpush1.xpose.msra.mxu0 0.0
      %1621 = vmatprep.subr.mxu0 0.0
      %1622 = vmatpush1.xpose.msra.mxu0 0.0
      %1623 = vmatprep.subr.mxu0 0.0
      %1624 = vmatpush1.xpose.msra.mxu0 0.0
      %1625 = vmatprep.subr.mxu0 0.0
      %1626 = vmatpush1.xpose.msra.mxu0 0.0
      %1627 = vmatprep.subr.mxu0 0.0
      %1628 = vmatpush1.xpose.msra.mxu0 0.0
      %1629 = vmatprep.subr.mxu0 0.0
      %1630 = vmatpush1.xpose.msra.mxu0 0.0
      %1631 = vmatprep.subr.mxu0 0.0
      %1632 = vmatpush1.xpose.msra.mxu0 0.0
      %1633 = vmatprep.subr.mxu0 0.0
      %1634 = vmatpush1.xpose.msra.mxu0 0.0
      %1635 = vmatprep.subr.mxu0 0.0
      %1636 = vmatpush1.xpose.msra.mxu0 0.0
      %1637 = vmatprep.subr.mxu0 0.0
      %1638 = vmatpush1.xpose.msra.mxu0 0.0
      %1639 = vmatprep.subr.mxu0 0.0
      %1640 = vmatpush1.xpose.msra.mxu0 0.0
      %1641 = vmatprep.subr.mxu0 0.0
      %1642 = vmatpush1.xpose.msra.mxu0 0.0
      %1643 = vmatprep.subr.mxu0 0.0
      %1644 = vmatpush1.xpose.msra.mxu0 0.0
      %1645 = vmatprep.subr.mxu0 0.0
      %1646 = vmatpush1.xpose.msra.mxu0 0.0
      %1647 = vmatprep.subr.mxu0 0.0
      %1648 = vmatpush1.xpose.msra.mxu0 0.0
      %1649 = vmatprep.subr.mxu0 0.0
      %1650 = vmatpush1.xpose.msra.mxu0 0.0
      %1651 = vmatprep.subr.mxu0 0.0
      %1652 = vmatpush1.xpose.msra.mxu0 0.0
      %1653 = vmatprep.subr.mxu0 0.0
      %1654 = vmatpush1.xpose.msra.mxu0 0.0
      %1655 = vmatprep.subr.mxu0 0.0
      %1656 = vmatpush1.xpose.msra.mxu0 0.0
      %1657 = vmatprep.subr.mxu0 0.0
      %1658 = vmatpush1.xpose.msra.mxu0 0.0
      %1659 = vmatprep.subr.mxu0 0.0
      %1660 = vmatpush1.xpose.msra.mxu0 0.0
      %1661 = vmatprep.subr.mxu0 0.0
      %1662 = vmatpush1.xpose.msra.mxu0 0.0
      %1663 = vmatprep.subr.mxu0 0.0
      %1664 = vmatpush1.xpose.msra.mxu0 0.0
      %1665 = vmatprep.subr.mxu0 0.0
      %1666 = vmatpush1.xpose.msra.mxu0 0.0
      %1667 = vmatprep.subr.mxu0 0.0
      %1668 = vmatpush1.xpose.msra.mxu0 0.0
      %1669 = vmatprep.subr.mxu0 0.0
      %1670 = vmatpush1.xpose.msra.mxu0 0.0
      %1671 = vmatprep.mubr.f32.mxu0 0.0
      %1672 = vmatmul.mubr.f32.gmra.mrb[0].mxu0 %v1603
      %v1673 = vpop.f32.mrb[0].mxu0
      %v1674 = vadd.f32 0.0, %v1673
      %v1675 = vpop.f32.mrb[0].mxu0
      %1676 = vdwg.mxu0
      %v1677 = vsel %vm490, %v1674, -inf
      %1678 = vmax.xlane.f32.xlu0 %v1677
      %v1679 = vpop.xlane.xlu0 %1678
      %v1680 = vsub.f32 %v1674, %v1679
      %v1681 = vmul.f32 %v1680, 1.442695
      %v1682 = vpow.pop %v1681
      %v1683 = vsel %vm490, %v1682, 0.0
      %1684 = vadd.xlane.f32.xlu0 %v1683
      %v1685 = vpop.xlane.xlu0 %1684
      %v1686 = vrcp.pop %v1685
      %v1687 = vmul.f32 %v1682, %v1686
      %1688 = vrot.lane.b32.xlu0 %v1432, 88
      %v1689 = vpop.permute.xlu0 %1688
      %v1692 = vsel %vm490, %v1687, 0
      %1694 = vmatprep.subr.mxu0 0.0
      %1695 = vmatpush1.msra.mxu0 %v1689
      %1696 = vmatprep.subr.mxu0 0.0
      %1697 = vmatpush1.msra.mxu0 0.0
      %1698 = vmatprep.subr.mxu0 0.0
      %1699 = vmatpush1.msra.mxu0 0.0
      %1700 = vmatprep.subr.mxu0 0.0
      %1701 = vmatpush1.msra.mxu0 0.0
      %1702 = vmatprep.subr.mxu0 0.0
      %1703 = vmatpush1.msra.mxu0 0.0
      %1704 = vmatprep.subr.mxu0 0.0
      %1705 = vmatpush1.msra.mxu0 0.0
      %1706 = vmatprep.subr.mxu0 0.0
      %1707 = vmatpush1.msra.mxu0 0.0
      %1708 = vmatprep.subr.mxu0 0.0
      %1709 = vmatpush1.msra.mxu0 0.0
      %1710 = vmatprep.subr.mxu0 0.0
      %1711 = vmatpush1.msra.mxu0 0.0
      %1712 = vmatprep.subr.mxu0 0.0
      %1713 = vmatpush1.msra.mxu0 0.0
      %1714 = vmatprep.subr.mxu0 0.0
      %1715 = vmatpush1.msra.mxu0 0.0
      %1716 = vmatprep.subr.mxu0 0.0
      %1717 = vmatpush1.msra.mxu0 0.0
      %1718 = vmatprep.subr.mxu0 0.0
      %1719 = vmatpush1.msra.mxu0 0.0
      %1720 = vmatprep.subr.mxu0 0.0
      %1721 = vmatpush1.msra.mxu0 0.0
      %1722 = vmatprep.subr.mxu0 0.0
      %1723 = vmatpush1.msra.mxu0 0.0
      %1724 = vmatprep.subr.mxu0 0.0
      %1725 = vmatpush1.msra.mxu0 0.0
      %1726 = vmatprep.subr.mxu0 0.0
      %1727 = vmatpush1.msra.mxu0 0.0
      %1728 = vmatprep.subr.mxu0 0.0
      %1729 = vmatpush1.msra.mxu0 0.0
      %1730 = vmatprep.subr.mxu0 0.0
      %1731 = vmatpush1.msra.mxu0 0.0
      %1732 = vmatprep.subr.mxu0 0.0
      %1733 = vmatpush1.msra.mxu0 0.0
      %1734 = vmatprep.subr.mxu0 0.0
      %1735 = vmatpush1.msra.mxu0 0.0
      %1736 = vmatprep.subr.mxu0 0.0
      %1737 = vmatpush1.msra.mxu0 0.0
      %1738 = vmatprep.subr.mxu0 0.0
      %1739 = vmatpush1.msra.mxu0 0.0
      %1740 = vmatprep.subr.mxu0 0.0
      %1741 = vmatpush1.msra.mxu0 0.0
      %1742 = vmatprep.subr.mxu0 0.0
      %1743 = vmatpush1.msra.mxu0 0.0
      %1744 = vmatprep.subr.mxu0 0.0
      %1745 = vmatpush1.msra.mxu0 0.0
      %1746 = vmatprep.subr.mxu0 0.0
      %1747 = vmatpush1.msra.mxu0 0.0
      %1748 = vmatprep.subr.mxu0 0.0
      %1749 = vmatpush1.msra.mxu0 0.0
      %1750 = vmatprep.subr.mxu0 0.0
      %1751 = vmatpush1.msra.mxu0 0.0
      %1752 = vmatprep.subr.mxu0 0.0
      %1753 = vmatpush1.msra.mxu0 0.0
      %1754 = vmatprep.subr.mxu0 0.0
      %1755 = vmatpush1.msra.mxu0 0.0
      %1756 = vmatprep.subr.mxu0 0.0
      %1757 = vmatpush1.msra.mxu0 0.0
      %1758 = vmatprep.mubr.f32.mxu0 0.0
      %1759 = vmatmul.mubr.f32.gmra.mrb[0].mxu0 %v1692
      %v1760 = vpop.f32.mrb[0].mxu0
      %v1761 = vadd.f32 0.0, %v1760
      %v1762 = vpop.f32.mrb[0].mxu0
      %1763 = vdwg.mxu0
      %1764 = vrot.lane.b32.xlu0 %v1435, 112
      %v1765 = vpop.permute.xlu0 %1764
      %1766 = vrot.lane.b32.xlu0 %v1432, 112
      %v1767 = vpop.permute.xlu0 %1766
      %v1768 = vsel %vm490, %v1765, 0
      %v1770 = vsel %vm490, %v1767, 0
      %1772 = vmatprep.subr.mxu0 0.0
      %1773 = vmatpush1.xpose.msra.mxu0 %v1770
      %1774 = vmatprep.subr.mxu0 0.0
      %1775 = vmatpush1.xpose.msra.mxu0 0.0
      %1776 = vmatprep.subr.mxu0 0.0
      %1777 = vmatpush1.xpose.msra.mxu0 0.0
      %1778 = vmatprep.subr.mxu0 0.0
      %1779 = vmatpush1.xpose.msra.mxu0 0.0
      %1780 = vmatprep.subr.mxu0 0.0
      %1781 = vmatpush1.xpose.msra.mxu0 0.0
      %1782 = vmatprep.subr.mxu0 0.0
      %1783 = vmatpush1.xpose.msra.mxu0 0.0
      %1784 = vmatprep.subr.mxu0 0.0
      %1785 = vmatpush1.xpose.msra.mxu0 0.0
      %1786 = vmatprep.subr.mxu0 0.0
      %1787 = vmatpush1.xpose.msra.mxu0 0.0
      %1788 = vmatprep.subr.mxu0 0.0
      %1789 = vmatpush1.xpose.msra.mxu0 0.0
      %1790 = vmatprep.subr.mxu0 0.0
      %1791 = vmatpush1.xpose.msra.mxu0 0.0
      %1792 = vmatprep.subr.mxu0 0.0
      %1793 = vmatpush1.xpose.msra.mxu0 0.0
      %1794 = vmatprep.subr.mxu0 0.0
      %1795 = vmatpush1.xpose.msra.mxu0 0.0
      %1796 = vmatprep.subr.mxu0 0.0
      %1797 = vmatpush1.xpose.msra.mxu0 0.0
      %1798 = vmatprep.subr.mxu0 0.0
      %1799 = vmatpush1.xpose.msra.mxu0 0.0
      %1800 = vmatprep.subr.mxu0 0.0
      %1801 = vmatpush1.xpose.msra.mxu0 0.0
      %1802 = vmatprep.subr.mxu0 0.0
      %1803 = vmatpush1.xpose.msra.mxu0 0.0
      %1804 = vmatprep.subr.mxu0 0.0
      %1805 = vmatpush1.xpose.msra.mxu0 0.0
      %1806 = vmatprep.subr.mxu0 0.0
      %1807 = vmatpush1.xpose.msra.mxu0 0.0
      %1808 = vmatprep.subr.mxu0 0.0
      %1809 = vmatpush1.xpose.msra.mxu0 0.0
      %1810 = vmatprep.subr.mxu0 0.0
      %1811 = vmatpush1.xpose.msra.mxu0 0.0
      %1812 = vmatprep.subr.mxu0 0.0
      %1813 = vmatpush1.xpose.msra.mxu0 0.0
      %1814 = vmatprep.subr.mxu0 0.0
      %1815 = vmatpush1.xpose.msra.mxu0 0.0
      %1816 = vmatprep.subr.mxu0 0.0
      %1817 = vmatpush1.xpose.msra.mxu0 0.0
      %1818 = vmatprep.subr.mxu0 0.0
      %1819 = vmatpush1.xpose.msra.mxu0 0.0
      %1820 = vmatprep.subr.mxu0 0.0
      %1821 = vmatpush1.xpose.msra.mxu0 0.0
      %1822 = vmatprep.subr.mxu0 0.0
      %1823 = vmatpush1.xpose.msra.mxu0 0.0
      %1824 = vmatprep.subr.mxu0 0.0
      %1825 = vmatpush1.xpose.msra.mxu0 0.0
      %1826 = vmatprep.subr.mxu0 0.0
      %1827 = vmatpush1.xpose.msra.mxu0 0.0
      %1828 = vmatprep.subr.mxu0 0.0
      %1829 = vmatpush1.xpose.msra.mxu0 0.0
      %1830 = vmatprep.subr.mxu0 0.0
      %1831 = vmatpush1.xpose.msra.mxu0 0.0
      %1832 = vmatprep.subr.mxu0 0.0
      %1833 = vmatpush1.xpose.msra.mxu0 0.0
      %1834 = vmatprep.subr.mxu0 0.0
      %1835 = vmatpush1.xpose.msra.mxu0 0.0
      %1836 = vmatprep.mubr.f32.mxu0 0.0
      %1837 = vmatmul.mubr.f32.gmra.mrb[0].mxu0 %v1768
      %v1838 = vpop.f32.mrb[0].mxu0
      %v1839 = vadd.f32 0.0, %v1838
      %v1840 = vpop.f32.mrb[0].mxu0
      %1841 = vdwg.mxu0
      %v1842 = vsel %vm490, %v1839, -inf
      %1843 = vmax.xlane.f32.xlu0 %v1842
      %v1844 = vpop.xlane.xlu0 %1843
      %v1845 = vsub.f32 %v1839, %v1844
      %v1846 = vmul.f32 %v1845, 1.442695
      %v1847 = vpow.pop %v1846
      %v1848 = vsel %vm490, %v1847, 0.0
      %1849 = vadd.xlane.f32.xlu0 %v1848
      %v1850 = vpop.xlane.xlu0 %1849
      %v1851 = vrcp.pop %v1850
      %v1852 = vmul.f32 %v1847, %v1851
      %1853 = vrot.lane.b32.xlu0 %v1432, 80
      %v1854 = vpop.permute.xlu0 %1853
      %v1857 = vsel %vm490, %v1852, 0
      %1859 = vmatprep.subr.mxu0 0.0
      %1860 = vmatpush1.msra.mxu0 %v1854
      %1861 = vmatprep.subr.mxu0 0.0
      %1862 = vmatpush1.msra.mxu0 0.0
      %1863 = vmatprep.subr.mxu0 0.0
      %1864 = vmatpush1.msra.mxu0 0.0
      %1865 = vmatprep.subr.mxu0 0.0
      %1866 = vmatpush1.msra.mxu0 0.0
      %1867 = vmatprep.subr.mxu0 0.0
      %1868 = vmatpush1.msra.mxu0 0.0
      %1869 = vmatprep.subr.mxu0 0.0
      %1870 = vmatpush1.msra.mxu0 0.0
      %1871 = vmatprep.subr.mxu0 0.0
      %1872 = vmatpush1.msra.mxu0 0.0
      %1873 = vmatprep.subr.mxu0 0.0
      %1874 = vmatpush1.msra.mxu0 0.0
      %1875 = vmatprep.subr.mxu0 0.0
      %1876 = vmatpush1.msra.mxu0 0.0
      %1877 = vmatprep.subr.mxu0 0.0
      %1878 = vmatpush1.msra.mxu0 0.0
      %1879 = vmatprep.subr.mxu0 0.0
      %1880 = vmatpush1.msra.mxu0 0.0
      %1881 = vmatprep.subr.mxu0 0.0
      %1882 = vmatpush1.msra.mxu0 0.0
      %1883 = vmatprep.subr.mxu0 0.0
      %1884 = vmatpush1.msra.mxu0 0.0
      %1885 = vmatprep.subr.mxu0 0.0
      %1886 = vmatpush1.msra.mxu0 0.0
      %1887 = vmatprep.subr.mxu0 0.0
      %1888 = vmatpush1.msra.mxu0 0.0
      %1889 = vmatprep.subr.mxu0 0.0
      %1890 = vmatpush1.msra.mxu0 0.0
      %1891 = vmatprep.subr.mxu0 0.0
      %1892 = vmatpush1.msra.mxu0 0.0
      %1893 = vmatprep.subr.mxu0 0.0
      %1894 = vmatpush1.msra.mxu0 0.0
      %1895 = vmatprep.subr.mxu0 0.0
      %1896 = vmatpush1.msra.mxu0 0.0
      %1897 = vmatprep.subr.mxu0 0.0
      %1898 = vmatpush1.msra.mxu0 0.0
      %1899 = vmatprep.subr.mxu0 0.0
      %1900 = vmatpush1.msra.mxu0 0.0
      %1901 = vmatprep.subr.mxu0 0.0
      %1902 = vmatpush1.msra.mxu0 0.0
      %1903 = vmatprep.subr.mxu0 0.0
      %1904 = vmatpush1.msra.mxu0 0.0
      %1905 = vmatprep.subr.mxu0 0.0
      %1906 = vmatpush1.msra.mxu0 0.0
      %1907 = vmatprep.subr.mxu0 0.0
      %1908 = vmatpush1.msra.mxu0 0.0
      %1909 = vmatprep.subr.mxu0 0.0
      %1910 = vmatpush1.msra.mxu0 0.0
      %1911 = vmatprep.subr.mxu0 0.0
      %1912 = vmatpush1.msra.mxu0 0.0
      %1913 = vmatprep.subr.mxu0 0.0
      %1914 = vmatpush1.msra.mxu0 0.0
      %1915 = vmatprep.subr.mxu0 0.0
      %1916 = vmatpush1.msra.mxu0 0.0
      %1917 = vmatprep.subr.mxu0 0.0
      %1918 = vmatpush1.msra.mxu0 0.0
      %1919 = vmatprep.subr.mxu0 0.0
      %1920 = vmatpush1.msra.mxu0 0.0
      %1921 = vmatprep.subr.mxu0 0.0
      %1922 = vmatpush1.msra.mxu0 0.0
      %1923 = vmatprep.mubr.f32.mxu0 0.0
      %1924 = vmatmul.mubr.f32.gmra.mrb[0].mxu0 %v1857
      %v1925 = vpop.f32.mrb[0].mxu0
      %v1926 = vadd.f32 0.0, %v1925
      %v1927 = vpop.f32.mrb[0].mxu0
      %1928 = vdwg.mxu0
      %1929 = vrot.lane.b32.xlu0 %v1435, 104
      %v1930 = vpop.permute.xlu0 %1929
      %1931 = vrot.lane.b32.xlu0 %v1432, 104
      %v1932 = vpop.permute.xlu0 %1931
      %v1933 = vsel %vm490, %v1930, 0
      %v1935 = vsel %vm490, %v1932, 0
      %1937 = vmatprep.subr.mxu0 0.0
      %1938 = vmatpush1.xpose.msra.mxu0 %v1935
      %1939 = vmatprep.subr.mxu0 0.0
      %1940 = vmatpush1.xpose.msra.mxu0 0.0
      %1941 = vmatprep.subr.mxu0 0.0
      %1942 = vmatpush1.xpose.msra.mxu0 0.0
      %1943 = vmatprep.subr.mxu0 0.0
      %1944 = vmatpush1.xpose.msra.mxu0 0.0
      %1945 = vmatprep.subr.mxu0 0.0
      %1946 = vmatpush1.xpose.msra.mxu0 0.0
      %1947 = vmatprep.subr.mxu0 0.0
      %1948 = vmatpush1.xpose.msra.mxu0 0.0
      %1949 = vmatprep.subr.mxu0 0.0
      %1950 = vmatpush1.xpose.msra.mxu0 0.0
      %1951 = vmatprep.subr.mxu0 0.0
      %1952 = vmatpush1.xpose.msra.mxu0 0.0
      %1953 = vmatprep.subr.mxu0 0.0
      %1954 = vmatpush1.xpose.msra.mxu0 0.0
      %1955 = vmatprep.subr.mxu0 0.0
      %1956 = vmatpush1.xpose.msra.mxu0 0.0
      %1957 = vmatprep.subr.mxu0 0.0
      %1958 = vmatpush1.xpose.msra.mxu0 0.0
      %1959 = vmatprep.subr.mxu0 0.0
      %1960 = vmatpush1.xpose.msra.mxu0 0.0
      %1961 = vmatprep.subr.mxu0 0.0
      %1962 = vmatpush1.xpose.msra.mxu0 0.0
      %1963 = vmatprep.subr.mxu0 0.0
      %1964 = vmatpush1.xpose.msra.mxu0 0.0
      %1965 = vmatprep.subr.mxu0 0.0
      %1966 = vmatpush1.xpose.msra.mxu0 0.0
      %1967 = vmatprep.subr.mxu0 0.0
      %1968 = vmatpush1.xpose.msra.mxu0 0.0
      %1969 = vmatprep.subr.mxu0 0.0
      %1970 = vmatpush1.xpose.msra.mxu0 0.0
      %1971 = vmatprep.subr.mxu0 0.0
      %1972 = vmatpush1.xpose.msra.mxu0 0.0
      %1973 = vmatprep.subr.mxu0 0.0
      %1974 = vmatpush1.xpose.msra.mxu0 0.0
      %1975 = vmatprep.subr.mxu0 0.0
      %1976 = vmatpush1.xpose.msra.mxu0 0.0
      %1977 = vmatprep.subr.mxu0 0.0
      %1978 = vmatpush1.xpose.msra.mxu0 0.0
      %1979 = vmatprep.subr.mxu0 0.0
      %1980 = vmatpush1.xpose.msra.mxu0 0.0
      %1981 = vmatprep.subr.mxu0 0.0
      %1982 = vmatpush1.xpose.msra.mxu0 0.0
      %1983 = vmatprep.subr.mxu0 0.0
      %1984 = vmatpush1.xpose.msra.mxu0 0.0
      %1985 = vmatprep.subr.mxu0 0.0
      %1986 = vmatpush1.xpose.msra.mxu0 0.0
      %1987 = vmatprep.subr.mxu0 0.0
      %1988 = vmatpush1.xpose.msra.mxu0 0.0
      %1989 = vmatprep.subr.mxu0 0.0
      %1990 = vmatpush1.xpose.msra.mxu0 0.0
      %1991 = vmatprep.subr.mxu0 0.0
      %1992 = vmatpush1.xpose.msra.mxu0 0.0
      %1993 = vmatprep.subr.mxu0 0.0
      %1994 = vmatpush1.xpose.msra.mxu0 0.0
      %1995 = vmatprep.subr.mxu0 0.0
      %1996 = vmatpush1.xpose.msra.mxu0 0.0
      %1997 = vmatprep.subr.mxu0 0.0
      %1998 = vmatpush1.xpose.msra.mxu0 0.0
      %1999 = vmatprep.subr.mxu0 0.0
      %2000 = vmatpush1.xpose.msra.mxu0 0.0
      %2001 = vmatprep.mubr.f32.mxu0 0.0
      %2002 = vmatmul.mubr.f32.gmra.mrb[0].mxu0 %v1933
      %v2003 = vpop.f32.mrb[0].mxu0
      %v2004 = vadd.f32 0.0, %v2003
      %v2005 = vpop.f32.mrb[0].mxu0
      %2006 = vdwg.mxu0
      %v2007 = vsel %vm490, %v2004, -inf
      %2008 = vmax.xlane.f32.xlu0 %v2007
      %v2009 = vpop.xlane.xlu0 %2008
      %v2010 = vsub.f32 %v2004, %v2009
      %v2011 = vmul.f32 %v2010, 1.442695
      %v2012 = vpow.pop %v2011
      %v2013 = vsel %vm490, %v2012, 0.0
      %2014 = vadd.xlane.f32.xlu0 %v2013
      %v2015 = vpop.xlane.xlu0 %2014
      %v2016 = vrcp.pop %v2015
      %v2017 = vmul.f32 %v2012, %v2016
      %2018 = vrot.lane.b32.xlu0 %v1432, 72
      %v2019 = vpop.permute.xlu0 %2018
      %v2022 = vsel %vm490, %v2017, 0
      %2024 = vmatprep.subr.mxu0 0.0
      %2025 = vmatpush1.msra.mxu0 %v2019
      %2026 = vmatprep.subr.mxu0 0.0
      %2027 = vmatpush1.msra.mxu0 0.0
      %2028 = vmatprep.subr.mxu0 0.0
      %2029 = vmatpush1.msra.mxu0 0.0
      %2030 = vmatprep.subr.mxu0 0.0
      %2031 = vmatpush1.msra.mxu0 0.0
      %2032 = vmatprep.subr.mxu0 0.0
      %2033 = vmatpush1.msra.mxu0 0.0
      %2034 = vmatprep.subr.mxu0 0.0
      %2035 = vmatpush1.msra.mxu0 0.0
      %2036 = vmatprep.subr.mxu0 0.0
      %2037 = vmatpush1.msra.mxu0 0.0
      %2038 = vmatprep.subr.mxu0 0.0
      %2039 = vmatpush1.msra.mxu0 0.0
      %2040 = vmatprep.subr.mxu0 0.0
      %2041 = vmatpush1.msra.mxu0 0.0
      %2042 = vmatprep.subr.mxu0 0.0
      %2043 = vmatpush1.msra.mxu0 0.0
      %2044 = vmatprep.subr.mxu0 0.0
      %2045 = vmatpush1.msra.mxu0 0.0
      %2046 = vmatprep.subr.mxu0 0.0
      %2047 = vmatpush1.msra.mxu0 0.0
      %2048 = vmatprep.subr.mxu0 0.0
      %2049 = vmatpush1.msra.mxu0 0.0
      %2050 = vmatprep.subr.mxu0 0.0
      %2051 = vmatpush1.msra.mxu0 0.0
      %2052 = vmatprep.subr.mxu0 0.0
      %2053 = vmatpush1.msra.mxu0 0.0
      %2054 = vmatprep.subr.mxu0 0.0
      %2055 = vmatpush1.msra.mxu0 0.0
      %2056 = vmatprep.subr.mxu0 0.0
      %2057 = vmatpush1.msra.mxu0 0.0
      %2058 = vmatprep.subr.mxu0 0.0
      %2059 = vmatpush1.msra.mxu0 0.0
      %2060 = vmatprep.subr.mxu0 0.0
      %2061 = vmatpush1.msra.mxu0 0.0
      %2062 = vmatprep.subr.mxu0 0.0
      %2063 = vmatpush1.msra.mxu0 0.0
      %2064 = vmatprep.subr.mxu0 0.0
      %2065 = vmatpush1.msra.mxu0 0.0
      %2066 = vmatprep.subr.mxu0 0.0
      %2067 = vmatpush1.msra.mxu0 0.0
      %2068 = vmatprep.subr.mxu0 0.0
      %2069 = vmatpush1.msra.mxu0 0.0
      %2070 = vmatprep.subr.mxu0 0.0
      %2071 = vmatpush1.msra.mxu0 0.0
      %2072 = vmatprep.subr.mxu0 0.0
      %2073 = vmatpush1.msra.mxu0 0.0
      %2074 = vmatprep.subr.mxu0 0.0
      %2075 = vmatpush1.msra.mxu0 0.0
      %2076 = vmatprep.subr.mxu0 0.0
      %2077 = vmatpush1.msra.mxu0 0.0
      %2078 = vmatprep.subr.mxu0 0.0
      %2079 = vmatpush1.msra.mxu0 0.0
      %2080 = vmatprep.subr.mxu0 0.0
      %2081 = vmatpush1.msra.mxu0 0.0
      %2082 = vmatprep.subr.mxu0 0.0
      %2083 = vmatpush1.msra.mxu0 0.0
      %2084 = vmatprep.subr.mxu0 0.0
      %2085 = vmatpush1.msra.mxu0 0.0
      %2086 = vmatprep.subr.mxu0 0.0
      %2087 = vmatpush1.msra.mxu0 0.0
      %2088 = vmatprep.mubr.f32.mxu0 0.0
      %2089 = vmatmul.mubr.f32.gmra.mrb[0].mxu0 %v2022
      %v2090 = vpop.f32.mrb[0].mxu0
      %v2091 = vadd.f32 0.0, %v2090
      %v2092 = vpop.f32.mrb[0].mxu0
      %2093 = vdwg.mxu0
      %2095 = vrot.lane.b32.xlu0 %v1761, 8
      %v2096 = vpop.permute.xlu0 %2095
      %2099 = vrot.lane.b32.xlu0 %v1926, 16
      %v2100 = vpop.permute.xlu0 %2099
      %2103 = vrot.lane.b32.xlu0 %v2091, 24
      %v2104 = vpop.permute.xlu0 %2103
      %v2106 = vsel %vm490, %v1596, %v2096
      %v2107 = vsel %vm1161, %v2106, %v2100
      %v2108 = vsel %vm1163, %v2107, %v2104
      %v2110 = vsel %vm412, %v2108, 0
      %2112 = vmatprep.subr.mxu0 0.0
      %2113 = vmatpush1.msra.mxu0 %v407
      %2114 = vmatprep.subr.mxu0 0.0
      %2115 = vmatpush1.msra.mxu0 %v408
      %2116 = vmatprep.subr.mxu0 0.0
      %2117 = vmatpush1.msra.mxu0 %v409
      %2118 = vmatprep.subr.mxu0 0.0
      %2119 = vmatpush1.msra.mxu0 %v410
      %2120 = vmatprep.subr.mxu0 0.0
      %2121 = vmatpush1.msra.mxu0 0.0
      %2122 = vmatprep.subr.mxu0 0.0
      %2123 = vmatpush1.msra.mxu0 0.0
      %2124 = vmatprep.subr.mxu0 0.0
      %2125 = vmatpush1.msra.mxu0 0.0
      %2126 = vmatprep.subr.mxu0 0.0
      %2127 = vmatpush1.msra.mxu0 0.0
      %2128 = vmatprep.subr.mxu0 0.0
      %2129 = vmatpush1.msra.mxu0 0.0
      %2130 = vmatprep.subr.mxu0 0.0
      %2131 = vmatpush1.msra.mxu0 0.0
      %2132 = vmatprep.subr.mxu0 0.0
      %2133 = vmatpush1.msra.mxu0 0.0
      %2134 = vmatprep.subr.mxu0 0.0
      %2135 = vmatpush1.msra.mxu0 0.0
      %2136 = vmatprep.subr.mxu0 0.0
      %2137 = vmatpush1.msra.mxu0 0.0
      %2138 = vmatprep.subr.mxu0 0.0
      %2139 = vmatpush1.msra.mxu0 0.0
      %2140 = vmatprep.subr.mxu0 0.0
      %2141 = vmatpush1.msra.mxu0 0.0
      %2142 = vmatprep.subr.mxu0 0.0
      %2143 = vmatpush1.msra.mxu0 0.0
      %2144 = vmatprep.subr.mxu0 0.0
      %2145 = vmatpush1.msra.mxu0 0.0
      %2146 = vmatprep.subr.mxu0 0.0
      %2147 = vmatpush1.msra.mxu0 0.0
      %2148 = vmatprep.subr.mxu0 0.0
      %2149 = vmatpush1.msra.mxu0 0.0
      %2150 = vmatprep.subr.mxu0 0.0
      %2151 = vmatpush1.msra.mxu0 0.0
      %2152 = vmatprep.subr.mxu0 0.0
      %2153 = vmatpush1.msra.mxu0 0.0
      %2154 = vmatprep.subr.mxu0 0.0
      %2155 = vmatpush1.msra.mxu0 0.0
      %2156 = vmatprep.subr.mxu0 0.0
      %2157 = vmatpush1.msra.mxu0 0.0
      %2158 = vmatprep.subr.mxu0 0.0
      %2159 = vmatpush1.msra.mxu0 0.0
      %2160 = vmatprep.subr.mxu0 0.0
      %2161 = vmatpush1.msra.mxu0 0.0
      %2162 = vmatprep.subr.mxu0 0.0
      %2163 = vmatpush1.msra.mxu0 0.0
      %2164 = vmatprep.subr.mxu0 0.0
      %2165 = vmatpush1.msra.mxu0 0.0
      %2166 = vmatprep.subr.mxu0 0.0
      %2167 = vmatpush1.msra.mxu0 0.0
      %2168 = vmatprep.subr.mxu0 0.0
      %2169 = vmatpush1.msra.mxu0 0.0
      %2170 = vmatprep.subr.mxu0 0.0
      %2171 = vmatpush1.msra.mxu0 0.0
      %2172 = vmatprep.subr.mxu0 0.0
      %2173 = vmatpush1.msra.mxu0 0.0
      %2174 = vmatprep.subr.mxu0 0.0
      %2175 = vmatpush1.msra.mxu0 0.0
      %2176 = vmatprep.mubr.f32.mxu0 0.0
      %2177 = vmatmul.mubr.f32.gmra.mrb[0].mxu0 %v2110
      %v2178 = vpop.f32.mrb[0].mxu0
      %v2179 = vadd.f32 %v1169, %v2178
      %v2180 = vpop.f32.mrb[0].mxu0
      %2181 = vdwg.mxu0
      %v2182 = vmax.f32 %v2179, 0.0
      %v2183 = vadd.f32 %v2182, %v1272
      %v2184 = vsel %vm412, %v2183, 0.0
      %2185 = vadd.xlane.f32.xlu0 %v2184
      %v2186 = vpop.xlane.xlu0 %2185
      %v2187 = vmul.f32 %v2186, %v1248
      %v2188 = vsub.f32 %v2183, %v2187
      %v2189 = vmul.f32 %v2188, %v2188
      %v2190 = vsel %vm412, %v2189, 0.0
      %2191 = vadd.xlane.f32.xlu0 %v2190
      %v2192 = vpop.xlane.xlu0 %2191
      %v2193 = vmul.f32 %v2192, %v1248
      %v2194 = vadd.f32 %v2193, 1e-05
      %v2195 = vrsqrt.pop %v2194
      %v2196 = vmul.f32 %v2188, %v2195
      %v2197 = vmul.f32 %v2196, %v1263
      %v2198 = vadd.f32 %v2197, %v1270
      %v2199 = vld [vmem:[%s7] sm:$0xff]
      %v2200 = vld [vmem:[%s7 + $0x8] sm:$0xff]
      %v2201 = vld [vmem:[%s7 + $0x10] sm:$0xff]
      %v2202 = vld [vmem:[%s7 + $0x18] sm:$0xff]
      %v2203 = vld [vmem:[%s8] sm:$0x1]
      %v2205 = vlaneseq
      %v2206 = vshrl.u32 %v2205, 7
      %v2207 = vsub.s32 0, %v2206
      %v2208 = vrot.slane %v2203, %v2207
      %v2211 = vsel %vm412, %v2198, 0
      %2213 = vmatprep.subr.mxu0 0.0
      %2214 = vmatpush1.msra.mxu0 %v2199
      %2215 = vmatprep.subr.mxu0 0.0
      %2216 = vmatpush1.msra.mxu0 %v2200
      %2217 = vmatprep.subr.mxu0 0.0
      %2218 = vmatpush1.msra.mxu0 %v2201
      %2219 = vmatprep.subr.mxu0 0.0
      %2220 = vmatpush1.msra.mxu0 %v2202
      %2221 = vmatprep.subr.mxu0 0.0
      %2222 = vmatpush1.msra.mxu0 0.0
      %2223 = vmatprep.subr.mxu0 0.0
      %2224 = vmatpush1.msra.mxu0 0.0
      %2225 = vmatprep.subr.mxu0 0.0
      %2226 = vmatpush1.msra.mxu0 0.0
      %2227 = vmatprep.subr.mxu0 0.0
      %2228 = vmatpush1.msra.mxu0 0.0
      %2229 = vmatprep.subr.mxu0 0.0
      %2230 = vmatpush1.msra.mxu0 0.0
      %2231 = vmatprep.subr.mxu0 0.0
      %2232 = vmatpush1.msra.mxu0 0.0
      %2233 = vmatprep.subr.mxu0 0.0
      %2234 = vmatpush1.msra.mxu0 0.0
      %2235 = vmatprep.subr.mxu0 0.0
      %2236 = vmatpush1.msra.mxu0 0.0
      %2237 = vmatprep.subr.mxu0 0.0
      %2238 = vmatpush1.msra.mxu0 0.0
      %2239 = vmatprep.subr.mxu0 0.0
      %2240 = vmatpush1.msra.mxu0 0.0
      %2241 = vmatprep.subr.mxu0 0.0
      %2242 = vmatpush1.msra.mxu0 0.0
      %2243 = vmatprep.subr.mxu0 0.0
      %2244 = vmatpush1.msra.mxu0 0.0
      %2245 = vmatprep.subr.mxu0 0.0
      %2246 = vmatpush1.msra.mxu0 0.0
      %2247 = vmatprep.subr.mxu0 0.0
      %2248 = vmatpush1.msra.mxu0 0.0
      %2249 = vmatprep.subr.mxu0 0.0
      %2250 = vmatpush1.msra.mxu0 0.0
      %2251 = vmatprep.subr.mxu0 0.0
      %2252 = vmatpush1.msra.mxu0 0.0
      %2253 = vmatprep.subr.mxu0 0.0
      %2254 = vmatpush1.msra.mxu0 0.0
      %2255 = vmatprep.subr.mxu0 0.0
      %2256 = vmatpush1.msra.mxu0 0.0
      %2257 = vmatprep.subr.mxu0 0.0
      %2258 = vmatpush1.msra.mxu0 0.0
      %2259 = vmatprep.subr.mxu0 0.0
      %2260 = vmatpush1.msra.mxu0 0.0
      %2261 = vmatprep.subr.mxu0 0.0
      %2262 = vmatpush1.msra.mxu0 0.0
      %2263 = vmatprep.subr.mxu0 0.0
      %2264 = vmatpush1.msra.mxu0 0.0
      %2265 = vmatprep.subr.mxu0 0.0
      %2266 = vmatpush1.msra.mxu0 0.0
      %2267 = vmatprep.subr.mxu0 0.0
      %2268 = vmatpush1.msra.mxu0 0.0
      %2269 = vmatprep.subr.mxu0 0.0
      %2270 = vmatpush1.msra.mxu0 0.0
      %2271 = vmatprep.subr.mxu0 0.0
      %2272 = vmatpush1.msra.mxu0 0.0
      %2273 = vmatprep.subr.mxu0 0.0
      %2274 = vmatpush1.msra.mxu0 0.0
      %2275 = vmatprep.subr.mxu0 0.0
      %2276 = vmatpush1.msra.mxu0 0.0
      %2277 = vmatprep.mubr.f32.mxu0 0.0
      %2278 = vmatmul.mubr.f32.gmra.mrb[0].mxu0 %v2211
      %v2279 = vpop.f32.mrb[0].mxu0
      %v2280 = vadd.f32 %v2208, %v2279
      %v2281 = vpop.f32.mrb[0].mxu0
      %2282 = vdwg.mxu0
      %v2283 = vmax.f32 %v2280, 0.0
      %v2284 = vld [vmem:[%s9] sm:$0xff]
      %v2285 = vld [vmem:[%s9 + $0x8] sm:$0xff]
      %v2286 = vld [vmem:[%s9 + $0x10] sm:$0xff]
      %v2287 = vld [vmem:[%s9 + $0x18] sm:$0xff]
      %v2288 = vld [vmem:[%s9 + $0x20] sm:$0xff]
      %v2289 = vld [vmem:[%s9 + $0x28] sm:$0xff]
      %v2290 = vld [vmem:[%s9 + $0x30] sm:$0xff]
      %v2291 = vld [vmem:[%s9 + $0x38] sm:$0xff]
      %v2292 = vld [vmem:[%s10] sm:$0x1]
      %v2294 = vlaneseq
      %v2295 = vshrl.u32 %v2294, 7
      %v2296 = vsub.s32 0, %v2295
      %v2297 = vrot.slane %v2292, %v2296
      %vm2299 = vcmask 523264
      %v2301 = vsel %vm2299, %v2283, 0
      %2303 = vmatprep.subr.mxu0 0.0
      %2304 = vmatpush1.msra.mxu0 %v2284
      %2305 = vmatprep.subr.mxu0 0.0
      %2306 = vmatpush1.msra.mxu0 %v2285
      %2307 = vmatprep.subr.mxu0 0.0
      %2308 = vmatpush1.msra.mxu0 %v2286
      %2309 = vmatprep.subr.mxu0 0.0
      %2310 = vmatpush1.msra.mxu0 %v2287
      %2311 = vmatprep.subr.mxu0 0.0
      %2312 = vmatpush1.msra.mxu0 %v2288
      %2313 = vmatprep.subr.mxu0 0.0
      %2314 = vmatpush1.msra.mxu0 %v2289
      %2315 = vmatprep.subr.mxu0 0.0
      %2316 = vmatpush1.msra.mxu0 %v2290
      %2317 = vmatprep.subr.mxu0 0.0
      %2318 = vmatpush1.msra.mxu0 %v2291
      %2319 = vmatprep.subr.mxu0 0.0
      %2320 = vmatpush1.msra.mxu0 0.0
      %2321 = vmatprep.subr.mxu0 0.0
      %2322 = vmatpush1.msra.mxu0 0.0
      %2323 = vmatprep.subr.mxu0 0.0
      %2324 = vmatpush1.msra.mxu0 0.0
      %2325 = vmatprep.subr.mxu0 0.0
      %2326 = vmatpush1.msra.mxu0 0.0
      %2327 = vmatprep.subr.mxu0 0.0
      %2328 = vmatpush1.msra.mxu0 0.0
      %2329 = vmatprep.subr.mxu0 0.0
      %2330 = vmatpush1.msra.mxu0 0.0
      %2331 = vmatprep.subr.mxu0 0.0
      %2332 = vmatpush1.msra.mxu0 0.0
      %2333 = vmatprep.subr.mxu0 0.0
      %2334 = vmatpush1.msra.mxu0 0.0
      %2335 = vmatprep.subr.mxu0 0.0
      %2336 = vmatpush1.msra.mxu0 0.0
      %2337 = vmatprep.subr.mxu0 0.0
      %2338 = vmatpush1.msra.mxu0 0.0
      %2339 = vmatprep.subr.mxu0 0.0
      %2340 = vmatpush1.msra.mxu0 0.0
      %2341 = vmatprep.subr.mxu0 0.0
      %2342 = vmatpush1.msra.mxu0 0.0
      %2343 = vmatprep.subr.mxu0 0.0
      %2344 = vmatpush1.msra.mxu0 0.0
      %2345 = vmatprep.subr.mxu0 0.0
      %2346 = vmatpush1.msra.mxu0 0.0
      %2347 = vmatprep.subr.mxu0 0.0
      %2348 = vmatpush1.msra.mxu0 0.0
      %2349 = vmatprep.subr.mxu0 0.0
      %2350 = vmatpush1.msra.mxu0 0.0
      %2351 = vmatprep.subr.mxu0 0.0
      %2352 = vmatpush1.msra.mxu0 0.0
      %2353 = vmatprep.subr.mxu0 0.0
      %2354 = vmatpush1.msra.mxu0 0.0
      %2355 = vmatprep.subr.mxu0 0.0
      %2356 = vmatpush1.msra.mxu0 0.0
      %2357 = vmatprep.subr.mxu0 0.0
      %2358 = vmatpush1.msra.mxu0 0.0
      %2359 = vmatprep.subr.mxu0 0.0
      %2360 = vmatpush1.msra.mxu0 0.0
      %2361 = vmatprep.subr.mxu0 0.0
      %2362 = vmatpush1.msra.mxu0 0.0
      %2363 = vmatprep.subr.mxu0 0.0
      %2364 = vmatpush1.msra.mxu0 0.0
      %2365 = vmatprep.subr.mxu0 0.0
      %2366 = vmatpush1.msra.mxu0 0.0
      %2367 = vmatprep.mubr.f32.mxu0 0.0
      %2368 = vmatmul.mubr.f32.gmra.mrb[0].mxu0 %v2301
      %v2369 = vpop.f32.mrb[0].mxu0
      %v2370 = vadd.f32 %v2297, %v2369
      %v2371 = vpop.f32.mrb[0].mxu0
      %2372 = vdwg.mxu0
      %v2373 = vadd.f32 %v2370, %v2198
      %v2374 = vsel %vm412, %v2373, 0.0
      %2375 = vadd.xlane.f32.xlu0 %v2374
      %v2376 = vpop.xlane.xlu0 %2375
      %v2377 = vmul.f32 %v2376, %v1248
      %v2378 = vsub.f32 %v2373, %v2377
      %v2379 = vmul.f32 %v2378, %v2378
      %v2380 = vsel %vm412, %v2379, 0.0
      %2381 = vadd.xlane.f32.xlu0 %v2380
      %v2382 = vpop.xlane.xlu0 %2381
      %v2383 = vmul.f32 %v2382, %v1248
      %v2384 = vadd.f32 %v2383, 1e-05
      %v2385 = vrsqrt.pop %v2384
      %v2386 = vmul.f32 %v2378, %v2385
      %v2387 = vmul.f32 %v2386, %v1263
      %v2388 = vadd.f32 %v2387, %v1270
      %2389 = vst.msk [vmem:[%s398] sm:$0xff] %vm412, %v2388
      %p2390 = scmp.lt.s32.totalorder %s22, 1
      %s2391 = scalar_select %p2390, %s22, 1
      %s2392 = smul.addr %s2391, 8
      %s2393 = scalar_lea.vmem %s11, %s2392
      // Predicated region
      $region65: #{decoder_forward.2} parent=63 // pred_check
        %p2394 = pneg %p281
      $region66: #{decoder_forward.2} parent=63 // pred_check_branch
        %2396 = sbr.rel (%p2394) target = $region68
      $region67: #{decoder_forward.2} parent=63 // pred_region
        _
      $region68: #{decoder_forward.2} parent=63 // pred_fallthru
        _
    $region64: #{decoder_forward.2} parent=5 // pred_fallthru
      _
    %p2397 = scmp.le.s32.totalorder 2, %s17
    // Predicated region
    $region69: #{decoder_forward.2} parent=5 // pred_check
      %p2398 = pneg %p2397
    $region70: #{decoder_forward.2} parent=5 // pred_check_branch
      %2400 = sbr.rel (%p2398) target = $region72
    $region71: #{decoder_forward.2} parent=5 // pred_region
      %s2401 = ssub.s32 %s17, 2
      // Predicated region
      $region73: #{decoder_forward.2} parent=71 // pred_check
        %p2402 = pneg %p287
      $region74: #{decoder_forward.2} parent=71 // pred_check_branch
        %2404 = sbr.rel (%p2402) target = $region76
      $region75: #{decoder_forward.2} parent=71 // pred_region
        %p2405 = scmp.lt.s32.totalorder %s23, 1
        %s2406 = scalar_select %p2405, %s23, 1
        %s2407 = smul.addr %s2406, 8
        %s2408 = scalar_lea.vmem %s11, %s2407
      $region76: #{decoder_forward.2} parent=71 // pred_fallthru
        _
    $region72: #{decoder_forward.2} parent=5 // pred_fallthru
      _
  $region6: #{decoder_forward.2} parent=0 // loop_footer
    %s21 = sadd.s32 1, %s17
  $region7: #{decoder_forward.2} parent=0 // loop_footer_branch
    %16 = sbr.rel target = $region3
  $region8: #{decoder_forward.2} parent=0 // loop_exit
    _

</llo_original>
